<compile_context>
chip_gen: v7x
topology: tpu7x:2x2x1
jax: 0.10.0
libtpu: 0.0.40
codegen_flags: <defaults>
</compile_context>

<pallas_src>
import math

import jax
import jax.numpy as jnp
from jax.experimental import pallas as pl
from jax.experimental.pallas import tpu as pltpu

D_IN, D_H1, D_H2, D_H3, D_OUT = 1280, 512, 512, 128, 20
NEG_SLOPE = 0.01          # PyTorch nn.LeakyReLU() default
TM_MAX = 1024             # batch tile cap; sized for v7x's 64 MiB VMEM


def _round_up(n, m):
    return ((n + m - 1) // m) * m


def _leaky_relu(x):
    return jnp.where(x > 0, x, NEG_SLOPE * x)


def _pick_tm(B):
    """Batch tile: multiple of 16; >=4 grid steps once B is large enough."""
    if B >= 512:
        return min(TM_MAX, _round_up(pl.cdiv(B, 4), 16))
    return min(TM_MAX, _round_up(B, 16))


def fc_kernel(x_ref, w1_ref, b1_ref, w2_ref, b2_ref, w3_ref, b3_ref,
              w4_ref, b4_ref, o_ref):
    # x arrives as float32; cast to bf16 in-kernel (hidden under MXU cycles).
    x = x_ref[...].astype(jnp.bfloat16)

    # Layer 1: Linear(1280, 512) -> (Dropout: identity in eval) -> LeakyReLU
    h = jnp.dot(x, w1_ref[...], preferred_element_type=jnp.float32) + b1_ref[...]
    h = _leaky_relu(h).astype(jnp.bfloat16)

    # Layer 2: Linear(512, 512) -> LeakyReLU
    h = jnp.dot(h, w2_ref[...], preferred_element_type=jnp.float32) + b2_ref[...]
    h = _leaky_relu(h).astype(jnp.bfloat16)

    # Layer 3: Linear(512, 128) -> LeakyReLU
    h = jnp.dot(h, w3_ref[...], preferred_element_type=jnp.float32) + b3_ref[...]
    h = _leaky_relu(h).astype(jnp.bfloat16)

    # Layer 4: Linear(128, 20) -> sigmoid (f32 output)
    h = jnp.dot(h, w4_ref[...], preferred_element_type=jnp.float32) + b4_ref[...]
    o_ref[...] = jax.nn.sigmoid(h).astype(o_ref.dtype)


def fc_forward(x, params, tm=None):
    """x: any shape with leading batch dim; flattened to (B, 1280) f32.

    params: (w1,b1,w2,b2,w3,b3,w4,b4) with weights already bf16, shape
    (in, out) (transposed vs. PyTorch), biases float32 shape (1, out).
    """
    B = x.shape[0]
    x2d = x.reshape(B, -1)
    assert x2d.shape[1] == D_IN, f"expected flattened dim {D_IN}, got {x2d.shape[1]}"
    x2d = x2d.astype(jnp.float32)

    w1, b1, w2, b2, w3, b3, w4, b4 = params

    if tm is None:
        tm = _pick_tm(B)
    grid = (pl.cdiv(B, tm),)

    # Weights/biases: whole-array blocks with constant index_map -> DMA'd
    # once, resident in VMEM across all batch tiles.
    def const(arr):
        nd = arr.ndim
        return pl.BlockSpec(arr.shape, lambda i, _nd=nd: (0,) * _nd)

    out = pl.pallas_call(
        fc_kernel,
        out_shape=jax.ShapeDtypeStruct((B, D_OUT), jnp.float32),
        grid=grid,
        in_specs=[pl.BlockSpec((tm, D_IN), lambda i: (i, 0)),
                  const(w1), const(b1), const(w2), const(b2),
                  const(w3), const(b3), const(w4), const(b4)],
        out_specs=pl.BlockSpec((tm, D_OUT), lambda i: (i, 0)),
        compiler_params=pltpu.CompilerParams(
            dimension_semantics=("parallel",),
            vmem_limit_bytes=48 * 1024 * 1024),
    )(x2d, w1, b1, w2, b2, w3, b3, w4, b4)
    return out


def xavier_normal(key, fan_in, fan_out):
    # torch.nn.init.xavier_normal_: std = sqrt(2 / (fan_in + fan_out))
    std = math.sqrt(2.0 / (fan_in + fan_out))
    # stored as (in, out) so the kernel can do x @ W
    return std * jax.random.normal(key, (fan_in, fan_out), dtype=jnp.float32)


def init_params(key):
    """Weights cast to bf16 once here (weight-load time); biases stay f32."""
    dims = [(D_IN, D_H1), (D_H1, D_H2), (D_H2, D_H3), (D_H3, D_OUT)]
    keys = jax.random.split(key, len(dims))
    params = []
    for k, (fi, fo) in zip(keys, dims):
        w = xavier_normal(k, fi, fo).astype(jnp.bfloat16)      # weight (in, out)
        params.append(w)
        params.append(jnp.zeros((1, fo), dtype=jnp.float32))   # bias (zero init)
    return tuple(params)


def fc_reference(x, params):
    """Pure-JAX reference (eval mode) using the same bf16 operand quantization."""
    w1, b1, w2, b2, w3, b3, w4, b4 = params

    def lin(h, w, b):
        return jnp.dot(h.astype(jnp.bfloat16), w,
                       preferred_element_type=jnp.float32) + b

    h = x.reshape(x.shape[0], -1).astype(jnp.float32)
    h = _leaky_relu(lin(h, w1, b1))
    h = _leaky_relu(lin(h, w2, b2))
    h = _leaky_relu(lin(h, w3, b3))
    return jax.nn.sigmoid(lin(h, w4, b4))


if __name__ == "__main__":
    key = jax.random.PRNGKey(0)
    k_param, k_x1, k_x2 = jax.random.split(key, 3)

    params = init_params(k_param)

    # Test 1: tiny batch; input (B, 10, 128) flattens to (B, 1280), matching
    # X.view(X.shape[0], -1) in the PyTorch forward. Single partial block.
    B = 2
    x = jax.random.normal(k_x1, (B, 10, 128), dtype=jnp.float32)
    out = jax.block_until_ready(fc_forward(x, params))
    ref = fc_reference(x, params)
    assert out.shape == (B, D_OUT), out.shape
    assert jnp.allclose(out, ref, atol=2e-3, rtol=2e-3), \
        float(jnp.max(jnp.abs(out - ref)))

    # Test 2: multi-tile batch grid with a ragged last block handled by
    # Pallas partial-block masking (B=20, tm=16 -> grid of 2, 4 valid rows
    # in the last block).
    B2 = 20
    x2 = jax.random.normal(k_x2, (B2, 10, 128), dtype=jnp.float32)
    out2 = jax.block_until_ready(fc_forward(x2, params, tm=16))
    ref2 = fc_reference(x2, params)
    assert out2.shape == (B2, D_OUT), out2.shape
    assert jnp.allclose(out2, ref2, atol=2e-3, rtol=2e-3), \
        float(jnp.max(jnp.abs(out2 - ref2)))

    print("KERNEL_OK")
</pallas_src>

<mosaic_0001>
module attributes {stable_mosaic.version = 11 : i64} {
  func.func @fc_kernel(%arg0: i32, %arg1: memref<16x1280xf32, #tpu.memory_space<vmem>>, %arg2: memref<1280x512xbf16, #tpu.memory_space<vmem>>, %arg3: memref<1x512xf32, #tpu.memory_space<vmem>>, %arg4: memref<512x512xbf16, #tpu.memory_space<vmem>>, %arg5: memref<1x512xf32, #tpu.memory_space<vmem>>, %arg6: memref<512x128xbf16, #tpu.memory_space<vmem>>, %arg7: memref<1x128xf32, #tpu.memory_space<vmem>>, %arg8: memref<128x20xbf16, #tpu.memory_space<vmem>>, %arg9: memref<1x20xf32, #tpu.memory_space<vmem>>, %arg10: memref<16x20xf32, #tpu.memory_space<vmem>>) attributes {dimension_semantics = [#tpu.dimension_semantics<parallel>], iteration_bounds = array<i64: 1>, scalar_prefetch = 0 : i64, scratch_operands = 0 : i64, tpu.core_type = #tpu.core_type<tc>, window_params = [{transform_indices = @transform_0, window_bounds = array<i64: 16, 1280>}, {pipeline_mode = #tpu.pipeline_mode<synchronous>, transform_indices = @transform_1, window_bounds = array<i64: 1280, 512>}, {pipeline_mode = #tpu.pipeline_mode<synchronous>, transform_indices = @transform_2, window_bounds = array<i64: 1, 512>}, {pipeline_mode = #tpu.pipeline_mode<synchronous>, transform_indices = @transform_3, window_bounds = array<i64: 512, 512>}, {pipeline_mode = #tpu.pipeline_mode<synchronous>, transform_indices = @transform_4, window_bounds = array<i64: 1, 512>}, {pipeline_mode = #tpu.pipeline_mode<synchronous>, transform_indices = @transform_5, window_bounds = array<i64: 512, 128>}, {pipeline_mode = #tpu.pipeline_mode<synchronous>, transform_indices = @transform_6, window_bounds = array<i64: 1, 128>}, {pipeline_mode = #tpu.pipeline_mode<synchronous>, transform_indices = @transform_7, window_bounds = array<i64: 128, 20>}, {pipeline_mode = #tpu.pipeline_mode<synchronous>, transform_indices = @transform_8, window_bounds = array<i64: 1, 20>}, {transform_indices = @transform_9, window_bounds = array<i64: 16, 20>}]} {
    %c0 = arith.constant 0 : index
    %c0_0 = arith.constant 0 : index
    %0 = vector.load %arg1[%c0, %c0_0] : memref<16x1280xf32, #tpu.memory_space<vmem>>, vector<16x1280xf32>
    %1 = arith.truncf %0 : vector<16x1280xf32> to vector<16x1280xbf16>
    %c0_1 = arith.constant 0 : index
    %c0_2 = arith.constant 0 : index
    %2 = vector.load %arg2[%c0_1, %c0_2] : memref<1280x512xbf16, #tpu.memory_space<vmem>>, vector<1280x512xbf16>
    %cst = arith.constant dense<0.000000e+00> : vector<16x512xf32>
    %3 = tpu.matmul %1, %2, %cst {dimension_numbers = #tpu.dot_dimension_numbers<[1], [0], [0], [1], [0, 0, 1, 1], [], []>} : vector<16x1280xbf16>, vector<1280x512xbf16>, vector<16x512xf32> -> vector<16x512xf32>
    %c0_3 = arith.constant 0 : index
    %c0_4 = arith.constant 0 : index
    %4 = vector.load %arg3[%c0_3, %c0_4] : memref<1x512xf32, #tpu.memory_space<vmem>>, vector<1x512xf32>
    %5 = vector.broadcast %4 : vector<1x512xf32> to vector<16x512xf32>
    %6 = arith.addf %3, %5 : vector<16x512xf32>
    %cst_5 = arith.constant 0.000000e+00 : f32
    %7 = vector.broadcast %cst_5 : f32 to vector<16x512xf32>
    %8 = arith.cmpf ogt, %6, %7 : vector<16x512xf32>
    %cst_6 = arith.constant 0.00999999977 : f32
    %9 = vector.broadcast %cst_6 : f32 to vector<16x512xf32>
    %10 = arith.mulf %9, %6 : vector<16x512xf32>
    %11 = arith.select %8, %6, %10 : vector<16x512xi1>, vector<16x512xf32>
    %12 = arith.truncf %11 : vector<16x512xf32> to vector<16x512xbf16>
    %c0_7 = arith.constant 0 : index
    %c0_8 = arith.constant 0 : index
    %13 = vector.load %arg4[%c0_7, %c0_8] : memref<512x512xbf16, #tpu.memory_space<vmem>>, vector<512x512xbf16>
    %cst_9 = arith.constant dense<0.000000e+00> : vector<16x512xf32>
    %14 = tpu.matmul %12, %13, %cst_9 {dimension_numbers = #tpu.dot_dimension_numbers<[1], [0], [0], [1], [0, 0, 1, 1], [], []>} : vector<16x512xbf16>, vector<512x512xbf16>, vector<16x512xf32> -> vector<16x512xf32>
    %c0_10 = arith.constant 0 : index
    %c0_11 = arith.constant 0 : index
    %15 = vector.load %arg5[%c0_10, %c0_11] : memref<1x512xf32, #tpu.memory_space<vmem>>, vector<1x512xf32>
    %16 = vector.broadcast %15 : vector<1x512xf32> to vector<16x512xf32>
    %17 = arith.addf %14, %16 : vector<16x512xf32>
    %cst_12 = arith.constant 0.000000e+00 : f32
    %18 = vector.broadcast %cst_12 : f32 to vector<16x512xf32>
    %19 = arith.cmpf ogt, %17, %18 : vector<16x512xf32>
    %cst_13 = arith.constant 0.00999999977 : f32
    %20 = vector.broadcast %cst_13 : f32 to vector<16x512xf32>
    %21 = arith.mulf %20, %17 : vector<16x512xf32>
    %22 = arith.select %19, %17, %21 : vector<16x512xi1>, vector<16x512xf32>
    %23 = arith.truncf %22 : vector<16x512xf32> to vector<16x512xbf16>
    %c0_14 = arith.constant 0 : index
    %c0_15 = arith.constant 0 : index
    %24 = vector.load %arg6[%c0_14, %c0_15] : memref<512x128xbf16, #tpu.memory_space<vmem>>, vector<512x128xbf16>
    %cst_16 = arith.constant dense<0.000000e+00> : vector<16x128xf32>
    %25 = tpu.matmul %23, %24, %cst_16 {dimension_numbers = #tpu.dot_dimension_numbers<[1], [0], [0], [1], [0, 0, 1, 1], [], []>} : vector<16x512xbf16>, vector<512x128xbf16>, vector<16x128xf32> -> vector<16x128xf32>
    %c0_17 = arith.constant 0 : index
    %c0_18 = arith.constant 0 : index
    %26 = vector.load %arg7[%c0_17, %c0_18] : memref<1x128xf32, #tpu.memory_space<vmem>>, vector<1x128xf32>
    %27 = vector.broadcast %26 : vector<1x128xf32> to vector<16x128xf32>
    %28 = arith.addf %25, %27 : vector<16x128xf32>
    %cst_19 = arith.constant 0.000000e+00 : f32
    %29 = vector.broadcast %cst_19 : f32 to vector<16x128xf32>
    %30 = arith.cmpf ogt, %28, %29 : vector<16x128xf32>
    %cst_20 = arith.constant 0.00999999977 : f32
    %31 = vector.broadcast %cst_20 : f32 to vector<16x128xf32>
    %32 = arith.mulf %31, %28 : vector<16x128xf32>
    %33 = arith.select %30, %28, %32 : vector<16x128xi1>, vector<16x128xf32>
    %34 = arith.truncf %33 : vector<16x128xf32> to vector<16x128xbf16>
    %c0_21 = arith.constant 0 : index
    %c0_22 = arith.constant 0 : index
    %35 = vector.load %arg8[%c0_21, %c0_22] : memref<128x20xbf16, #tpu.memory_space<vmem>>, vector<128x20xbf16>
    %cst_23 = arith.constant dense<0.000000e+00> : vector<16x20xf32>
    %36 = tpu.matmul %34, %35, %cst_23 {dimension_numbers = #tpu.dot_dimension_numbers<[1], [0], [0], [1], [0, 0, 1, 1], [], []>} : vector<16x128xbf16>, vector<128x20xbf16>, vector<16x20xf32> -> vector<16x20xf32>
    %c0_24 = arith.constant 0 : index
    %c0_25 = arith.constant 0 : index
    %37 = vector.load %arg9[%c0_24, %c0_25] : memref<1x20xf32, #tpu.memory_space<vmem>>, vector<1x20xf32>
    %38 = vector.broadcast %37 : vector<1x20xf32> to vector<16x20xf32>
    %39 = arith.addf %36, %38 : vector<16x20xf32>
    %40 = arith.negf %39 : vector<16x20xf32>
    %41 = math.exp %40 : vector<16x20xf32>
    %cst_26 = arith.constant 1.000000e+00 : f32
    %42 = vector.broadcast %cst_26 : f32 to vector<16x20xf32>
    %43 = arith.addf %42, %41 : vector<16x20xf32>
    %44 = arith.divf %42, %43 : vector<16x20xf32>
    %c0_27 = arith.constant 0 : index
    %c0_28 = arith.constant 0 : index
    %45 = vector.load %arg10[%c0_27, %c0_28] : memref<16x20xf32, #tpu.memory_space<vmem>>, vector<16x20xf32>
    tpu.vector_store %arg10[%c0_27, %c0_28], %44 {strides = array<i32>} : memref<16x20xf32, #tpu.memory_space<vmem>>, vector<16x20xf32>,
    return
  }
  func.func @transform_0(%arg0: i32) -> (i32, i32) {
    %c0_i32 = arith.constant 0 : i32
    %c0_i32_0 = arith.constant 0 : i32
    return %arg0, %c0_i32 : i32, i32
  }
  func.func @transform_1(%arg0: i32) -> (i32, i32) {
    %c0_i32 = arith.constant 0 : i32
    %c0_i32_0 = arith.constant 0 : i32
    %c0_i32_1 = arith.constant 0 : i32
    return %c0_i32, %c0_i32_0 : i32, i32
  }
  func.func @transform_2(%arg0: i32) -> (i32, i32) {
    %c0_i32 = arith.constant 0 : i32
    %c0_i32_0 = arith.constant 0 : i32
    %c0_i32_1 = arith.constant 0 : i32
    return %c0_i32, %c0_i32_0 : i32, i32
  }
  func.func @transform_3(%arg0: i32) -> (i32, i32) {
    %c0_i32 = arith.constant 0 : i32
    %c0_i32_0 = arith.constant 0 : i32
    %c0_i32_1 = arith.constant 0 : i32
    return %c0_i32, %c0_i32_0 : i32, i32
  }
  func.func @transform_4(%arg0: i32) -> (i32, i32) {
    %c0_i32 = arith.constant 0 : i32
    %c0_i32_0 = arith.constant 0 : i32
    %c0_i32_1 = arith.constant 0 : i32
    return %c0_i32, %c0_i32_0 : i32, i32
  }
  func.func @transform_5(%arg0: i32) -> (i32, i32) {
    %c0_i32 = arith.constant 0 : i32
    %c0_i32_0 = arith.constant 0 : i32
    %c0_i32_1 = arith.constant 0 : i32
    return %c0_i32, %c0_i32_0 : i32, i32
  }
  func.func @transform_6(%arg0: i32) -> (i32, i32) {
    %c0_i32 = arith.constant 0 : i32
    %c0_i32_0 = arith.constant 0 : i32
    %c0_i32_1 = arith.constant 0 : i32
    return %c0_i32, %c0_i32_0 : i32, i32
  }
  func.func @transform_7(%arg0: i32) -> (i32, i32) {
    %c0_i32 = arith.constant 0 : i32
    %c0_i32_0 = arith.constant 0 : i32
    %c0_i32_1 = arith.constant 0 : i32
    return %c0_i32, %c0_i32_0 : i32, i32
  }
  func.func @transform_8(%arg0: i32) -> (i32, i32) {
    %c0_i32 = arith.constant 0 : i32
    %c0_i32_0 = arith.constant 0 : i32
    %c0_i32_1 = arith.constant 0 : i32
    return %c0_i32, %c0_i32_0 : i32, i32
  }
  func.func @transform_9(%arg0: i32) -> (i32, i32) {
    %c0_i32 = arith.constant 0 : i32
    %c0_i32_0 = arith.constant 0 : i32
    return %arg0, %c0_i32 : i32, i32
  }
}

</mosaic_0001>

<llo_original>
// kernel: tpu_custom_call.1
$region0: #{tpu_custom_call.1}
  #allocation0 [shape = 'u32[]', space=smem, size = 0x4, offset = 0x4, fixed_abs, tag = 'smem constant byte address 0x4 - core index']
  #allocation1 [shape = 'u32[144,128]{1,0:T(1,128)}', space=vmem, size = 0x12000, scoped, tag = 'internal scratch']
  %s0 = inlined_call_operand.hbm [shape: f32[2,1280], index: 0, kind: input, shape index: {}]
  %s1 = inlined_call_operand.hbm [shape: bf16[1280,512], index: 1, kind: input, shape index: {}]
  %s2 = inlined_call_operand.hbm [shape: f32[1,512], index: 2, kind: input, shape index: {}]
  %s3 = inlined_call_operand.hbm [shape: bf16[512,512], index: 3, kind: input, shape index: {}]
  %s4 = inlined_call_operand.hbm [shape: f32[1,512], index: 4, kind: input, shape index: {}]
  %s5 = inlined_call_operand.hbm [shape: bf16[512,128], index: 5, kind: input, shape index: {}]
  %s6 = inlined_call_operand.hbm [shape: f32[1,128], index: 6, kind: input, shape index: {}]
  %s7 = inlined_call_operand.vmem [shape: bf16[128,20], index: 7, kind: input, shape index: {}]
  %s8 = inlined_call_operand.hbm [shape: f32[1,20], index: 8, kind: input, shape index: {}]
  %s9 = inlined_call_operand.hbm [shape: f32[2,20], index: 9, kind: output, shape index: {}]
  %s10 = sld [smem:[#allocation0]]
  $region78: #{tpu_custom_call.1} parent=0
    _
  %s12 = ssub.s32 1, %s10
  %s13 = scalar_select 0, %s12, %s10
  $region1: #{tpu_custom_call.1} parent=0
    #allocation2 [shape = 'u8[81920]{0}', space=vmem, size = 0x14000, scoped, tag = 'input window, operand 0, single buffered']
    #allocation3 [shape = 's32[1]{0}', space=sflag, size = 0x4, scoped, tag = 'scoped memory for tpu_custom_call.1']
    #allocation4 [shape = 's32[1]{0}', space=sflag, size = 0x4, scoped, tag = 'scoped memory for tpu_custom_call.1']
    #allocation5 [shape = 'u8[1310720]{0}', space=vmem, size = 0x140000, scoped, tag = 'input window, operand 1, single buffered']
    #allocation6 [shape = 's32[1]{0}', space=sflag, size = 0x4, scoped, tag = 'scoped memory for tpu_custom_call.1']
    #allocation7 [shape = 'u8[2048]{0}', space=vmem, size = 0x800, scoped, tag = 'input window, operand 2, single buffered']
    #allocation8 [shape = 'u8[524288]{0}', space=vmem, size = 0x80000, scoped, tag = 'input window, operand 3, single buffered']
    #allocation9 [shape = 's32[1]{0}', space=sflag, size = 0x4, scoped, tag = 'scoped memory for tpu_custom_call.1']
    #allocation10 [shape = 'u8[2048]{0}', space=vmem, size = 0x800, scoped, tag = 'input window, operand 4, single buffered']
    #allocation11 [shape = 'u8[131072]{0}', space=vmem, size = 0x20000, scoped, tag = 'input window, operand 5, single buffered']
    #allocation12 [shape = 's32[1]{0}', space=sflag, size = 0x4, scoped, tag = 'scoped memory for tpu_custom_call.1']
    #allocation13 [shape = 'u8[512]{0}', space=vmem, size = 0x400, scoped, tag = 'input window, operand 6, single buffered']
    #allocation14 [shape = 'u8[512]{0}', space=vmem, size = 0x400, scoped, tag = 'input window, operand 8, single buffered']
    #allocation15 [shape = 's32[1]{0}', space=sflag, size = 0x4, scoped, tag = 'scoped memory for tpu_custom_call.1']
    #allocation16 [shape = 'u8[8192]{0}', space=vmem, size = 0x2000, scoped, tag = 'output window, operand 0, single buffered']
    %14 = vsyncpa [#allocation3], 0
    %15 = vsyncpa [#allocation6], 0
    %16 = vsyncpa [#allocation9], 0
    %17 = vsyncpa [#allocation12], 0
    %18 = vsyncpa [#allocation15], 0
    %19 = vsyncpa [#allocation4], 0
    // Predicated region
    $region2: #{tpu_custom_call.1} parent=1 // pred_check
      _
    $region3: #{tpu_custom_call.1} parent=1 // pred_check_branch
      %21 = sbr.rel (0) target = $region5
    $region4: #{tpu_custom_call.1} parent=1 // pred_region
      %s23 = ssub.s32 2560, 320
      %24 = vsyncadd [#allocation3], %s23
      %s25 = sshll.u32 [#allocation2], 4
      %s26 = int_to_ptr.vmem [resolvable:$true] %s25
      %31 = dma.hbm_to_vmem [thread:$0]  %s0, 320, %s26, [#allocation3], 320, 320, 20
    $region5: #{tpu_custom_call.1} parent=1 // pred_fallthru
      _
    // Predicated region
    $region6: #{tpu_custom_call.1} parent=1 // pred_check
      _
    $region7: #{tpu_custom_call.1} parent=1 // pred_check_branch
      %33 = sbr.rel (0) target = $region9
    $region8: #{tpu_custom_call.1} parent=1 // pred_region
      %s35 = ssub.s32 40960, 40960
      %36 = vsyncadd [#allocation6], %s35
      %s37 = sshll.u32 [#allocation5], 4
      %s38 = int_to_ptr.vmem [resolvable:$true] %s37
      %43 = dma.hbm_to_vmem [thread:$0]  %s1, 40960, %s38, [#allocation6], 256, 256, 16
    $region9: #{tpu_custom_call.1} parent=1 // pred_fallthru
      _
    // Predicated region
    $region10: #{tpu_custom_call.1} parent=1 // pred_check
      _
    $region11: #{tpu_custom_call.1} parent=1 // pred_check_branch
      %45 = sbr.rel (0) target = $region13
    $region12: #{tpu_custom_call.1} parent=1 // pred_region
      %s47 = ssub.s32 64, 64
      %48 = vsyncadd [#allocation6], %s47
      %s50 = sshll.u32 [#allocation7], 4
      %s51 = int_to_ptr.vmem [resolvable:$true] %s50
      %53 = dma.hbm_to_vmem [thread:$0]  %s2, 64, %s51, [#allocation6]
    $region13: #{tpu_custom_call.1} parent=1 // pred_fallthru
      _
    // Predicated region
    $region14: #{tpu_custom_call.1} parent=1 // pred_check
      _
    $region15: #{tpu_custom_call.1} parent=1 // pred_check_branch
      %55 = sbr.rel (0) target = $region17
    $region16: #{tpu_custom_call.1} parent=1 // pred_region
      %s57 = ssub.s32 16384, 16384
      %58 = vsyncadd [#allocation9], %s57
      %s59 = sshll.u32 [#allocation8], 4
      %s60 = int_to_ptr.vmem [resolvable:$true] %s59
      %65 = dma.hbm_to_vmem [thread:$0]  %s3, 16384, %s60, [#allocation9], 256, 256, 16
    $region17: #{tpu_custom_call.1} parent=1 // pred_fallthru
      _
    // Predicated region
    $region18: #{tpu_custom_call.1} parent=1 // pred_check
      _
    $region19: #{tpu_custom_call.1} parent=1 // pred_check_branch
      %67 = sbr.rel (0) target = $region21
    $region20: #{tpu_custom_call.1} parent=1 // pred_region
      %s69 = ssub.s32 64, 64
      %70 = vsyncadd [#allocation9], %s69
      %s72 = sshll.u32 [#allocation10], 4
      %s73 = int_to_ptr.vmem [resolvable:$true] %s72
      %75 = dma.hbm_to_vmem [thread:$0]  %s4, 64, %s73, [#allocation9]
    $region21: #{tpu_custom_call.1} parent=1 // pred_fallthru
      _
    // Predicated region
    $region22: #{tpu_custom_call.1} parent=1 // pred_check
      _
    $region23: #{tpu_custom_call.1} parent=1 // pred_check_branch
      %77 = sbr.rel (0) target = $region25
    $region24: #{tpu_custom_call.1} parent=1 // pred_region
      %s79 = ssub.s32 4096, 4096
      %80 = vsyncadd [#allocation12], %s79
      %s81 = sshll.u32 [#allocation11], 4
      %s82 = int_to_ptr.vmem [resolvable:$true] %s81
      %87 = dma.hbm_to_vmem [thread:$0]  %s5, 4096, %s82, [#allocation12], 64, 64, 4
    $region25: #{tpu_custom_call.1} parent=1 // pred_fallthru
      _
    // Predicated region
    $region26: #{tpu_custom_call.1} parent=1 // pred_check
      _
    $region27: #{tpu_custom_call.1} parent=1 // pred_check_branch
      %89 = sbr.rel (0) target = $region29
    $region28: #{tpu_custom_call.1} parent=1 // pred_region
      %s91 = ssub.s32 16, 16
      %92 = vsyncadd [#allocation12], %s91
      %s94 = sshll.u32 [#allocation13], 4
      %s95 = int_to_ptr.vmem [resolvable:$true] %s94
      %97 = dma.hbm_to_vmem [thread:$0]  %s6, 16, %s95, [#allocation12]
    $region29: #{tpu_custom_call.1} parent=1 // pred_fallthru
      _
    // Predicated region
    $region30: #{tpu_custom_call.1} parent=1 // pred_check
      _
    $region31: #{tpu_custom_call.1} parent=1 // pred_check_branch
      %99 = sbr.rel (0) target = $region33
    $region32: #{tpu_custom_call.1} parent=1 // pred_region
      _
    $region33: #{tpu_custom_call.1} parent=1 // pred_fallthru
      _
    // Predicated region
    $region34: #{tpu_custom_call.1} parent=1 // pred_check
      _
    $region35: #{tpu_custom_call.1} parent=1 // pred_check_branch
      %101 = sbr.rel (0) target = $region37
    $region36: #{tpu_custom_call.1} parent=1 // pred_region
      %s103 = ssub.s32 16, 16
      %104 = vsyncadd [#allocation15], %s103
      %s106 = sshll.u32 [#allocation14], 4
      %s107 = int_to_ptr.vmem [resolvable:$true] %s106
      %109 = dma.hbm_to_vmem [thread:$0]  %s8, 16, %s107, [#allocation15]
    $region37: #{tpu_custom_call.1} parent=1 // pred_fallthru
      _
    // Predicated region
    $region38: #{tpu_custom_call.1} parent=1 // pred_check
      _
    $region39: #{tpu_custom_call.1} parent=1 // pred_check_branch
      %111 = sbr.rel (0) target = $region41
    $region40: #{tpu_custom_call.1} parent=1 // pred_region
      %112 = dma.done [#allocation3], 2560
    $region41: #{tpu_custom_call.1} parent=1 // pred_fallthru
      _
    // Predicated region
    $region42: #{tpu_custom_call.1} parent=1 // pred_check
      _
    $region43: #{tpu_custom_call.1} parent=1 // pred_check_branch
      %114 = sbr.rel (0) target = $region45
    $region44: #{tpu_custom_call.1} parent=1 // pred_region
      %115 = dma.done [#allocation6], 40960
    $region45: #{tpu_custom_call.1} parent=1 // pred_fallthru
      _
    // Predicated region
    $region46: #{tpu_custom_call.1} parent=1 // pred_check
      _
    $region47: #{tpu_custom_call.1} parent=1 // pred_check_branch
      %117 = sbr.rel (0) target = $region49
    $region48: #{tpu_custom_call.1} parent=1 // pred_region
      %118 = dma.done [#allocation6], 64
    $region49: #{tpu_custom_call.1} parent=1 // pred_fallthru
      _
    // Predicated region
    $region50: #{tpu_custom_call.1} parent=1 // pred_check
      _
    $region51: #{tpu_custom_call.1} parent=1 // pred_check_branch
      %120 = sbr.rel (0) target = $region53
    $region52: #{tpu_custom_call.1} parent=1 // pred_region
      %121 = dma.done [#allocation9], 16384
    $region53: #{tpu_custom_call.1} parent=1 // pred_fallthru
      _
    // Predicated region
    $region54: #{tpu_custom_call.1} parent=1 // pred_check
      _
    $region55: #{tpu_custom_call.1} parent=1 // pred_check_branch
      %123 = sbr.rel (0) target = $region57
    $region56: #{tpu_custom_call.1} parent=1 // pred_region
      %124 = dma.done [#allocation9], 64
    $region57: #{tpu_custom_call.1} parent=1 // pred_fallthru
      _
    // Predicated region
    $region58: #{tpu_custom_call.1} parent=1 // pred_check
      _
    $region59: #{tpu_custom_call.1} parent=1 // pred_check_branch
      %126 = sbr.rel (0) target = $region61
    $region60: #{tpu_custom_call.1} parent=1 // pred_region
      %127 = dma.done [#allocation12], 4096
    $region61: #{tpu_custom_call.1} parent=1 // pred_fallthru
      _
    // Predicated region
    $region62: #{tpu_custom_call.1} parent=1 // pred_check
      _
    $region63: #{tpu_custom_call.1} parent=1 // pred_check_branch
      %129 = sbr.rel (0) target = $region65
    $region64: #{tpu_custom_call.1} parent=1 // pred_region
      %130 = dma.done [#allocation12], 16
    $region65: #{tpu_custom_call.1} parent=1 // pred_fallthru
      _
    // Predicated region
    $region66: #{tpu_custom_call.1} parent=1 // pred_check
      _
    $region67: #{tpu_custom_call.1} parent=1 // pred_check_branch
      %132 = sbr.rel (0) target = $region69
    $region68: #{tpu_custom_call.1} parent=1 // pred_region
      %133 = dma.done [#allocation15], 16
    $region69: #{tpu_custom_call.1} parent=1 // pred_fallthru
      _
    %v135 = vld [vmem:[#allocation2] sm:$0xff]
    %v136 = vld [vmem:[#allocation2 + $0x8] sm:$0xff]
    %v137 = vld [vmem:[#allocation2 + $0x10] sm:$0xf]
    %v138 = vld [vmem:[#allocation2 + $0x14] sm:$0xff]
    %v139 = vld [vmem:[#allocation2 + $0x1c] sm:$0xff]
    %v140 = vld [vmem:[#allocation2 + $0x24] sm:$0xf]
    %v141 = vld [vmem:[#allocation2 + $0x28] sm:$0xff]
    %v142 = vld [vmem:[#allocation2 + $0x30] sm:$0xff]
    %v143 = vld [vmem:[#allocation2 + $0x38] sm:$0xf]
    %v144 = vld [vmem:[#allocation2 + $0x3c] sm:$0xff]
    %v145 = vld [vmem:[#allocation2 + $0x44] sm:$0xff]
    %v146 = vld [vmem:[#allocation2 + $0x4c] sm:$0xf]
    %v147 = vld [vmem:[#allocation2 + $0x50] sm:$0xff]
    %v148 = vld [vmem:[#allocation2 + $0x58] sm:$0xff]
    %v149 = vld [vmem:[#allocation2 + $0x60] sm:$0xf]
    %v150 = vld [vmem:[#allocation2 + $0x64] sm:$0xff]
    %v151 = vld [vmem:[#allocation2 + $0x6c] sm:$0xff]
    %v152 = vld [vmem:[#allocation2 + $0x74] sm:$0xf]
    %v153 = vld [vmem:[#allocation2 + $0x78] sm:$0xff]
    %v154 = vld [vmem:[#allocation2 + $0x80] sm:$0xff]
    %v155 = vld [vmem:[#allocation2 + $0x88] sm:$0xf]
    %v156 = vld [vmem:[#allocation2 + $0x8c] sm:$0xff]
    %v157 = vld [vmem:[#allocation2 + $0x94] sm:$0xff]
    %v158 = vld [vmem:[#allocation2 + $0x9c] sm:$0xf]
    %v183 = vcombine.low %v135, %v138
    %v184 = vcombine.high %v135, %v138
    %v185 = vcombine.low %v141, %v144
    %v186 = vcombine.high %v141, %v144
    %v188 = vunpack.c.l.s4 1983009808
    %v189 = vunpack.c.0.s8 %v188
    %v190 = vlaneseq
    %v191 = vshrl.u32 %v190, 7
    %v192 = vsub.s32 %v189, %v191
    %v193 = vrot.slane %v183, %v192
    %v195 = vunpack.c.l.s4 1983009808
    %v196 = vunpack.c.0.s8 %v195
    %v197 = vlaneseq
    %v198 = vshrl.u32 %v197, 7
    %v199 = vsub.s32 %v196, %v198
    %v200 = vrot.slane %v184, %v199
    %v202 = vunpack.c.l.s4 1983009808
    %v203 = vunpack.c.0.s8 %v202
    %v204 = vlaneseq
    %v205 = vshrl.u32 %v204, 7
    %v206 = vsub.s32 %v203, %v205
    %v207 = vrot.slane %v185, %v206
    %v209 = vunpack.c.l.s4 1983009808
    %v210 = vunpack.c.0.s8 %v209
    %v211 = vlaneseq
    %v212 = vshrl.u32 %v211, 7
    %v213 = vsub.s32 %v210, %v212
    %v214 = vrot.slane %v186, %v213
    %v215 = vcombine.low %v193, %v207
    %v216 = vcombine.high %v193, %v207
    %v217 = vcombine.low %v200, %v214
    %v218 = vcombine.high %v200, %v214
    %v219 = vcombine.low %v136, %v139
    %v220 = vcombine.high %v136, %v139
    %v221 = vcombine.low %v142, %v145
    %v222 = vcombine.high %v142, %v145
    %v224 = vunpack.c.l.s4 1983009808
    %v225 = vunpack.c.0.s8 %v224
    %v226 = vlaneseq
    %v227 = vshrl.u32 %v226, 7
    %v228 = vsub.s32 %v225, %v227
    %v229 = vrot.slane %v219, %v228
    %v231 = vunpack.c.l.s4 1983009808
    %v232 = vunpack.c.0.s8 %v231
    %v233 = vlaneseq
    %v234 = vshrl.u32 %v233, 7
    %v235 = vsub.s32 %v232, %v234
    %v236 = vrot.slane %v220, %v235
    %v238 = vunpack.c.l.s4 1983009808
    %v239 = vunpack.c.0.s8 %v238
    %v240 = vlaneseq
    %v241 = vshrl.u32 %v240, 7
    %v242 = vsub.s32 %v239, %v241
    %v243 = vrot.slane %v221, %v242
    %v245 = vunpack.c.l.s4 1983009808
    %v246 = vunpack.c.0.s8 %v245
    %v247 = vlaneseq
    %v248 = vshrl.u32 %v247, 7
    %v249 = vsub.s32 %v246, %v248
    %v250 = vrot.slane %v222, %v249
    %v251 = vcombine.low %v229, %v243
    %v252 = vcombine.high %v229, %v243
    %v253 = vcombine.low %v236, %v250
    %v254 = vcombine.high %v236, %v250
    %v255 = vcombine.low %v137, %v140
    %v256 = vcombine.low %v143, %v146
    %v258 = vunpack.c.l.s4 1983009808
    %v259 = vunpack.c.0.s8 %v258
    %v260 = vlaneseq
    %v261 = vshrl.u32 %v260, 7
    %v262 = vsub.s32 %v259, %v261
    %v263 = vrot.slane %v255, %v262
    %v265 = vunpack.c.l.s4 1983009808
    %v266 = vunpack.c.0.s8 %v265
    %v267 = vlaneseq
    %v268 = vshrl.u32 %v267, 7
    %v269 = vsub.s32 %v266, %v268
    %v270 = vrot.slane %v256, %v269
    %v271 = vcombine.low %v263, %v270
    %v272 = vcombine.high %v263, %v270
    %v273 = vcombine.low %v147, %v150
    %v274 = vcombine.high %v147, %v150
    %v275 = vcombine.low %v153, %v156
    %v276 = vcombine.high %v153, %v156
    %v278 = vunpack.c.l.s4 1983009808
    %v279 = vunpack.c.0.s8 %v278
    %v280 = vlaneseq
    %v281 = vshrl.u32 %v280, 7
    %v282 = vsub.s32 %v279, %v281
    %v283 = vrot.slane %v273, %v282
    %v285 = vunpack.c.l.s4 1983009808
    %v286 = vunpack.c.0.s8 %v285
    %v287 = vlaneseq
    %v288 = vshrl.u32 %v287, 7
    %v289 = vsub.s32 %v286, %v288
    %v290 = vrot.slane %v274, %v289
    %v292 = vunpack.c.l.s4 1983009808
    %v293 = vunpack.c.0.s8 %v292
    %v294 = vlaneseq
    %v295 = vshrl.u32 %v294, 7
    %v296 = vsub.s32 %v293, %v295
    %v297 = vrot.slane %v275, %v296
    %v299 = vunpack.c.l.s4 1983009808
    %v300 = vunpack.c.0.s8 %v299
    %v301 = vlaneseq
    %v302 = vshrl.u32 %v301, 7
    %v303 = vsub.s32 %v300, %v302
    %v304 = vrot.slane %v276, %v303
    %v305 = vcombine.low %v283, %v297
    %v306 = vcombine.high %v283, %v297
    %v307 = vcombine.low %v290, %v304
    %v308 = vcombine.high %v290, %v304
    %v309 = vcombine.low %v148, %v151
    %v310 = vcombine.high %v148, %v151
    %v311 = vcombine.low %v154, %v157
    %v312 = vcombine.high %v154, %v157
    %v314 = vunpack.c.l.s4 1983009808
    %v315 = vunpack.c.0.s8 %v314
    %v316 = vlaneseq
    %v317 = vshrl.u32 %v316, 7
    %v318 = vsub.s32 %v315, %v317
    %v319 = vrot.slane %v309, %v318
    %v321 = vunpack.c.l.s4 1983009808
    %v322 = vunpack.c.0.s8 %v321
    %v323 = vlaneseq
    %v324 = vshrl.u32 %v323, 7
    %v325 = vsub.s32 %v322, %v324
    %v326 = vrot.slane %v310, %v325
    %v328 = vunpack.c.l.s4 1983009808
    %v329 = vunpack.c.0.s8 %v328
    %v330 = vlaneseq
    %v331 = vshrl.u32 %v330, 7
    %v332 = vsub.s32 %v329, %v331
    %v333 = vrot.slane %v311, %v332
    %v335 = vunpack.c.l.s4 1983009808
    %v336 = vunpack.c.0.s8 %v335
    %v337 = vlaneseq
    %v338 = vshrl.u32 %v337, 7
    %v339 = vsub.s32 %v336, %v338
    %v340 = vrot.slane %v312, %v339
    %v341 = vcombine.low %v319, %v333
    %v342 = vcombine.high %v319, %v333
    %v343 = vcombine.low %v326, %v340
    %v344 = vcombine.high %v326, %v340
    %v345 = vcombine.low %v149, %v152
    %v346 = vcombine.low %v155, %v158
    %v348 = vunpack.c.l.s4 1983009808
    %v349 = vunpack.c.0.s8 %v348
    %v350 = vlaneseq
    %v351 = vshrl.u32 %v350, 7
    %v352 = vsub.s32 %v349, %v351
    %v353 = vrot.slane %v345, %v352
    %v355 = vunpack.c.l.s4 1983009808
    %v356 = vunpack.c.0.s8 %v355
    %v357 = vlaneseq
    %v358 = vshrl.u32 %v357, 7
    %v359 = vsub.s32 %v356, %v358
    %v360 = vrot.slane %v346, %v359
    %v361 = vcombine.low %v353, %v360
    %v362 = vcombine.high %v353, %v360
    %v383 = vpack.c.bf16 %v305, %v215
    %v384 = vpack.c.bf16 %v306, %v216
    %v385 = vpack.c.bf16 %v307, %v217
    %v386 = vpack.c.bf16 %v308, %v218
    %v387 = vpack.c.bf16 %v341, %v251
    %v388 = vpack.c.bf16 %v342, %v252
    %v389 = vpack.c.bf16 %v343, %v253
    %v390 = vpack.c.bf16 %v344, %v254
    %v391 = vpack.c.bf16 %v361, %v271
    %v392 = vpack.c.bf16 %v362, %v272
    %v393 = vld [vmem:[#allocation5] sm:$0xff]
    %v394 = vld [vmem:[#allocation5 + $0x8] sm:$0xff]
    %v395 = vld [vmem:[#allocation5 + $0x10] sm:$0xff]
    %v396 = vld [vmem:[#allocation5 + $0x18] sm:$0xff]
    %v397 = vld [vmem:[#allocation5 + $0x20] sm:$0xff]
    %v398 = vld [vmem:[#allocation5 + $0x28] sm:$0xff]
    %v399 = vld [vmem:[#allocation5 + $0x30] sm:$0xff]
    %v400 = vld [vmem:[#allocation5 + $0x38] sm:$0xff]
    %v401 = vld [vmem:[#allocation5 + $0x40] sm:$0xff]
    %v402 = vld [vmem:[#allocation5 + $0x48] sm:$0xff]
    %v403 = vld [vmem:[#allocation5 + $0x50] sm:$0xff]
    %v404 = vld [vmem:[#allocation5 + $0x58] sm:$0xff]
    %v405 = vld [vmem:[#allocation5 + $0x60] sm:$0xff]
    %v406 = vld [vmem:[#allocation5 + $0x68] sm:$0xff]
    %v407 = vld [vmem:[#allocation5 + $0x70] sm:$0xff]
    %v408 = vld [vmem:[#allocation5 + $0x78] sm:$0xff]
    %v409 = vld [vmem:[#allocation5 + $0x80] sm:$0xff]
    %v410 = vld [vmem:[#allocation5 + $0x88] sm:$0xff]
    %v411 = vld [vmem:[#allocation5 + $0x90] sm:$0xff]
    %v412 = vld [vmem:[#allocation5 + $0x98] sm:$0xff]
    %v413 = vld [vmem:[#allocation5 + $0xa0] sm:$0xff]
    %v414 = vld [vmem:[#allocation5 + $0xa8] sm:$0xff]
    %v415 = vld [vmem:[#allocation5 + $0xb0] sm:$0xff]
    %v416 = vld [vmem:[#allocation5 + $0xb8] sm:$0xff]
    %v417 = vld [vmem:[#allocation5 + $0xc0] sm:$0xff]
    %v418 = vld [vmem:[#allocation5 + $0xc8] sm:$0xff]
    %v419 = vld [vmem:[#allocation5 + $0xd0] sm:$0xff]
    %v420 = vld [vmem:[#allocation5 + $0xd8] sm:$0xff]
    %v421 = vld [vmem:[#allocation5 + $0xe0] sm:$0xff]
    %v422 = vld [vmem:[#allocation5 + $0xe8] sm:$0xff]
    %v423 = vld [vmem:[#allocation5 + $0xf0] sm:$0xff]
    %v424 = vld [vmem:[#allocation5 + $0xf8] sm:$0xff]
    %v425 = vld [vmem:[#allocation5 + $0x100] sm:$0xff]
    %v426 = vld [vmem:[#allocation5 + $0x108] sm:$0xff]
    %v427 = vld [vmem:[#allocation5 + $0x110] sm:$0xff]
    %v428 = vld [vmem:[#allocation5 + $0x118] sm:$0xff]
    %v429 = vld [vmem:[#allocation5 + $0x120] sm:$0xff]
    %v430 = vld [vmem:[#allocation5 + $0x128] sm:$0xff]
    %v431 = vld [vmem:[#allocation5 + $0x130] sm:$0xff]
    %v432 = vld [vmem:[#allocation5 + $0x138] sm:$0xff]
    %v433 = vld [vmem:[#allocation5 + $0x140] sm:$0xff]
    %v434 = vld [vmem:[#allocation5 + $0x148] sm:$0xff]
    %v435 = vld [vmem:[#allocation5 + $0x150] sm:$0xff]
    %v436 = vld [vmem:[#allocation5 + $0x158] sm:$0xff]
    %v437 = vld [vmem:[#allocation5 + $0x160] sm:$0xff]
    %v438 = vld [vmem:[#allocation5 + $0x168] sm:$0xff]
    %v439 = vld [vmem:[#allocation5 + $0x170] sm:$0xff]
    %v440 = vld [vmem:[#allocation5 + $0x178] sm:$0xff]
    %v441 = vld [vmem:[#allocation5 + $0x180] sm:$0xff]
    %v442 = vld [vmem:[#allocation5 + $0x188] sm:$0xff]
    %v443 = vld [vmem:[#allocation5 + $0x190] sm:$0xff]
    %v444 = vld [vmem:[#allocation5 + $0x198] sm:$0xff]
    %v445 = vld [vmem:[#allocation5 + $0x1a0] sm:$0xff]
    %v446 = vld [vmem:[#allocation5 + $0x1a8] sm:$0xff]
    %v447 = vld [vmem:[#allocation5 + $0x1b0] sm:$0xff]
    %v448 = vld [vmem:[#allocation5 + $0x1b8] sm:$0xff]
    %v449 = vld [vmem:[#allocation5 + $0x1c0] sm:$0xff]
    %v450 = vld [vmem:[#allocation5 + $0x1c8] sm:$0xff]
    %v451 = vld [vmem:[#allocation5 + $0x1d0] sm:$0xff]
    %v452 = vld [vmem:[#allocation5 + $0x1d8] sm:$0xff]
    %v453 = vld [vmem:[#allocation5 + $0x1e0] sm:$0xff]
    %v454 = vld [vmem:[#allocation5 + $0x1e8] sm:$0xff]
    %v455 = vld [vmem:[#allocation5 + $0x1f0] sm:$0xff]
    %v456 = vld [vmem:[#allocation5 + $0x1f8] sm:$0xff]
    %v457 = vld [vmem:[#allocation5 + $0x200] sm:$0xff]
    %v458 = vld [vmem:[#allocation5 + $0x208] sm:$0xff]
    %v459 = vld [vmem:[#allocation5 + $0x210] sm:$0xff]
    %v460 = vld [vmem:[#allocation5 + $0x218] sm:$0xff]
    %v461 = vld [vmem:[#allocation5 + $0x220] sm:$0xff]
    %v462 = vld [vmem:[#allocation5 + $0x228] sm:$0xff]
    %v463 = vld [vmem:[#allocation5 + $0x230] sm:$0xff]
    %v464 = vld [vmem:[#allocation5 + $0x238] sm:$0xff]
    %v465 = vld [vmem:[#allocation5 + $0x240] sm:$0xff]
    %v466 = vld [vmem:[#allocation5 + $0x248] sm:$0xff]
    %v467 = vld [vmem:[#allocation5 + $0x250] sm:$0xff]
    %v468 = vld [vmem:[#allocation5 + $0x258] sm:$0xff]
    %v469 = vld [vmem:[#allocation5 + $0x260] sm:$0xff]
    %v470 = vld [vmem:[#allocation5 + $0x268] sm:$0xff]
    %v471 = vld [vmem:[#allocation5 + $0x270] sm:$0xff]
    %v472 = vld [vmem:[#allocation5 + $0x278] sm:$0xff]
    %v473 = vld [vmem:[#allocation5 + $0x280] sm:$0xff]
    %v474 = vld [vmem:[#allocation5 + $0x288] sm:$0xff]
    %v475 = vld [vmem:[#allocation5 + $0x290] sm:$0xff]
    %v476 = vld [vmem:[#allocation5 + $0x298] sm:$0xff]
    %v477 = vld [vmem:[#allocation5 + $0x2a0] sm:$0xff]
    %v478 = vld [vmem:[#allocation5 + $0x2a8] sm:$0xff]
    %v479 = vld [vmem:[#allocation5 + $0x2b0] sm:$0xff]
    %v480 = vld [vmem:[#allocation5 + $0x2b8] sm:$0xff]
    %v481 = vld [vmem:[#allocation5 + $0x2c0] sm:$0xff]
    %v482 = vld [vmem:[#allocation5 + $0x2c8] sm:$0xff]
    %v483 = vld [vmem:[#allocation5 + $0x2d0] sm:$0xff]
    %v484 = vld [vmem:[#allocation5 + $0x2d8] sm:$0xff]
    %v485 = vld [vmem:[#allocation5 + $0x2e0] sm:$0xff]
    %v486 = vld [vmem:[#allocation5 + $0x2e8] sm:$0xff]
    %v487 = vld [vmem:[#allocation5 + $0x2f0] sm:$0xff]
    %v488 = vld [vmem:[#allocation5 + $0x2f8] sm:$0xff]
    %v489 = vld [vmem:[#allocation5 + $0x300] sm:$0xff]
    %v490 = vld [vmem:[#allocation5 + $0x308] sm:$0xff]
    %v491 = vld [vmem:[#allocation5 + $0x310] sm:$0xff]
    %v492 = vld [vmem:[#allocation5 + $0x318] sm:$0xff]
    %v493 = vld [vmem:[#allocation5 + $0x320] sm:$0xff]
    %v494 = vld [vmem:[#allocation5 + $0x328] sm:$0xff]
    %v495 = vld [vmem:[#allocation5 + $0x330] sm:$0xff]
    %v496 = vld [vmem:[#allocation5 + $0x338] sm:$0xff]
    %v497 = vld [vmem:[#allocation5 + $0x340] sm:$0xff]
    %v498 = vld [vmem:[#allocation5 + $0x348] sm:$0xff]
    %v499 = vld [vmem:[#allocation5 + $0x350] sm:$0xff]
    %v500 = vld [vmem:[#allocation5 + $0x358] sm:$0xff]
    %v501 = vld [vmem:[#allocation5 + $0x360] sm:$0xff]
    %v502 = vld [vmem:[#allocation5 + $0x368] sm:$0xff]
    %v503 = vld [vmem:[#allocation5 + $0x370] sm:$0xff]
    %v504 = vld [vmem:[#allocation5 + $0x378] sm:$0xff]
    %v505 = vld [vmem:[#allocation5 + $0x380] sm:$0xff]
    %v506 = vld [vmem:[#allocation5 + $0x388] sm:$0xff]
    %v507 = vld [vmem:[#allocation5 + $0x390] sm:$0xff]
    %v508 = vld [vmem:[#allocation5 + $0x398] sm:$0xff]
    %v509 = vld [vmem:[#allocation5 + $0x3a0] sm:$0xff]
    %v510 = vld [vmem:[#allocation5 + $0x3a8] sm:$0xff]
    %v511 = vld [vmem:[#allocation5 + $0x3b0] sm:$0xff]
    %v512 = vld [vmem:[#allocation5 + $0x3b8] sm:$0xff]
    %v513 = vld [vmem:[#allocation5 + $0x3c0] sm:$0xff]
    %v514 = vld [vmem:[#allocation5 + $0x3c8] sm:$0xff]
    %v515 = vld [vmem:[#allocation5 + $0x3d0] sm:$0xff]
    %v516 = vld [vmem:[#allocation5 + $0x3d8] sm:$0xff]
    %v517 = vld [vmem:[#allocation5 + $0x3e0] sm:$0xff]
    %v518 = vld [vmem:[#allocation5 + $0x3e8] sm:$0xff]
    %v519 = vld [vmem:[#allocation5 + $0x3f0] sm:$0xff]
    %v520 = vld [vmem:[#allocation5 + $0x3f8] sm:$0xff]
    %v521 = vld [vmem:[#allocation5 + $0x400] sm:$0xff]
    %v522 = vld [vmem:[#allocation5 + $0x408] sm:$0xff]
    %v523 = vld [vmem:[#allocation5 + $0x410] sm:$0xff]
    %v524 = vld [vmem:[#allocation5 + $0x418] sm:$0xff]
    %v525 = vld [vmem:[#allocation5 + $0x420] sm:$0xff]
    %v526 = vld [vmem:[#allocation5 + $0x428] sm:$0xff]
    %v527 = vld [vmem:[#allocation5 + $0x430] sm:$0xff]
    %v528 = vld [vmem:[#allocation5 + $0x438] sm:$0xff]
    %v529 = vld [vmem:[#allocation5 + $0x440] sm:$0xff]
    %v530 = vld [vmem:[#allocation5 + $0x448] sm:$0xff]
    %v531 = vld [vmem:[#allocation5 + $0x450] sm:$0xff]
    %v532 = vld [vmem:[#allocation5 + $0x458] sm:$0xff]
    %v533 = vld [vmem:[#allocation5 + $0x460] sm:$0xff]
    %v534 = vld [vmem:[#allocation5 + $0x468] sm:$0xff]
    %v535 = vld [vmem:[#allocation5 + $0x470] sm:$0xff]
    %v536 = vld [vmem:[#allocation5 + $0x478] sm:$0xff]
    %v537 = vld [vmem:[#allocation5 + $0x480] sm:$0xff]
    %v538 = vld [vmem:[#allocation5 + $0x488] sm:$0xff]
    %v539 = vld [vmem:[#allocation5 + $0x490] sm:$0xff]
    %v540 = vld [vmem:[#allocation5 + $0x498] sm:$0xff]
    %v541 = vld [vmem:[#allocation5 + $0x4a0] sm:$0xff]
    %v542 = vld [vmem:[#allocation5 + $0x4a8] sm:$0xff]
    %v543 = vld [vmem:[#allocation5 + $0x4b0] sm:$0xff]
    %v544 = vld [vmem:[#allocation5 + $0x4b8] sm:$0xff]
    %v545 = vld [vmem:[#allocation5 + $0x4c0] sm:$0xff]
    %v546 = vld [vmem:[#allocation5 + $0x4c8] sm:$0xff]
    %v547 = vld [vmem:[#allocation5 + $0x4d0] sm:$0xff]
    %v548 = vld [vmem:[#allocation5 + $0x4d8] sm:$0xff]
    %v549 = vld [vmem:[#allocation5 + $0x4e0] sm:$0xff]
    %v550 = vld [vmem:[#allocation5 + $0x4e8] sm:$0xff]
    %v551 = vld [vmem:[#allocation5 + $0x4f0] sm:$0xff]
    %v552 = vld [vmem:[#allocation5 + $0x4f8] sm:$0xff]
    %v553 = vld [vmem:[#allocation5 + $0x500] sm:$0xff]
    %v554 = vld [vmem:[#allocation5 + $0x508] sm:$0xff]
    %v555 = vld [vmem:[#allocation5 + $0x510] sm:$0xff]
    %v556 = vld [vmem:[#allocation5 + $0x518] sm:$0xff]
    %v557 = vld [vmem:[#allocation5 + $0x520] sm:$0xff]
    %v558 = vld [vmem:[#allocation5 + $0x528] sm:$0xff]
    %v559 = vld [vmem:[#allocation5 + $0x530] sm:$0xff]
    %v560 = vld [vmem:[#allocation5 + $0x538] sm:$0xff]
    %v561 = vld [vmem:[#allocation5 + $0x540] sm:$0xff]
    %v562 = vld [vmem:[#allocation5 + $0x548] sm:$0xff]
    %v563 = vld [vmem:[#allocation5 + $0x550] sm:$0xff]
    %v564 = vld [vmem:[#allocation5 + $0x558] sm:$0xff]
    %v565 = vld [vmem:[#allocation5 + $0x560] sm:$0xff]
    %v566 = vld [vmem:[#allocation5 + $0x568] sm:$0xff]
    %v567 = vld [vmem:[#allocation5 + $0x570] sm:$0xff]
    %v568 = vld [vmem:[#allocation5 + $0x578] sm:$0xff]
    %v569 = vld [vmem:[#allocation5 + $0x580] sm:$0xff]
    %v570 = vld [vmem:[#allocation5 + $0x588] sm:$0xff]
    %v571 = vld [vmem:[#allocation5 + $0x590] sm:$0xff]
    %v572 = vld [vmem:[#allocation5 + $0x598] sm:$0xff]
    %v573 = vld [vmem:[#allocation5 + $0x5a0] sm:$0xff]
    %v574 = vld [vmem:[#allocation5 + $0x5a8] sm:$0xff]
    %v575 = vld [vmem:[#allocation5 + $0x5b0] sm:$0xff]
    %v576 = vld [vmem:[#allocation5 + $0x5b8] sm:$0xff]
    %v577 = vld [vmem:[#allocation5 + $0x5c0] sm:$0xff]
    %v578 = vld [vmem:[#allocation5 + $0x5c8] sm:$0xff]
    %v579 = vld [vmem:[#allocation5 + $0x5d0] sm:$0xff]
    %v580 = vld [vmem:[#allocation5 + $0x5d8] sm:$0xff]
    %v581 = vld [vmem:[#allocation5 + $0x5e0] sm:$0xff]
    %v582 = vld [vmem:[#allocation5 + $0x5e8] sm:$0xff]
    %v583 = vld [vmem:[#allocation5 + $0x5f0] sm:$0xff]
    %v584 = vld [vmem:[#allocation5 + $0x5f8] sm:$0xff]
    %v585 = vld [vmem:[#allocation5 + $0x600] sm:$0xff]
    %v586 = vld [vmem:[#allocation5 + $0x608] sm:$0xff]
    %v587 = vld [vmem:[#allocation5 + $0x610] sm:$0xff]
    %v588 = vld [vmem:[#allocation5 + $0x618] sm:$0xff]
    %v589 = vld [vmem:[#allocation5 + $0x620] sm:$0xff]
    %v590 = vld [vmem:[#allocation5 + $0x628] sm:$0xff]
    %v591 = vld [vmem:[#allocation5 + $0x630] sm:$0xff]
    %v592 = vld [vmem:[#allocation5 + $0x638] sm:$0xff]
    %v593 = vld [vmem:[#allocation5 + $0x640] sm:$0xff]
    %v594 = vld [vmem:[#allocation5 + $0x648] sm:$0xff]
    %v595 = vld [vmem:[#allocation5 + $0x650] sm:$0xff]
    %v596 = vld [vmem:[#allocation5 + $0x658] sm:$0xff]
    %v597 = vld [vmem:[#allocation5 + $0x660] sm:$0xff]
    %v598 = vld [vmem:[#allocation5 + $0x668] sm:$0xff]
    %v599 = vld [vmem:[#allocation5 + $0x670] sm:$0xff]
    %v600 = vld [vmem:[#allocation5 + $0x678] sm:$0xff]
    %v601 = vld [vmem:[#allocation5 + $0x680] sm:$0xff]
    %v602 = vld [vmem:[#allocation5 + $0x688] sm:$0xff]
    %v603 = vld [vmem:[#allocation5 + $0x690] sm:$0xff]
    %v604 = vld [vmem:[#allocation5 + $0x698] sm:$0xff]
    %v605 = vld [vmem:[#allocation5 + $0x6a0] sm:$0xff]
    %v606 = vld [vmem:[#allocation5 + $0x6a8] sm:$0xff]
    %v607 = vld [vmem:[#allocation5 + $0x6b0] sm:$0xff]
    %v608 = vld [vmem:[#allocation5 + $0x6b8] sm:$0xff]
    %v609 = vld [vmem:[#allocation5 + $0x6c0] sm:$0xff]
    %v610 = vld [vmem:[#allocation5 + $0x6c8] sm:$0xff]
    %v611 = vld [vmem:[#allocation5 + $0x6d0] sm:$0xff]
    %v612 = vld [vmem:[#allocation5 + $0x6d8] sm:$0xff]
    %v613 = vld [vmem:[#allocation5 + $0x6e0] sm:$0xff]
    %v614 = vld [vmem:[#allocation5 + $0x6e8] sm:$0xff]
    %v615 = vld [vmem:[#allocation5 + $0x6f0] sm:$0xff]
    %v616 = vld [vmem:[#allocation5 + $0x6f8] sm:$0xff]
    %v617 = vld [vmem:[#allocation5 + $0x700] sm:$0xff]
    %v618 = vld [vmem:[#allocation5 + $0x708] sm:$0xff]
    %v619 = vld [vmem:[#allocation5 + $0x710] sm:$0xff]
    %v620 = vld [vmem:[#allocation5 + $0x718] sm:$0xff]
    %v621 = vld [vmem:[#allocation5 + $0x720] sm:$0xff]
    %v622 = vld [vmem:[#allocation5 + $0x728] sm:$0xff]
    %v623 = vld [vmem:[#allocation5 + $0x730] sm:$0xff]
    %v624 = vld [vmem:[#allocation5 + $0x738] sm:$0xff]
    %v625 = vld [vmem:[#allocation5 + $0x740] sm:$0xff]
    %v626 = vld [vmem:[#allocation5 + $0x748] sm:$0xff]
    %v627 = vld [vmem:[#allocation5 + $0x750] sm:$0xff]
    %v628 = vld [vmem:[#allocation5 + $0x758] sm:$0xff]
    %v629 = vld [vmem:[#allocation5 + $0x760] sm:$0xff]
    %v630 = vld [vmem:[#allocation5 + $0x768] sm:$0xff]
    %v631 = vld [vmem:[#allocation5 + $0x770] sm:$0xff]
    %v632 = vld [vmem:[#allocation5 + $0x778] sm:$0xff]
    %v633 = vld [vmem:[#allocation5 + $0x780] sm:$0xff]
    %v634 = vld [vmem:[#allocation5 + $0x788] sm:$0xff]
    %v635 = vld [vmem:[#allocation5 + $0x790] sm:$0xff]
    %v636 = vld [vmem:[#allocation5 + $0x798] sm:$0xff]
    %v637 = vld [vmem:[#allocation5 + $0x7a0] sm:$0xff]
    %v638 = vld [vmem:[#allocation5 + $0x7a8] sm:$0xff]
    %v639 = vld [vmem:[#allocation5 + $0x7b0] sm:$0xff]
    %v640 = vld [vmem:[#allocation5 + $0x7b8] sm:$0xff]
    %v641 = vld [vmem:[#allocation5 + $0x7c0] sm:$0xff]
    %v642 = vld [vmem:[#allocation5 + $0x7c8] sm:$0xff]
    %v643 = vld [vmem:[#allocation5 + $0x7d0] sm:$0xff]
    %v644 = vld [vmem:[#allocation5 + $0x7d8] sm:$0xff]
    %v645 = vld [vmem:[#allocation5 + $0x7e0] sm:$0xff]
    %v646 = vld [vmem:[#allocation5 + $0x7e8] sm:$0xff]
    %v647 = vld [vmem:[#allocation5 + $0x7f0] sm:$0xff]
    %v648 = vld [vmem:[#allocation5 + $0x7f8] sm:$0xff]
    %v649 = vld [vmem:[#allocation5 + $0x800] sm:$0xff]
    %v650 = vld [vmem:[#allocation5 + $0x808] sm:$0xff]
    %v651 = vld [vmem:[#allocation5 + $0x810] sm:$0xff]
    %v652 = vld [vmem:[#allocation5 + $0x818] sm:$0xff]
    %v653 = vld [vmem:[#allocation5 + $0x820] sm:$0xff]
    %v654 = vld [vmem:[#allocation5 + $0x828] sm:$0xff]
    %v655 = vld [vmem:[#allocation5 + $0x830] sm:$0xff]
    %v656 = vld [vmem:[#allocation5 + $0x838] sm:$0xff]
    %v657 = vld [vmem:[#allocation5 + $0x840] sm:$0xff]
    %v658 = vld [vmem:[#allocation5 + $0x848] sm:$0xff]
    %v659 = vld [vmem:[#allocation5 + $0x850] sm:$0xff]
    %v660 = vld [vmem:[#allocation5 + $0x858] sm:$0xff]
    %v661 = vld [vmem:[#allocation5 + $0x860] sm:$0xff]
    %v662 = vld [vmem:[#allocation5 + $0x868] sm:$0xff]
    %v663 = vld [vmem:[#allocation5 + $0x870] sm:$0xff]
    %v664 = vld [vmem:[#allocation5 + $0x878] sm:$0xff]
    %v665 = vld [vmem:[#allocation5 + $0x880] sm:$0xff]
    %v666 = vld [vmem:[#allocation5 + $0x888] sm:$0xff]
    %v667 = vld [vmem:[#allocation5 + $0x890] sm:$0xff]
    %v668 = vld [vmem:[#allocation5 + $0x898] sm:$0xff]
    %v669 = vld [vmem:[#allocation5 + $0x8a0] sm:$0xff]
    %v670 = vld [vmem:[#allocation5 + $0x8a8] sm:$0xff]
    %v671 = vld [vmem:[#allocation5 + $0x8b0] sm:$0xff]
    %v672 = vld [vmem:[#allocation5 + $0x8b8] sm:$0xff]
    %v673 = vld [vmem:[#allocation5 + $0x8c0] sm:$0xff]
    %v674 = vld [vmem:[#allocation5 + $0x8c8] sm:$0xff]
    %v675 = vld [vmem:[#allocation5 + $0x8d0] sm:$0xff]
    %v676 = vld [vmem:[#allocation5 + $0x8d8] sm:$0xff]
    %v677 = vld [vmem:[#allocation5 + $0x8e0] sm:$0xff]
    %v678 = vld [vmem:[#allocation5 + $0x8e8] sm:$0xff]
    %v679 = vld [vmem:[#allocation5 + $0x8f0] sm:$0xff]
    %v680 = vld [vmem:[#allocation5 + $0x8f8] sm:$0xff]
    %v681 = vld [vmem:[#allocation5 + $0x900] sm:$0xff]
    %v682 = vld [vmem:[#allocation5 + $0x908] sm:$0xff]
    %v683 = vld [vmem:[#allocation5 + $0x910] sm:$0xff]
    %v684 = vld [vmem:[#allocation5 + $0x918] sm:$0xff]
    %v685 = vld [vmem:[#allocation5 + $0x920] sm:$0xff]
    %v686 = vld [vmem:[#allocation5 + $0x928] sm:$0xff]
    %v687 = vld [vmem:[#allocation5 + $0x930] sm:$0xff]
    %v688 = vld [vmem:[#allocation5 + $0x938] sm:$0xff]
    %v689 = vld [vmem:[#allocation5 + $0x940] sm:$0xff]
    %v690 = vld [vmem:[#allocation5 + $0x948] sm:$0xff]
    %v691 = vld [vmem:[#allocation5 + $0x950] sm:$0xff]
    %v692 = vld [vmem:[#allocation5 + $0x958] sm:$0xff]
    %v693 = vld [vmem:[#allocation5 + $0x960] sm:$0xff]
    %v694 = vld [vmem:[#allocation5 + $0x968] sm:$0xff]
    %v695 = vld [vmem:[#allocation5 + $0x970] sm:$0xff]
    %v696 = vld [vmem:[#allocation5 + $0x978] sm:$0xff]
    %v697 = vld [vmem:[#allocation5 + $0x980] sm:$0xff]
    %v698 = vld [vmem:[#allocation5 + $0x988] sm:$0xff]
    %v699 = vld [vmem:[#allocation5 + $0x990] sm:$0xff]
    %v700 = vld [vmem:[#allocation5 + $0x998] sm:$0xff]
    %v701 = vld [vmem:[#allocation5 + $0x9a0] sm:$0xff]
    %v702 = vld [vmem:[#allocation5 + $0x9a8] sm:$0xff]
    %v703 = vld [vmem:[#allocation5 + $0x9b0] sm:$0xff]
    %v704 = vld [vmem:[#allocation5 + $0x9b8] sm:$0xff]
    %v705 = vld [vmem:[#allocation5 + $0x9c0] sm:$0xff]
    %v706 = vld [vmem:[#allocation5 + $0x9c8] sm:$0xff]
    %v707 = vld [vmem:[#allocation5 + $0x9d0] sm:$0xff]
    %v708 = vld [vmem:[#allocation5 + $0x9d8] sm:$0xff]
    %v709 = vld [vmem:[#allocation5 + $0x9e0] sm:$0xff]
    %v710 = vld [vmem:[#allocation5 + $0x9e8] sm:$0xff]
    %v711 = vld [vmem:[#allocation5 + $0x9f0] sm:$0xff]
    %v712 = vld [vmem:[#allocation5 + $0x9f8] sm:$0xff]
    %v713 = vld [vmem:[#allocation7] sm:$0xf]
    %v715 = vlaneseq
    %v716 = vshrl.u32 %v715, 7
    %v717 = vsub.s32 0, %v716
    %v718 = vrot.slane %v713, %v717
    %v719 = vlaneseq
    %v720 = vshrl.u32 %v719, 7
    %v721 = vsub.s32 1, %v720
    %v722 = vrot.slane %v713, %v721
    %v723 = vlaneseq
    %v724 = vshrl.u32 %v723, 7
    %v725 = vsub.s32 2, %v724
    %v726 = vrot.slane %v713, %v725
    %v727 = vlaneseq
    %v728 = vshrl.u32 %v727, 7
    %v729 = vsub.s32 3, %v728
    %v730 = vrot.slane %v713, %v729
    %v1055 = vunpack.c.l.b16 %v393
    %v1056 = vunpack.c.h.b16 %v393
    %v1057 = vunpack.c.l.b16 %v394
    %v1058 = vunpack.c.h.b16 %v394
    %v1059 = vunpack.c.l.b16 %v395
    %v1060 = vunpack.c.h.b16 %v395
    %v1061 = vunpack.c.l.b16 %v396
    %v1062 = vunpack.c.h.b16 %v396
    %v1063 = vunpack.c.l.b16 %v397
    %v1064 = vunpack.c.h.b16 %v397
    %v1065 = vunpack.c.l.b16 %v398
    %v1066 = vunpack.c.h.b16 %v398
    %v1067 = vunpack.c.l.b16 %v399
    %v1068 = vunpack.c.h.b16 %v399
    %v1069 = vunpack.c.l.b16 %v400
    %v1070 = vunpack.c.h.b16 %v400
    %v1071 = vunpack.c.l.b16 %v401
    %v1072 = vunpack.c.h.b16 %v401
    %v1073 = vunpack.c.l.b16 %v402
    %v1074 = vunpack.c.h.b16 %v402
    %v1075 = vunpack.c.l.b16 %v403
    %v1076 = vunpack.c.h.b16 %v403
    %v1077 = vunpack.c.l.b16 %v404
    %v1078 = vunpack.c.h.b16 %v404
    %v1079 = vunpack.c.l.b16 %v405
    %v1080 = vunpack.c.h.b16 %v405
    %v1081 = vunpack.c.l.b16 %v406
    %v1082 = vunpack.c.h.b16 %v406
    %v1083 = vunpack.c.l.b16 %v407
    %v1084 = vunpack.c.h.b16 %v407
    %v1085 = vunpack.c.l.b16 %v408
    %v1086 = vunpack.c.h.b16 %v408
    %v1087 = vunpack.c.l.b16 %v409
    %v1088 = vunpack.c.h.b16 %v409
    %v1089 = vunpack.c.l.b16 %v410
    %v1090 = vunpack.c.h.b16 %v410
    %v1091 = vunpack.c.l.b16 %v411
    %v1092 = vunpack.c.h.b16 %v411
    %v1093 = vunpack.c.l.b16 %v412
    %v1094 = vunpack.c.h.b16 %v412
    %v1095 = vunpack.c.l.b16 %v413
    %v1096 = vunpack.c.h.b16 %v413
    %v1097 = vunpack.c.l.b16 %v414
    %v1098 = vunpack.c.h.b16 %v414
    %v1099 = vunpack.c.l.b16 %v415
    %v1100 = vunpack.c.h.b16 %v415
    %v1101 = vunpack.c.l.b16 %v416
    %v1102 = vunpack.c.h.b16 %v416
    %v1103 = vunpack.c.l.b16 %v417
    %v1104 = vunpack.c.h.b16 %v417
    %v1105 = vunpack.c.l.b16 %v418
    %v1106 = vunpack.c.h.b16 %v418
    %v1107 = vunpack.c.l.b16 %v419
    %v1108 = vunpack.c.h.b16 %v419
    %v1109 = vunpack.c.l.b16 %v420
    %v1110 = vunpack.c.h.b16 %v420
    %v1111 = vunpack.c.l.b16 %v421
    %v1112 = vunpack.c.h.b16 %v421
    %v1113 = vunpack.c.l.b16 %v422
    %v1114 = vunpack.c.h.b16 %v422
    %v1115 = vunpack.c.l.b16 %v423
    %v1116 = vunpack.c.h.b16 %v423
    %v1117 = vunpack.c.l.b16 %v424
    %v1118 = vunpack.c.h.b16 %v424
    %v1119 = vunpack.c.l.b16 %v425
    %v1120 = vunpack.c.h.b16 %v425
    %v1121 = vunpack.c.l.b16 %v426
    %v1122 = vunpack.c.h.b16 %v426
    %v1123 = vunpack.c.l.b16 %v427
    %v1124 = vunpack.c.h.b16 %v427
    %v1125 = vunpack.c.l.b16 %v428
    %v1126 = vunpack.c.h.b16 %v428
    %v1127 = vunpack.c.l.b16 %v429
    %v1128 = vunpack.c.h.b16 %v429
    %v1129 = vunpack.c.l.b16 %v430
    %v1130 = vunpack.c.h.b16 %v430
    %v1131 = vunpack.c.l.b16 %v431
    %v1132 = vunpack.c.h.b16 %v431
    %v1133 = vunpack.c.l.b16 %v432
    %v1134 = vunpack.c.h.b16 %v432
    %v1135 = vunpack.c.l.b16 %v433
    %v1136 = vunpack.c.h.b16 %v433
    %v1137 = vunpack.c.l.b16 %v434
    %v1138 = vunpack.c.h.b16 %v434
    %v1139 = vunpack.c.l.b16 %v435
    %v1140 = vunpack.c.h.b16 %v435
    %v1141 = vunpack.c.l.b16 %v436
    %v1142 = vunpack.c.h.b16 %v436
    %v1143 = vunpack.c.l.b16 %v437
    %v1144 = vunpack.c.h.b16 %v437
    %v1145 = vunpack.c.l.b16 %v438
    %v1146 = vunpack.c.h.b16 %v438
    %v1147 = vunpack.c.l.b16 %v439
    %v1148 = vunpack.c.h.b16 %v439
    %v1149 = vunpack.c.l.b16 %v440
    %v1150 = vunpack.c.h.b16 %v440
    %v1151 = vunpack.c.l.b16 %v441
    %v1152 = vunpack.c.h.b16 %v441
    %v1153 = vunpack.c.l.b16 %v442
    %v1154 = vunpack.c.h.b16 %v442
    %v1155 = vunpack.c.l.b16 %v443
    %v1156 = vunpack.c.h.b16 %v443
    %v1157 = vunpack.c.l.b16 %v444
    %v1158 = vunpack.c.h.b16 %v444
    %v1159 = vunpack.c.l.b16 %v445
    %v1160 = vunpack.c.h.b16 %v445
    %v1161 = vunpack.c.l.b16 %v446
    %v1162 = vunpack.c.h.b16 %v446
    %v1163 = vunpack.c.l.b16 %v447
    %v1164 = vunpack.c.h.b16 %v447
    %v1165 = vunpack.c.l.b16 %v448
    %v1166 = vunpack.c.h.b16 %v448
    %v1167 = vunpack.c.l.b16 %v449
    %v1168 = vunpack.c.h.b16 %v449
    %v1169 = vunpack.c.l.b16 %v450
    %v1170 = vunpack.c.h.b16 %v450
    %v1171 = vunpack.c.l.b16 %v451
    %v1172 = vunpack.c.h.b16 %v451
    %v1173 = vunpack.c.l.b16 %v452
    %v1174 = vunpack.c.h.b16 %v452
    %v1175 = vunpack.c.l.b16 %v453
    %v1176 = vunpack.c.h.b16 %v453
    %v1177 = vunpack.c.l.b16 %v454
    %v1178 = vunpack.c.h.b16 %v454
    %v1179 = vunpack.c.l.b16 %v455
    %v1180 = vunpack.c.h.b16 %v455
    %v1181 = vunpack.c.l.b16 %v456
    %v1182 = vunpack.c.h.b16 %v456
    %v1183 = vunpack.c.l.b16 %v457
    %v1184 = vunpack.c.h.b16 %v457
    %v1185 = vunpack.c.l.b16 %v458
    %v1186 = vunpack.c.h.b16 %v458
    %v1187 = vunpack.c.l.b16 %v459
    %v1188 = vunpack.c.h.b16 %v459
    %v1189 = vunpack.c.l.b16 %v460
    %v1190 = vunpack.c.h.b16 %v460
    %v1191 = vunpack.c.l.b16 %v461
    %v1192 = vunpack.c.h.b16 %v461
    %v1193 = vunpack.c.l.b16 %v462
    %v1194 = vunpack.c.h.b16 %v462
    %v1195 = vunpack.c.l.b16 %v463
    %v1196 = vunpack.c.h.b16 %v463
    %v1197 = vunpack.c.l.b16 %v464
    %v1198 = vunpack.c.h.b16 %v464
    %v1199 = vunpack.c.l.b16 %v465
    %v1200 = vunpack.c.h.b16 %v465
    %v1201 = vunpack.c.l.b16 %v466
    %v1202 = vunpack.c.h.b16 %v466
    %v1203 = vunpack.c.l.b16 %v467
    %v1204 = vunpack.c.h.b16 %v467
    %v1205 = vunpack.c.l.b16 %v468
    %v1206 = vunpack.c.h.b16 %v468
    %v1207 = vunpack.c.l.b16 %v469
    %v1208 = vunpack.c.h.b16 %v469
    %v1209 = vunpack.c.l.b16 %v470
    %v1210 = vunpack.c.h.b16 %v470
    %v1211 = vunpack.c.l.b16 %v471
    %v1212 = vunpack.c.h.b16 %v471
    %v1213 = vunpack.c.l.b16 %v472
    %v1214 = vunpack.c.h.b16 %v472
    %v1215 = vunpack.c.l.b16 %v473
    %v1216 = vunpack.c.h.b16 %v473
    %v1217 = vunpack.c.l.b16 %v474
    %v1218 = vunpack.c.h.b16 %v474
    %v1219 = vunpack.c.l.b16 %v475
    %v1220 = vunpack.c.h.b16 %v475
    %v1221 = vunpack.c.l.b16 %v476
    %v1222 = vunpack.c.h.b16 %v476
    %v1223 = vunpack.c.l.b16 %v477
    %v1224 = vunpack.c.h.b16 %v477
    %v1225 = vunpack.c.l.b16 %v478
    %v1226 = vunpack.c.h.b16 %v478
    %v1227 = vunpack.c.l.b16 %v479
    %v1228 = vunpack.c.h.b16 %v479
    %v1229 = vunpack.c.l.b16 %v480
    %v1230 = vunpack.c.h.b16 %v480
    %v1231 = vunpack.c.l.b16 %v481
    %v1232 = vunpack.c.h.b16 %v481
    %v1233 = vunpack.c.l.b16 %v482
    %v1234 = vunpack.c.h.b16 %v482
    %v1235 = vunpack.c.l.b16 %v483
    %v1236 = vunpack.c.h.b16 %v483
    %v1237 = vunpack.c.l.b16 %v484
    %v1238 = vunpack.c.h.b16 %v484
    %v1239 = vunpack.c.l.b16 %v485
    %v1240 = vunpack.c.h.b16 %v485
    %v1241 = vunpack.c.l.b16 %v486
    %v1242 = vunpack.c.h.b16 %v486
    %v1243 = vunpack.c.l.b16 %v487
    %v1244 = vunpack.c.h.b16 %v487
    %v1245 = vunpack.c.l.b16 %v488
    %v1246 = vunpack.c.h.b16 %v488
    %v1247 = vunpack.c.l.b16 %v489
    %v1248 = vunpack.c.h.b16 %v489
    %v1249 = vunpack.c.l.b16 %v490
    %v1250 = vunpack.c.h.b16 %v490
    %v1251 = vunpack.c.l.b16 %v491
    %v1252 = vunpack.c.h.b16 %v491
    %v1253 = vunpack.c.l.b16 %v492
    %v1254 = vunpack.c.h.b16 %v492
    %v1255 = vunpack.c.l.b16 %v493
    %v1256 = vunpack.c.h.b16 %v493
    %v1257 = vunpack.c.l.b16 %v494
    %v1258 = vunpack.c.h.b16 %v494
    %v1259 = vunpack.c.l.b16 %v495
    %v1260 = vunpack.c.h.b16 %v495
    %v1261 = vunpack.c.l.b16 %v496
    %v1262 = vunpack.c.h.b16 %v496
    %v1263 = vunpack.c.l.b16 %v497
    %v1264 = vunpack.c.h.b16 %v497
    %v1265 = vunpack.c.l.b16 %v498
    %v1266 = vunpack.c.h.b16 %v498
    %v1267 = vunpack.c.l.b16 %v499
    %v1268 = vunpack.c.h.b16 %v499
    %v1269 = vunpack.c.l.b16 %v500
    %v1270 = vunpack.c.h.b16 %v500
    %v1271 = vunpack.c.l.b16 %v501
    %v1272 = vunpack.c.h.b16 %v501
    %v1273 = vunpack.c.l.b16 %v502
    %v1274 = vunpack.c.h.b16 %v502
    %v1275 = vunpack.c.l.b16 %v503
    %v1276 = vunpack.c.h.b16 %v503
    %v1277 = vunpack.c.l.b16 %v504
    %v1278 = vunpack.c.h.b16 %v504
    %v1279 = vunpack.c.l.b16 %v505
    %v1280 = vunpack.c.h.b16 %v505
    %v1281 = vunpack.c.l.b16 %v506
    %v1282 = vunpack.c.h.b16 %v506
    %v1283 = vunpack.c.l.b16 %v507
    %v1284 = vunpack.c.h.b16 %v507
    %v1285 = vunpack.c.l.b16 %v508
    %v1286 = vunpack.c.h.b16 %v508
    %v1287 = vunpack.c.l.b16 %v509
    %v1288 = vunpack.c.h.b16 %v509
    %v1289 = vunpack.c.l.b16 %v510
    %v1290 = vunpack.c.h.b16 %v510
    %v1291 = vunpack.c.l.b16 %v511
    %v1292 = vunpack.c.h.b16 %v511
    %v1293 = vunpack.c.l.b16 %v512
    %v1294 = vunpack.c.h.b16 %v512
    %v1295 = vunpack.c.l.b16 %v513
    %v1296 = vunpack.c.h.b16 %v513
    %v1297 = vunpack.c.l.b16 %v514
    %v1298 = vunpack.c.h.b16 %v514
    %v1299 = vunpack.c.l.b16 %v515
    %v1300 = vunpack.c.h.b16 %v515
    %v1301 = vunpack.c.l.b16 %v516
    %v1302 = vunpack.c.h.b16 %v516
    %v1303 = vunpack.c.l.b16 %v517
    %v1304 = vunpack.c.h.b16 %v517
    %v1305 = vunpack.c.l.b16 %v518
    %v1306 = vunpack.c.h.b16 %v518
    %v1307 = vunpack.c.l.b16 %v519
    %v1308 = vunpack.c.h.b16 %v519
    %v1309 = vunpack.c.l.b16 %v520
    %v1310 = vunpack.c.h.b16 %v520
    %v1311 = vunpack.c.l.b16 %v521
    %v1312 = vunpack.c.h.b16 %v521
    %v1313 = vunpack.c.l.b16 %v522
    %v1314 = vunpack.c.h.b16 %v522
    %v1315 = vunpack.c.l.b16 %v523
    %v1316 = vunpack.c.h.b16 %v523
    %v1317 = vunpack.c.l.b16 %v524
    %v1318 = vunpack.c.h.b16 %v524
    %v1319 = vunpack.c.l.b16 %v525
    %v1320 = vunpack.c.h.b16 %v525
    %v1321 = vunpack.c.l.b16 %v526
    %v1322 = vunpack.c.h.b16 %v526
    %v1323 = vunpack.c.l.b16 %v527
    %v1324 = vunpack.c.h.b16 %v527
    %v1325 = vunpack.c.l.b16 %v528
    %v1326 = vunpack.c.h.b16 %v528
    %v1327 = vunpack.c.l.b16 %v529
    %v1328 = vunpack.c.h.b16 %v529
    %v1329 = vunpack.c.l.b16 %v530
    %v1330 = vunpack.c.h.b16 %v530
    %v1331 = vunpack.c.l.b16 %v531
    %v1332 = vunpack.c.h.b16 %v531
    %v1333 = vunpack.c.l.b16 %v532
    %v1334 = vunpack.c.h.b16 %v532
    %v1335 = vunpack.c.l.b16 %v533
    %v1336 = vunpack.c.h.b16 %v533
    %v1337 = vunpack.c.l.b16 %v534
    %v1338 = vunpack.c.h.b16 %v534
    %v1339 = vunpack.c.l.b16 %v535
    %v1340 = vunpack.c.h.b16 %v535
    %v1341 = vunpack.c.l.b16 %v536
    %v1342 = vunpack.c.h.b16 %v536
    %v1343 = vunpack.c.l.b16 %v537
    %v1344 = vunpack.c.h.b16 %v537
    %v1345 = vunpack.c.l.b16 %v538
    %v1346 = vunpack.c.h.b16 %v538
    %v1347 = vunpack.c.l.b16 %v539
    %v1348 = vunpack.c.h.b16 %v539
    %v1349 = vunpack.c.l.b16 %v540
    %v1350 = vunpack.c.h.b16 %v540
    %v1351 = vunpack.c.l.b16 %v541
    %v1352 = vunpack.c.h.b16 %v541
    %v1353 = vunpack.c.l.b16 %v542
    %v1354 = vunpack.c.h.b16 %v542
    %v1355 = vunpack.c.l.b16 %v543
    %v1356 = vunpack.c.h.b16 %v543
    %v1357 = vunpack.c.l.b16 %v544
    %v1358 = vunpack.c.h.b16 %v544
    %v1359 = vunpack.c.l.b16 %v545
    %v1360 = vunpack.c.h.b16 %v545
    %v1361 = vunpack.c.l.b16 %v546
    %v1362 = vunpack.c.h.b16 %v546
    %v1363 = vunpack.c.l.b16 %v547
    %v1364 = vunpack.c.h.b16 %v547
    %v1365 = vunpack.c.l.b16 %v548
    %v1366 = vunpack.c.h.b16 %v548
    %v1367 = vunpack.c.l.b16 %v549
    %v1368 = vunpack.c.h.b16 %v549
    %v1369 = vunpack.c.l.b16 %v550
    %v1370 = vunpack.c.h.b16 %v550
    %v1371 = vunpack.c.l.b16 %v551
    %v1372 = vunpack.c.h.b16 %v551
    %v1373 = vunpack.c.l.b16 %v552
    %v1374 = vunpack.c.h.b16 %v552
    %v1375 = vunpack.c.l.b16 %v553
    %v1376 = vunpack.c.h.b16 %v553
    %v1377 = vunpack.c.l.b16 %v554
    %v1378 = vunpack.c.h.b16 %v554
    %v1379 = vunpack.c.l.b16 %v555
    %v1380 = vunpack.c.h.b16 %v555
    %v1381 = vunpack.c.l.b16 %v556
    %v1382 = vunpack.c.h.b16 %v556
    %v1383 = vunpack.c.l.b16 %v557
    %v1384 = vunpack.c.h.b16 %v557
    %v1385 = vunpack.c.l.b16 %v558
    %v1386 = vunpack.c.h.b16 %v558
    %v1387 = vunpack.c.l.b16 %v559
    %v1388 = vunpack.c.h.b16 %v559
    %v1389 = vunpack.c.l.b16 %v560
    %v1390 = vunpack.c.h.b16 %v560
    %v1391 = vunpack.c.l.b16 %v561
    %v1392 = vunpack.c.h.b16 %v561
    %v1393 = vunpack.c.l.b16 %v562
    %v1394 = vunpack.c.h.b16 %v562
    %v1395 = vunpack.c.l.b16 %v563
    %v1396 = vunpack.c.h.b16 %v563
    %v1397 = vunpack.c.l.b16 %v564
    %v1398 = vunpack.c.h.b16 %v564
    %v1399 = vunpack.c.l.b16 %v565
    %v1400 = vunpack.c.h.b16 %v565
    %v1401 = vunpack.c.l.b16 %v566
    %v1402 = vunpack.c.h.b16 %v566
    %v1403 = vunpack.c.l.b16 %v567
    %v1404 = vunpack.c.h.b16 %v567
    %v1405 = vunpack.c.l.b16 %v568
    %v1406 = vunpack.c.h.b16 %v568
    %v1407 = vunpack.c.l.b16 %v569
    %v1408 = vunpack.c.h.b16 %v569
    %v1409 = vunpack.c.l.b16 %v570
    %v1410 = vunpack.c.h.b16 %v570
    %v1411 = vunpack.c.l.b16 %v571
    %v1412 = vunpack.c.h.b16 %v571
    %v1413 = vunpack.c.l.b16 %v572
    %v1414 = vunpack.c.h.b16 %v572
    %v1415 = vunpack.c.l.b16 %v573
    %v1416 = vunpack.c.h.b16 %v573
    %v1417 = vunpack.c.l.b16 %v574
    %v1418 = vunpack.c.h.b16 %v574
    %v1419 = vunpack.c.l.b16 %v575
    %v1420 = vunpack.c.h.b16 %v575
    %v1421 = vunpack.c.l.b16 %v576
    %v1422 = vunpack.c.h.b16 %v576
    %v1423 = vunpack.c.l.b16 %v577
    %v1424 = vunpack.c.h.b16 %v577
    %v1425 = vunpack.c.l.b16 %v578
    %v1426 = vunpack.c.h.b16 %v578
    %v1427 = vunpack.c.l.b16 %v579
    %v1428 = vunpack.c.h.b16 %v579
    %v1429 = vunpack.c.l.b16 %v580
    %v1430 = vunpack.c.h.b16 %v580
    %v1431 = vunpack.c.l.b16 %v581
    %v1432 = vunpack.c.h.b16 %v581
    %v1433 = vunpack.c.l.b16 %v582
    %v1434 = vunpack.c.h.b16 %v582
    %v1435 = vunpack.c.l.b16 %v583
    %v1436 = vunpack.c.h.b16 %v583
    %v1437 = vunpack.c.l.b16 %v584
    %v1438 = vunpack.c.h.b16 %v584
    %v1439 = vunpack.c.l.b16 %v585
    %v1440 = vunpack.c.h.b16 %v585
    %v1441 = vunpack.c.l.b16 %v586
    %v1442 = vunpack.c.h.b16 %v586
    %v1443 = vunpack.c.l.b16 %v587
    %v1444 = vunpack.c.h.b16 %v587
    %v1445 = vunpack.c.l.b16 %v588
    %v1446 = vunpack.c.h.b16 %v588
    %v1447 = vunpack.c.l.b16 %v589
    %v1448 = vunpack.c.h.b16 %v589
    %v1449 = vunpack.c.l.b16 %v590
    %v1450 = vunpack.c.h.b16 %v590
    %v1451 = vunpack.c.l.b16 %v591
    %v1452 = vunpack.c.h.b16 %v591
    %v1453 = vunpack.c.l.b16 %v592
    %v1454 = vunpack.c.h.b16 %v592
    %v1455 = vunpack.c.l.b16 %v593
    %v1456 = vunpack.c.h.b16 %v593
    %v1457 = vunpack.c.l.b16 %v594
    %v1458 = vunpack.c.h.b16 %v594
    %v1459 = vunpack.c.l.b16 %v595
    %v1460 = vunpack.c.h.b16 %v595
    %v1461 = vunpack.c.l.b16 %v596
    %v1462 = vunpack.c.h.b16 %v596
    %v1463 = vunpack.c.l.b16 %v597
    %v1464 = vunpack.c.h.b16 %v597
    %v1465 = vunpack.c.l.b16 %v598
    %v1466 = vunpack.c.h.b16 %v598
    %v1467 = vunpack.c.l.b16 %v599
    %v1468 = vunpack.c.h.b16 %v599
    %v1469 = vunpack.c.l.b16 %v600
    %v1470 = vunpack.c.h.b16 %v600
    %v1471 = vunpack.c.l.b16 %v601
    %v1472 = vunpack.c.h.b16 %v601
    %v1473 = vunpack.c.l.b16 %v602
    %v1474 = vunpack.c.h.b16 %v602
    %v1475 = vunpack.c.l.b16 %v603
    %v1476 = vunpack.c.h.b16 %v603
    %v1477 = vunpack.c.l.b16 %v604
    %v1478 = vunpack.c.h.b16 %v604
    %v1479 = vunpack.c.l.b16 %v605
    %v1480 = vunpack.c.h.b16 %v605
    %v1481 = vunpack.c.l.b16 %v606
    %v1482 = vunpack.c.h.b16 %v606
    %v1483 = vunpack.c.l.b16 %v607
    %v1484 = vunpack.c.h.b16 %v607
    %v1485 = vunpack.c.l.b16 %v608
    %v1486 = vunpack.c.h.b16 %v608
    %v1487 = vunpack.c.l.b16 %v609
    %v1488 = vunpack.c.h.b16 %v609
    %v1489 = vunpack.c.l.b16 %v610
    %v1490 = vunpack.c.h.b16 %v610
    %v1491 = vunpack.c.l.b16 %v611
    %v1492 = vunpack.c.h.b16 %v611
    %v1493 = vunpack.c.l.b16 %v612
    %v1494 = vunpack.c.h.b16 %v612
    %v1495 = vunpack.c.l.b16 %v613
    %v1496 = vunpack.c.h.b16 %v613
    %v1497 = vunpack.c.l.b16 %v614
    %v1498 = vunpack.c.h.b16 %v614
    %v1499 = vunpack.c.l.b16 %v615
    %v1500 = vunpack.c.h.b16 %v615
    %v1501 = vunpack.c.l.b16 %v616
    %v1502 = vunpack.c.h.b16 %v616
    %v1503 = vunpack.c.l.b16 %v617
    %v1504 = vunpack.c.h.b16 %v617
    %v1505 = vunpack.c.l.b16 %v618
    %v1506 = vunpack.c.h.b16 %v618
    %v1507 = vunpack.c.l.b16 %v619
    %v1508 = vunpack.c.h.b16 %v619
    %v1509 = vunpack.c.l.b16 %v620
    %v1510 = vunpack.c.h.b16 %v620
    %v1511 = vunpack.c.l.b16 %v621
    %v1512 = vunpack.c.h.b16 %v621
    %v1513 = vunpack.c.l.b16 %v622
    %v1514 = vunpack.c.h.b16 %v622
    %v1515 = vunpack.c.l.b16 %v623
    %v1516 = vunpack.c.h.b16 %v623
    %v1517 = vunpack.c.l.b16 %v624
    %v1518 = vunpack.c.h.b16 %v624
    %v1519 = vunpack.c.l.b16 %v625
    %v1520 = vunpack.c.h.b16 %v625
    %v1521 = vunpack.c.l.b16 %v626
    %v1522 = vunpack.c.h.b16 %v626
    %v1523 = vunpack.c.l.b16 %v627
    %v1524 = vunpack.c.h.b16 %v627
    %v1525 = vunpack.c.l.b16 %v628
    %v1526 = vunpack.c.h.b16 %v628
    %v1527 = vunpack.c.l.b16 %v629
    %v1528 = vunpack.c.h.b16 %v629
    %v1529 = vunpack.c.l.b16 %v630
    %v1530 = vunpack.c.h.b16 %v630
    %v1531 = vunpack.c.l.b16 %v631
    %v1532 = vunpack.c.h.b16 %v631
    %v1533 = vunpack.c.l.b16 %v632
    %v1534 = vunpack.c.h.b16 %v632
    %v1535 = vunpack.c.l.b16 %v633
    %v1536 = vunpack.c.h.b16 %v633
    %v1537 = vunpack.c.l.b16 %v634
    %v1538 = vunpack.c.h.b16 %v634
    %v1539 = vunpack.c.l.b16 %v635
    %v1540 = vunpack.c.h.b16 %v635
    %v1541 = vunpack.c.l.b16 %v636
    %v1542 = vunpack.c.h.b16 %v636
    %v1543 = vunpack.c.l.b16 %v637
    %v1544 = vunpack.c.h.b16 %v637
    %v1545 = vunpack.c.l.b16 %v638
    %v1546 = vunpack.c.h.b16 %v638
    %v1547 = vunpack.c.l.b16 %v639
    %v1548 = vunpack.c.h.b16 %v639
    %v1549 = vunpack.c.l.b16 %v640
    %v1550 = vunpack.c.h.b16 %v640
    %v1551 = vunpack.c.l.b16 %v641
    %v1552 = vunpack.c.h.b16 %v641
    %v1553 = vunpack.c.l.b16 %v642
    %v1554 = vunpack.c.h.b16 %v642
    %v1555 = vunpack.c.l.b16 %v643
    %v1556 = vunpack.c.h.b16 %v643
    %v1557 = vunpack.c.l.b16 %v644
    %v1558 = vunpack.c.h.b16 %v644
    %v1559 = vunpack.c.l.b16 %v645
    %v1560 = vunpack.c.h.b16 %v645
    %v1561 = vunpack.c.l.b16 %v646
    %v1562 = vunpack.c.h.b16 %v646
    %v1563 = vunpack.c.l.b16 %v647
    %v1564 = vunpack.c.h.b16 %v647
    %v1565 = vunpack.c.l.b16 %v648
    %v1566 = vunpack.c.h.b16 %v648
    %v1567 = vunpack.c.l.b16 %v649
    %v1568 = vunpack.c.h.b16 %v649
    %v1569 = vunpack.c.l.b16 %v650
    %v1570 = vunpack.c.h.b16 %v650
    %v1571 = vunpack.c.l.b16 %v651
    %v1572 = vunpack.c.h.b16 %v651
    %v1573 = vunpack.c.l.b16 %v652
    %v1574 = vunpack.c.h.b16 %v652
    %v1575 = vunpack.c.l.b16 %v653
    %v1576 = vunpack.c.h.b16 %v653
    %v1577 = vunpack.c.l.b16 %v654
    %v1578 = vunpack.c.h.b16 %v654
    %v1579 = vunpack.c.l.b16 %v655
    %v1580 = vunpack.c.h.b16 %v655
    %v1581 = vunpack.c.l.b16 %v656
    %v1582 = vunpack.c.h.b16 %v656
    %v1583 = vunpack.c.l.b16 %v657
    %v1584 = vunpack.c.h.b16 %v657
    %v1585 = vunpack.c.l.b16 %v658
    %v1586 = vunpack.c.h.b16 %v658
    %v1587 = vunpack.c.l.b16 %v659
    %v1588 = vunpack.c.h.b16 %v659
    %v1589 = vunpack.c.l.b16 %v660
    %v1590 = vunpack.c.h.b16 %v660
    %v1591 = vunpack.c.l.b16 %v661
    %v1592 = vunpack.c.h.b16 %v661
    %v1593 = vunpack.c.l.b16 %v662
    %v1594 = vunpack.c.h.b16 %v662
    %v1595 = vunpack.c.l.b16 %v663
    %v1596 = vunpack.c.h.b16 %v663
    %v1597 = vunpack.c.l.b16 %v664
    %v1598 = vunpack.c.h.b16 %v664
    %v1599 = vunpack.c.l.b16 %v665
    %v1600 = vunpack.c.h.b16 %v665
    %v1601 = vunpack.c.l.b16 %v666
    %v1602 = vunpack.c.h.b16 %v666
    %v1603 = vunpack.c.l.b16 %v667
    %v1604 = vunpack.c.h.b16 %v667
    %v1605 = vunpack.c.l.b16 %v668
    %v1606 = vunpack.c.h.b16 %v668
    %v1607 = vunpack.c.l.b16 %v669
    %v1608 = vunpack.c.h.b16 %v669
    %v1609 = vunpack.c.l.b16 %v670
    %v1610 = vunpack.c.h.b16 %v670
    %v1611 = vunpack.c.l.b16 %v671
    %v1612 = vunpack.c.h.b16 %v671
    %v1613 = vunpack.c.l.b16 %v672
    %v1614 = vunpack.c.h.b16 %v672
    %v1615 = vunpack.c.l.b16 %v673
    %v1616 = vunpack.c.h.b16 %v673
    %v1617 = vunpack.c.l.b16 %v674
    %v1618 = vunpack.c.h.b16 %v674
    %v1619 = vunpack.c.l.b16 %v675
    %v1620 = vunpack.c.h.b16 %v675
    %v1621 = vunpack.c.l.b16 %v676
    %v1622 = vunpack.c.h.b16 %v676
    %v1623 = vunpack.c.l.b16 %v677
    %v1624 = vunpack.c.h.b16 %v677
    %v1625 = vunpack.c.l.b16 %v678
    %v1626 = vunpack.c.h.b16 %v678
    %v1627 = vunpack.c.l.b16 %v679
    %v1628 = vunpack.c.h.b16 %v679
    %v1629 = vunpack.c.l.b16 %v680
    %v1630 = vunpack.c.h.b16 %v680
    %v1631 = vunpack.c.l.b16 %v681
    %v1632 = vunpack.c.h.b16 %v681
    %v1633 = vunpack.c.l.b16 %v682
    %v1634 = vunpack.c.h.b16 %v682
    %v1635 = vunpack.c.l.b16 %v683
    %v1636 = vunpack.c.h.b16 %v683
    %v1637 = vunpack.c.l.b16 %v684
    %v1638 = vunpack.c.h.b16 %v684
    %v1639 = vunpack.c.l.b16 %v685
    %v1640 = vunpack.c.h.b16 %v685
    %v1641 = vunpack.c.l.b16 %v686
    %v1642 = vunpack.c.h.b16 %v686
    %v1643 = vunpack.c.l.b16 %v687
    %v1644 = vunpack.c.h.b16 %v687
    %v1645 = vunpack.c.l.b16 %v688
    %v1646 = vunpack.c.h.b16 %v688
    %v1647 = vunpack.c.l.b16 %v689
    %v1648 = vunpack.c.h.b16 %v689
    %v1649 = vunpack.c.l.b16 %v690
    %v1650 = vunpack.c.h.b16 %v690
    %v1651 = vunpack.c.l.b16 %v691
    %v1652 = vunpack.c.h.b16 %v691
    %v1653 = vunpack.c.l.b16 %v692
    %v1654 = vunpack.c.h.b16 %v692
    %v1655 = vunpack.c.l.b16 %v693
    %v1656 = vunpack.c.h.b16 %v693
    %v1657 = vunpack.c.l.b16 %v694
    %v1658 = vunpack.c.h.b16 %v694
    %v1659 = vunpack.c.l.b16 %v695
    %v1660 = vunpack.c.h.b16 %v695
    %v1661 = vunpack.c.l.b16 %v696
    %v1662 = vunpack.c.h.b16 %v696
    %v1663 = vunpack.c.l.b16 %v697
    %v1664 = vunpack.c.h.b16 %v697
    %v1665 = vunpack.c.l.b16 %v698
    %v1666 = vunpack.c.h.b16 %v698
    %v1667 = vunpack.c.l.b16 %v699
    %v1668 = vunpack.c.h.b16 %v699
    %v1669 = vunpack.c.l.b16 %v700
    %v1670 = vunpack.c.h.b16 %v700
    %v1671 = vunpack.c.l.b16 %v701
    %v1672 = vunpack.c.h.b16 %v701
    %v1673 = vunpack.c.l.b16 %v702
    %v1674 = vunpack.c.h.b16 %v702
    %v1675 = vunpack.c.l.b16 %v703
    %v1676 = vunpack.c.h.b16 %v703
    %v1677 = vunpack.c.l.b16 %v704
    %v1678 = vunpack.c.h.b16 %v704
    %v1679 = vunpack.c.l.b16 %v705
    %v1680 = vunpack.c.h.b16 %v705
    %v1681 = vunpack.c.l.b16 %v706
    %v1682 = vunpack.c.h.b16 %v706
    %v1683 = vunpack.c.l.b16 %v707
    %v1684 = vunpack.c.h.b16 %v707
    %v1685 = vunpack.c.l.b16 %v708
    %v1686 = vunpack.c.h.b16 %v708
    %v1687 = vunpack.c.l.b16 %v709
    %v1688 = vunpack.c.h.b16 %v709
    %v1689 = vunpack.c.l.b16 %v710
    %v1690 = vunpack.c.h.b16 %v710
    %v1691 = vunpack.c.l.b16 %v711
    %v1692 = vunpack.c.h.b16 %v711
    %v1693 = vunpack.c.l.b16 %v712
    %v1694 = vunpack.c.h.b16 %v712
    %v1695 = vpack.c.b16 %v1059, %v1055
    %v1696 = vpack.c.b16 %v1060, %v1056
    %v1697 = vpack.c.b16 %v1061, %v1057
    %v1698 = vpack.c.b16 %v1062, %v1058
    %v1699 = vpack.c.b16 %v1067, %v1063
    %v1700 = vpack.c.b16 %v1068, %v1064
    %v1701 = vpack.c.b16 %v1069, %v1065
    %v1702 = vpack.c.b16 %v1070, %v1066
    %v1703 = vpack.c.b16 %v1075, %v1071
    %v1704 = vpack.c.b16 %v1076, %v1072
    %v1705 = vpack.c.b16 %v1077, %v1073
    %v1706 = vpack.c.b16 %v1078, %v1074
    %v1707 = vpack.c.b16 %v1083, %v1079
    %v1708 = vpack.c.b16 %v1084, %v1080
    %v1709 = vpack.c.b16 %v1085, %v1081
    %v1710 = vpack.c.b16 %v1086, %v1082
    %v1711 = vpack.c.b16 %v1091, %v1087
    %v1712 = vpack.c.b16 %v1092, %v1088
    %v1713 = vpack.c.b16 %v1093, %v1089
    %v1714 = vpack.c.b16 %v1094, %v1090
    %v1715 = vpack.c.b16 %v1099, %v1095
    %v1716 = vpack.c.b16 %v1100, %v1096
    %v1717 = vpack.c.b16 %v1101, %v1097
    %v1718 = vpack.c.b16 %v1102, %v1098
    %v1719 = vpack.c.b16 %v1107, %v1103
    %v1720 = vpack.c.b16 %v1108, %v1104
    %v1721 = vpack.c.b16 %v1109, %v1105
    %v1722 = vpack.c.b16 %v1110, %v1106
    %v1723 = vpack.c.b16 %v1115, %v1111
    %v1724 = vpack.c.b16 %v1116, %v1112
    %v1725 = vpack.c.b16 %v1117, %v1113
    %v1726 = vpack.c.b16 %v1118, %v1114
    %v1727 = vpack.c.b16 %v1123, %v1119
    %v1728 = vpack.c.b16 %v1124, %v1120
    %v1729 = vpack.c.b16 %v1125, %v1121
    %v1730 = vpack.c.b16 %v1126, %v1122
    %v1731 = vpack.c.b16 %v1131, %v1127
    %v1732 = vpack.c.b16 %v1132, %v1128
    %v1733 = vpack.c.b16 %v1133, %v1129
    %v1734 = vpack.c.b16 %v1134, %v1130
    %v1735 = vpack.c.b16 %v1139, %v1135
    %v1736 = vpack.c.b16 %v1140, %v1136
    %v1737 = vpack.c.b16 %v1141, %v1137
    %v1738 = vpack.c.b16 %v1142, %v1138
    %v1739 = vpack.c.b16 %v1147, %v1143
    %v1740 = vpack.c.b16 %v1148, %v1144
    %v1741 = vpack.c.b16 %v1149, %v1145
    %v1742 = vpack.c.b16 %v1150, %v1146
    %v1743 = vpack.c.b16 %v1155, %v1151
    %v1744 = vpack.c.b16 %v1156, %v1152
    %v1745 = vpack.c.b16 %v1157, %v1153
    %v1746 = vpack.c.b16 %v1158, %v1154
    %v1747 = vpack.c.b16 %v1163, %v1159
    %v1748 = vpack.c.b16 %v1164, %v1160
    %v1749 = vpack.c.b16 %v1165, %v1161
    %v1750 = vpack.c.b16 %v1166, %v1162
    %v1751 = vpack.c.b16 %v1171, %v1167
    %v1752 = vpack.c.b16 %v1172, %v1168
    %v1753 = vpack.c.b16 %v1173, %v1169
    %v1754 = vpack.c.b16 %v1174, %v1170
    %v1755 = vpack.c.b16 %v1179, %v1175
    %v1756 = vpack.c.b16 %v1180, %v1176
    %v1757 = vpack.c.b16 %v1181, %v1177
    %v1758 = vpack.c.b16 %v1182, %v1178
    %v1759 = vpack.c.b16 %v1187, %v1183
    %v1760 = vpack.c.b16 %v1188, %v1184
    %v1761 = vpack.c.b16 %v1189, %v1185
    %v1762 = vpack.c.b16 %v1190, %v1186
    %v1763 = vpack.c.b16 %v1195, %v1191
    %v1764 = vpack.c.b16 %v1196, %v1192
    %v1765 = vpack.c.b16 %v1197, %v1193
    %v1766 = vpack.c.b16 %v1198, %v1194
    %v1767 = vpack.c.b16 %v1203, %v1199
    %v1768 = vpack.c.b16 %v1204, %v1200
    %v1769 = vpack.c.b16 %v1205, %v1201
    %v1770 = vpack.c.b16 %v1206, %v1202
    %v1771 = vpack.c.b16 %v1211, %v1207
    %v1772 = vpack.c.b16 %v1212, %v1208
    %v1773 = vpack.c.b16 %v1213, %v1209
    %v1774 = vpack.c.b16 %v1214, %v1210
    %v1775 = vpack.c.b16 %v1219, %v1215
    %v1776 = vpack.c.b16 %v1220, %v1216
    %v1777 = vpack.c.b16 %v1221, %v1217
    %v1778 = vpack.c.b16 %v1222, %v1218
    %v1779 = vpack.c.b16 %v1227, %v1223
    %v1780 = vpack.c.b16 %v1228, %v1224
    %v1781 = vpack.c.b16 %v1229, %v1225
    %v1782 = vpack.c.b16 %v1230, %v1226
    %v1783 = vpack.c.b16 %v1235, %v1231
    %v1784 = vpack.c.b16 %v1236, %v1232
    %v1785 = vpack.c.b16 %v1237, %v1233
    %v1786 = vpack.c.b16 %v1238, %v1234
    %v1787 = vpack.c.b16 %v1243, %v1239
    %v1788 = vpack.c.b16 %v1244, %v1240
    %v1789 = vpack.c.b16 %v1245, %v1241
    %v1790 = vpack.c.b16 %v1246, %v1242
    %v1791 = vpack.c.b16 %v1251, %v1247
    %v1792 = vpack.c.b16 %v1252, %v1248
    %v1793 = vpack.c.b16 %v1253, %v1249
    %v1794 = vpack.c.b16 %v1254, %v1250
    %v1795 = vpack.c.b16 %v1259, %v1255
    %v1796 = vpack.c.b16 %v1260, %v1256
    %v1797 = vpack.c.b16 %v1261, %v1257
    %v1798 = vpack.c.b16 %v1262, %v1258
    %v1799 = vpack.c.b16 %v1267, %v1263
    %v1800 = vpack.c.b16 %v1268, %v1264
    %v1801 = vpack.c.b16 %v1269, %v1265
    %v1802 = vpack.c.b16 %v1270, %v1266
    %v1803 = vpack.c.b16 %v1275, %v1271
    %v1804 = vpack.c.b16 %v1276, %v1272
    %v1805 = vpack.c.b16 %v1277, %v1273
    %v1806 = vpack.c.b16 %v1278, %v1274
    %v1807 = vpack.c.b16 %v1283, %v1279
    %v1808 = vpack.c.b16 %v1284, %v1280
    %v1809 = vpack.c.b16 %v1285, %v1281
    %v1810 = vpack.c.b16 %v1286, %v1282
    %v1811 = vpack.c.b16 %v1291, %v1287
    %v1812 = vpack.c.b16 %v1292, %v1288
    %v1813 = vpack.c.b16 %v1293, %v1289
    %v1814 = vpack.c.b16 %v1294, %v1290
    %v1815 = vpack.c.b16 %v1299, %v1295
    %v1816 = vpack.c.b16 %v1300, %v1296
    %v1817 = vpack.c.b16 %v1301, %v1297
    %v1818 = vpack.c.b16 %v1302, %v1298
    %v1819 = vpack.c.b16 %v1307, %v1303
    %v1820 = vpack.c.b16 %v1308, %v1304
    %v1821 = vpack.c.b16 %v1309, %v1305
    %v1822 = vpack.c.b16 %v1310, %v1306
    %v1823 = vpack.c.b16 %v1315, %v1311
    %v1824 = vpack.c.b16 %v1316, %v1312
    %v1825 = vpack.c.b16 %v1317, %v1313
    %v1826 = vpack.c.b16 %v1318, %v1314
    %v1827 = vpack.c.b16 %v1323, %v1319
    %v1828 = vpack.c.b16 %v1324, %v1320
    %v1829 = vpack.c.b16 %v1325, %v1321
    %v1830 = vpack.c.b16 %v1326, %v1322
    %v1831 = vpack.c.b16 %v1331, %v1327
    %v1832 = vpack.c.b16 %v1332, %v1328
    %v1833 = vpack.c.b16 %v1333, %v1329
    %v1834 = vpack.c.b16 %v1334, %v1330
    %v1835 = vpack.c.b16 %v1339, %v1335
    %v1836 = vpack.c.b16 %v1340, %v1336
    %v1837 = vpack.c.b16 %v1341, %v1337
    %v1838 = vpack.c.b16 %v1342, %v1338
    %v1839 = vpack.c.b16 %v1347, %v1343
    %v1840 = vpack.c.b16 %v1348, %v1344
    %v1841 = vpack.c.b16 %v1349, %v1345
    %v1842 = vpack.c.b16 %v1350, %v1346
    %v1843 = vpack.c.b16 %v1355, %v1351
    %v1844 = vpack.c.b16 %v1356, %v1352
    %v1845 = vpack.c.b16 %v1357, %v1353
    %v1846 = vpack.c.b16 %v1358, %v1354
    %v1847 = vpack.c.b16 %v1363, %v1359
    %v1848 = vpack.c.b16 %v1364, %v1360
    %v1849 = vpack.c.b16 %v1365, %v1361
    %v1850 = vpack.c.b16 %v1366, %v1362
    %v1851 = vpack.c.b16 %v1371, %v1367
    %v1852 = vpack.c.b16 %v1372, %v1368
    %v1853 = vpack.c.b16 %v1373, %v1369
    %v1854 = vpack.c.b16 %v1374, %v1370
    %v1855 = vpack.c.b16 %v1379, %v1375
    %v1856 = vpack.c.b16 %v1380, %v1376
    %v1857 = vpack.c.b16 %v1381, %v1377
    %v1858 = vpack.c.b16 %v1382, %v1378
    %v1859 = vpack.c.b16 %v1387, %v1383
    %v1860 = vpack.c.b16 %v1388, %v1384
    %v1861 = vpack.c.b16 %v1389, %v1385
    %v1862 = vpack.c.b16 %v1390, %v1386
    %v1863 = vpack.c.b16 %v1395, %v1391
    %v1864 = vpack.c.b16 %v1396, %v1392
    %v1865 = vpack.c.b16 %v1397, %v1393
    %v1866 = vpack.c.b16 %v1398, %v1394
    %v1867 = vpack.c.b16 %v1403, %v1399
    %v1868 = vpack.c.b16 %v1404, %v1400
    %v1869 = vpack.c.b16 %v1405, %v1401
    %v1870 = vpack.c.b16 %v1406, %v1402
    %v1871 = vpack.c.b16 %v1411, %v1407
    %v1872 = vpack.c.b16 %v1412, %v1408
    %v1873 = vpack.c.b16 %v1413, %v1409
    %v1874 = vpack.c.b16 %v1414, %v1410
    %v1875 = vpack.c.b16 %v1419, %v1415
    %v1876 = vpack.c.b16 %v1420, %v1416
    %v1877 = vpack.c.b16 %v1421, %v1417
    %v1878 = vpack.c.b16 %v1422, %v1418
    %v1879 = vpack.c.b16 %v1427, %v1423
    %v1880 = vpack.c.b16 %v1428, %v1424
    %v1881 = vpack.c.b16 %v1429, %v1425
    %v1882 = vpack.c.b16 %v1430, %v1426
    %v1883 = vpack.c.b16 %v1435, %v1431
    %v1884 = vpack.c.b16 %v1436, %v1432
    %v1885 = vpack.c.b16 %v1437, %v1433
    %v1886 = vpack.c.b16 %v1438, %v1434
    %v1887 = vpack.c.b16 %v1443, %v1439
    %v1888 = vpack.c.b16 %v1444, %v1440
    %v1889 = vpack.c.b16 %v1445, %v1441
    %v1890 = vpack.c.b16 %v1446, %v1442
    %v1891 = vpack.c.b16 %v1451, %v1447
    %v1892 = vpack.c.b16 %v1452, %v1448
    %v1893 = vpack.c.b16 %v1453, %v1449
    %v1894 = vpack.c.b16 %v1454, %v1450
    %v1895 = vpack.c.b16 %v1459, %v1455
    %v1896 = vpack.c.b16 %v1460, %v1456
    %v1897 = vpack.c.b16 %v1461, %v1457
    %v1898 = vpack.c.b16 %v1462, %v1458
    %v1899 = vpack.c.b16 %v1467, %v1463
    %v1900 = vpack.c.b16 %v1468, %v1464
    %v1901 = vpack.c.b16 %v1469, %v1465
    %v1902 = vpack.c.b16 %v1470, %v1466
    %v1903 = vpack.c.b16 %v1475, %v1471
    %v1904 = vpack.c.b16 %v1476, %v1472
    %v1905 = vpack.c.b16 %v1477, %v1473
    %v1906 = vpack.c.b16 %v1478, %v1474
    %v1907 = vpack.c.b16 %v1483, %v1479
    %v1908 = vpack.c.b16 %v1484, %v1480
    %v1909 = vpack.c.b16 %v1485, %v1481
    %v1910 = vpack.c.b16 %v1486, %v1482
    %v1911 = vpack.c.b16 %v1491, %v1487
    %v1912 = vpack.c.b16 %v1492, %v1488
    %v1913 = vpack.c.b16 %v1493, %v1489
    %v1914 = vpack.c.b16 %v1494, %v1490
    %v1915 = vpack.c.b16 %v1499, %v1495
    %v1916 = vpack.c.b16 %v1500, %v1496
    %v1917 = vpack.c.b16 %v1501, %v1497
    %v1918 = vpack.c.b16 %v1502, %v1498
    %v1919 = vpack.c.b16 %v1507, %v1503
    %v1920 = vpack.c.b16 %v1508, %v1504
    %v1921 = vpack.c.b16 %v1509, %v1505
    %v1922 = vpack.c.b16 %v1510, %v1506
    %v1923 = vpack.c.b16 %v1515, %v1511
    %v1924 = vpack.c.b16 %v1516, %v1512
    %v1925 = vpack.c.b16 %v1517, %v1513
    %v1926 = vpack.c.b16 %v1518, %v1514
    %v1927 = vpack.c.b16 %v1523, %v1519
    %v1928 = vpack.c.b16 %v1524, %v1520
    %v1929 = vpack.c.b16 %v1525, %v1521
    %v1930 = vpack.c.b16 %v1526, %v1522
    %v1931 = vpack.c.b16 %v1531, %v1527
    %v1932 = vpack.c.b16 %v1532, %v1528
    %v1933 = vpack.c.b16 %v1533, %v1529
    %v1934 = vpack.c.b16 %v1534, %v1530
    %v1935 = vpack.c.b16 %v1539, %v1535
    %v1936 = vpack.c.b16 %v1540, %v1536
    %v1937 = vpack.c.b16 %v1541, %v1537
    %v1938 = vpack.c.b16 %v1542, %v1538
    %v1939 = vpack.c.b16 %v1547, %v1543
    %v1940 = vpack.c.b16 %v1548, %v1544
    %v1941 = vpack.c.b16 %v1549, %v1545
    %v1942 = vpack.c.b16 %v1550, %v1546
    %v1943 = vpack.c.b16 %v1555, %v1551
    %v1944 = vpack.c.b16 %v1556, %v1552
    %v1945 = vpack.c.b16 %v1557, %v1553
    %v1946 = vpack.c.b16 %v1558, %v1554
    %v1947 = vpack.c.b16 %v1563, %v1559
    %v1948 = vpack.c.b16 %v1564, %v1560
    %v1949 = vpack.c.b16 %v1565, %v1561
    %v1950 = vpack.c.b16 %v1566, %v1562
    %v1951 = vpack.c.b16 %v1571, %v1567
    %v1952 = vpack.c.b16 %v1572, %v1568
    %v1953 = vpack.c.b16 %v1573, %v1569
    %v1954 = vpack.c.b16 %v1574, %v1570
    %v1955 = vpack.c.b16 %v1579, %v1575
    %v1956 = vpack.c.b16 %v1580, %v1576
    %v1957 = vpack.c.b16 %v1581, %v1577
    %v1958 = vpack.c.b16 %v1582, %v1578
    %v1959 = vpack.c.b16 %v1587, %v1583
    %v1960 = vpack.c.b16 %v1588, %v1584
    %v1961 = vpack.c.b16 %v1589, %v1585
    %v1962 = vpack.c.b16 %v1590, %v1586
    %v1963 = vpack.c.b16 %v1595, %v1591
    %v1964 = vpack.c.b16 %v1596, %v1592
    %v1965 = vpack.c.b16 %v1597, %v1593
    %v1966 = vpack.c.b16 %v1598, %v1594
    %v1967 = vpack.c.b16 %v1603, %v1599
    %v1968 = vpack.c.b16 %v1604, %v1600
    %v1969 = vpack.c.b16 %v1605, %v1601
    %v1970 = vpack.c.b16 %v1606, %v1602
    %v1971 = vpack.c.b16 %v1611, %v1607
    %v1972 = vpack.c.b16 %v1612, %v1608
    %v1973 = vpack.c.b16 %v1613, %v1609
    %v1974 = vpack.c.b16 %v1614, %v1610
    %v1975 = vpack.c.b16 %v1619, %v1615
    %v1976 = vpack.c.b16 %v1620, %v1616
    %v1977 = vpack.c.b16 %v1621, %v1617
    %v1978 = vpack.c.b16 %v1622, %v1618
    %v1979 = vpack.c.b16 %v1627, %v1623
    %v1980 = vpack.c.b16 %v1628, %v1624
    %v1981 = vpack.c.b16 %v1629, %v1625
    %v1982 = vpack.c.b16 %v1630, %v1626
    %v1983 = vpack.c.b16 %v1635, %v1631
    %v1984 = vpack.c.b16 %v1636, %v1632
    %v1985 = vpack.c.b16 %v1637, %v1633
    %v1986 = vpack.c.b16 %v1638, %v1634
    %v1987 = vpack.c.b16 %v1643, %v1639
    %v1988 = vpack.c.b16 %v1644, %v1640
    %v1989 = vpack.c.b16 %v1645, %v1641
    %v1990 = vpack.c.b16 %v1646, %v1642
    %v1991 = vpack.c.b16 %v1651, %v1647
    %v1992 = vpack.c.b16 %v1652, %v1648
    %v1993 = vpack.c.b16 %v1653, %v1649
    %v1994 = vpack.c.b16 %v1654, %v1650
    %v1995 = vpack.c.b16 %v1659, %v1655
    %v1996 = vpack.c.b16 %v1660, %v1656
    %v1997 = vpack.c.b16 %v1661, %v1657
    %v1998 = vpack.c.b16 %v1662, %v1658
    %v1999 = vpack.c.b16 %v1667, %v1663
    %v2000 = vpack.c.b16 %v1668, %v1664
    %v2001 = vpack.c.b16 %v1669, %v1665
    %v2002 = vpack.c.b16 %v1670, %v1666
    %v2003 = vpack.c.b16 %v1675, %v1671
    %v2004 = vpack.c.b16 %v1676, %v1672
    %v2005 = vpack.c.b16 %v1677, %v1673
    %v2006 = vpack.c.b16 %v1678, %v1674
    %v2007 = vpack.c.b16 %v1683, %v1679
    %v2008 = vpack.c.b16 %v1684, %v1680
    %v2009 = vpack.c.b16 %v1685, %v1681
    %v2010 = vpack.c.b16 %v1686, %v1682
    %v2011 = vpack.c.b16 %v1691, %v1687
    %v2012 = vpack.c.b16 %v1692, %v1688
    %v2013 = vpack.c.b16 %v1693, %v1689
    %v2014 = vpack.c.b16 %v1694, %v1690
    %2335 = vmatprep.subr.bf16.mxu0 %v1696
    %2336 = vmatpush1.bf16.msra.mxu0 %v1695
    %2337 = vmatprep.subr.bf16.mxu0 %v1700
    %2338 = vmatpush1.bf16.msra.mxu0 %v1699
    %2339 = vmatprep.subr.bf16.mxu0 %v1704
    %2340 = vmatpush1.bf16.msra.mxu0 %v1703
    %2341 = vmatprep.subr.bf16.mxu0 %v1708
    %2342 = vmatpush1.bf16.msra.mxu0 %v1707
    %2343 = vmatprep.subr.bf16.mxu0 %v1712
    %2344 = vmatpush1.bf16.msra.mxu0 %v1711
    %2345 = vmatprep.subr.bf16.mxu0 %v1716
    %2346 = vmatpush1.bf16.msra.mxu0 %v1715
    %2347 = vmatprep.subr.bf16.mxu0 %v1720
    %2348 = vmatpush1.bf16.msra.mxu0 %v1719
    %2349 = vmatprep.subr.bf16.mxu0 %v1724
    %2350 = vmatpush1.bf16.msra.mxu0 %v1723
    %2351 = vmatprep.subr.bf16.mxu0 %v1728
    %2352 = vmatpush1.bf16.msra.mxu0 %v1727
    %2353 = vmatprep.subr.bf16.mxu0 %v1732
    %2354 = vmatpush1.bf16.msra.mxu0 %v1731
    %2355 = vmatprep.subr.bf16.mxu0 %v1736
    %2356 = vmatpush1.bf16.msra.mxu0 %v1735
    %2357 = vmatprep.subr.bf16.mxu0 %v1740
    %2358 = vmatpush1.bf16.msra.mxu0 %v1739
    %2359 = vmatprep.subr.bf16.mxu0 %v1744
    %2360 = vmatpush1.bf16.msra.mxu0 %v1743
    %2361 = vmatprep.subr.bf16.mxu0 %v1748
    %2362 = vmatpush1.bf16.msra.mxu0 %v1747
    %2363 = vmatprep.subr.bf16.mxu0 %v1752
    %2364 = vmatpush1.bf16.msra.mxu0 %v1751
    %2365 = vmatprep.subr.bf16.mxu0 %v1756
    %2366 = vmatpush1.bf16.msra.mxu0 %v1755
    %2367 = vmatprep.mubr.bf16.mxu0 %v384
    %2368 = vmatmul.mubr.bf16.gmra.mrb[0].mxu0 %v383
    %v2369 = vpop.f32.mrb[0].mxu0
    %v2370 = vadd.f32 %v718, %v2369
    %v2371 = vpop.f32.mrb[0].mxu0
    %v2372 = vadd.f32 %v722, %v2371
    %v2373 = vpop.f32.mrb[0].mxu0
    %v2374 = vadd.f32 %v718, %v2373
    %v2375 = vpop.f32.mrb[0].mxu0
    %v2376 = vadd.f32 %v722, %v2375
    %2377 = vdwg.mxu0
    %2378 = vmatprep.subr.bf16.mxu0 %v1760
    %2379 = vmatpush1.bf16.msra.mxu0 %v1759
    %2380 = vmatprep.subr.bf16.mxu0 %v1764
    %2381 = vmatpush1.bf16.msra.mxu0 %v1763
    %2382 = vmatprep.subr.bf16.mxu0 %v1768
    %2383 = vmatpush1.bf16.msra.mxu0 %v1767
    %2384 = vmatprep.subr.bf16.mxu0 %v1772
    %2385 = vmatpush1.bf16.msra.mxu0 %v1771
    %2386 = vmatprep.subr.bf16.mxu0 %v1776
    %2387 = vmatpush1.bf16.msra.mxu0 %v1775
    %2388 = vmatprep.subr.bf16.mxu0 %v1780
    %2389 = vmatpush1.bf16.msra.mxu0 %v1779
    %2390 = vmatprep.subr.bf16.mxu0 %v1784
    %2391 = vmatpush1.bf16.msra.mxu0 %v1783
    %2392 = vmatprep.subr.bf16.mxu0 %v1788
    %2393 = vmatpush1.bf16.msra.mxu0 %v1787
    %2394 = vmatprep.subr.bf16.mxu0 %v1792
    %2395 = vmatpush1.bf16.msra.mxu0 %v1791
    %2396 = vmatprep.subr.bf16.mxu0 %v1796
    %2397 = vmatpush1.bf16.msra.mxu0 %v1795
    %2398 = vmatprep.subr.bf16.mxu0 %v1800
    %2399 = vmatpush1.bf16.msra.mxu0 %v1799
    %2400 = vmatprep.subr.bf16.mxu0 %v1804
    %2401 = vmatpush1.bf16.msra.mxu0 %v1803
    %2402 = vmatprep.subr.bf16.mxu0 %v1808
    %2403 = vmatpush1.bf16.msra.mxu0 %v1807
    %2404 = vmatprep.subr.bf16.mxu0 %v1812
    %2405 = vmatpush1.bf16.msra.mxu0 %v1811
    %2406 = vmatprep.subr.bf16.mxu0 %v1816
    %2407 = vmatpush1.bf16.msra.mxu0 %v1815
    %2408 = vmatprep.subr.bf16.mxu0 %v1820
    %2409 = vmatpush1.bf16.msra.mxu0 %v1819
    %2410 = vmatprep.mubr.bf16.mxu0 %v386
    %2411 = vmatmul.mubr.bf16.gmra.mrb[0].mxu0 %v385
    %v2412 = vpop.f32.mrb[0].mxu0
    %v2413 = vadd.f32 %v2370, %v2412
    %v2414 = vpop.f32.mrb[0].mxu0
    %v2415 = vadd.f32 %v2372, %v2414
    %v2416 = vpop.f32.mrb[0].mxu0
    %v2417 = vadd.f32 %v2374, %v2416
    %v2418 = vpop.f32.mrb[0].mxu0
    %v2419 = vadd.f32 %v2376, %v2418
    %2420 = vdwg.mxu0
    %2421 = vmatprep.subr.bf16.mxu0 %v1824
    %2422 = vmatpush1.bf16.msra.mxu0 %v1823
    %2423 = vmatprep.subr.bf16.mxu0 %v1828
    %2424 = vmatpush1.bf16.msra.mxu0 %v1827
    %2425 = vmatprep.subr.bf16.mxu0 %v1832
    %2426 = vmatpush1.bf16.msra.mxu0 %v1831
    %2427 = vmatprep.subr.bf16.mxu0 %v1836
    %2428 = vmatpush1.bf16.msra.mxu0 %v1835
    %2429 = vmatprep.subr.bf16.mxu0 %v1840
    %2430 = vmatpush1.bf16.msra.mxu0 %v1839
    %2431 = vmatprep.subr.bf16.mxu0 %v1844
    %2432 = vmatpush1.bf16.msra.mxu0 %v1843
    %2433 = vmatprep.subr.bf16.mxu0 %v1848
    %2434 = vmatpush1.bf16.msra.mxu0 %v1847
    %2435 = vmatprep.subr.bf16.mxu0 %v1852
    %2436 = vmatpush1.bf16.msra.mxu0 %v1851
    %2437 = vmatprep.subr.bf16.mxu0 %v1856
    %2438 = vmatpush1.bf16.msra.mxu0 %v1855
    %2439 = vmatprep.subr.bf16.mxu0 %v1860
    %2440 = vmatpush1.bf16.msra.mxu0 %v1859
    %2441 = vmatprep.subr.bf16.mxu0 %v1864
    %2442 = vmatpush1.bf16.msra.mxu0 %v1863
    %2443 = vmatprep.subr.bf16.mxu0 %v1868
    %2444 = vmatpush1.bf16.msra.mxu0 %v1867
    %2445 = vmatprep.subr.bf16.mxu0 %v1872
    %2446 = vmatpush1.bf16.msra.mxu0 %v1871
    %2447 = vmatprep.subr.bf16.mxu0 %v1876
    %2448 = vmatpush1.bf16.msra.mxu0 %v1875
    %2449 = vmatprep.subr.bf16.mxu0 %v1880
    %2450 = vmatpush1.bf16.msra.mxu0 %v1879
    %2451 = vmatprep.subr.bf16.mxu0 %v1884
    %2452 = vmatpush1.bf16.msra.mxu0 %v1883
    %2453 = vmatprep.mubr.bf16.mxu0 %v388
    %2454 = vmatmul.mubr.bf16.gmra.mrb[0].mxu0 %v387
    %v2455 = vpop.f32.mrb[0].mxu0
    %v2456 = vadd.f32 %v2413, %v2455
    %v2457 = vpop.f32.mrb[0].mxu0
    %v2458 = vadd.f32 %v2415, %v2457
    %v2459 = vpop.f32.mrb[0].mxu0
    %v2460 = vadd.f32 %v2417, %v2459
    %v2461 = vpop.f32.mrb[0].mxu0
    %v2462 = vadd.f32 %v2419, %v2461
    %2463 = vdwg.mxu0
    %2464 = vmatprep.subr.bf16.mxu0 %v1888
    %2465 = vmatpush1.bf16.msra.mxu0 %v1887
    %2466 = vmatprep.subr.bf16.mxu0 %v1892
    %2467 = vmatpush1.bf16.msra.mxu0 %v1891
    %2468 = vmatprep.subr.bf16.mxu0 %v1896
    %2469 = vmatpush1.bf16.msra.mxu0 %v1895
    %2470 = vmatprep.subr.bf16.mxu0 %v1900
    %2471 = vmatpush1.bf16.msra.mxu0 %v1899
    %2472 = vmatprep.subr.bf16.mxu0 %v1904
    %2473 = vmatpush1.bf16.msra.mxu0 %v1903
    %2474 = vmatprep.subr.bf16.mxu0 %v1908
    %2475 = vmatpush1.bf16.msra.mxu0 %v1907
    %2476 = vmatprep.subr.bf16.mxu0 %v1912
    %2477 = vmatpush1.bf16.msra.mxu0 %v1911
    %2478 = vmatprep.subr.bf16.mxu0 %v1916
    %2479 = vmatpush1.bf16.msra.mxu0 %v1915
    %2480 = vmatprep.subr.bf16.mxu0 %v1920
    %2481 = vmatpush1.bf16.msra.mxu0 %v1919
    %2482 = vmatprep.subr.bf16.mxu0 %v1924
    %2483 = vmatpush1.bf16.msra.mxu0 %v1923
    %2484 = vmatprep.subr.bf16.mxu0 %v1928
    %2485 = vmatpush1.bf16.msra.mxu0 %v1927
    %2486 = vmatprep.subr.bf16.mxu0 %v1932
    %2487 = vmatpush1.bf16.msra.mxu0 %v1931
    %2488 = vmatprep.subr.bf16.mxu0 %v1936
    %2489 = vmatpush1.bf16.msra.mxu0 %v1935
    %2490 = vmatprep.subr.bf16.mxu0 %v1940
    %2491 = vmatpush1.bf16.msra.mxu0 %v1939
    %2492 = vmatprep.subr.bf16.mxu0 %v1944
    %2493 = vmatpush1.bf16.msra.mxu0 %v1943
    %2494 = vmatprep.subr.bf16.mxu0 %v1948
    %2495 = vmatpush1.bf16.msra.mxu0 %v1947
    %2496 = vmatprep.mubr.bf16.mxu0 %v390
    %2497 = vmatmul.mubr.bf16.gmra.mrb[0].mxu0 %v389
    %v2498 = vpop.f32.mrb[0].mxu0
    %v2499 = vadd.f32 %v2456, %v2498
    %v2500 = vpop.f32.mrb[0].mxu0
    %v2501 = vadd.f32 %v2458, %v2500
    %v2502 = vpop.f32.mrb[0].mxu0
    %v2503 = vadd.f32 %v2460, %v2502
    %v2504 = vpop.f32.mrb[0].mxu0
    %v2505 = vadd.f32 %v2462, %v2504
    %2506 = vdwg.mxu0
    %2507 = vmatprep.subr.bf16.mxu0 %v1952
    %2508 = vmatpush1.bf16.msra.mxu0 %v1951
    %2509 = vmatprep.subr.bf16.mxu0 %v1956
    %2510 = vmatpush1.bf16.msra.mxu0 %v1955
    %2511 = vmatprep.subr.bf16.mxu0 %v1960
    %2512 = vmatpush1.bf16.msra.mxu0 %v1959
    %2513 = vmatprep.subr.bf16.mxu0 %v1964
    %2514 = vmatpush1.bf16.msra.mxu0 %v1963
    %2515 = vmatprep.subr.bf16.mxu0 %v1968
    %2516 = vmatpush1.bf16.msra.mxu0 %v1967
    %2517 = vmatprep.subr.bf16.mxu0 %v1972
    %2518 = vmatpush1.bf16.msra.mxu0 %v1971
    %2519 = vmatprep.subr.bf16.mxu0 %v1976
    %2520 = vmatpush1.bf16.msra.mxu0 %v1975
    %2521 = vmatprep.subr.bf16.mxu0 %v1980
    %2522 = vmatpush1.bf16.msra.mxu0 %v1979
    %2523 = vmatprep.subr.bf16.mxu0 %v1984
    %2524 = vmatpush1.bf16.msra.mxu0 %v1983
    %2525 = vmatprep.subr.bf16.mxu0 %v1988
    %2526 = vmatpush1.bf16.msra.mxu0 %v1987
    %2527 = vmatprep.subr.bf16.mxu0 %v1992
    %2528 = vmatpush1.bf16.msra.mxu0 %v1991
    %2529 = vmatprep.subr.bf16.mxu0 %v1996
    %2530 = vmatpush1.bf16.msra.mxu0 %v1995
    %2531 = vmatprep.subr.bf16.mxu0 %v2000
    %2532 = vmatpush1.bf16.msra.mxu0 %v1999
    %2533 = vmatprep.subr.bf16.mxu0 %v2004
    %2534 = vmatpush1.bf16.msra.mxu0 %v2003
    %2535 = vmatprep.subr.bf16.mxu0 %v2008
    %2536 = vmatpush1.bf16.msra.mxu0 %v2007
    %2537 = vmatprep.subr.bf16.mxu0 %v2012
    %2538 = vmatpush1.bf16.msra.mxu0 %v2011
    %2539 = vmatprep.mubr.bf16.mxu0 %v392
    %2540 = vmatmul.mubr.bf16.gmra.mrb[0].mxu0 %v391
    %v2541 = vpop.f32.mrb[0].mxu0
    %v2542 = vadd.f32 %v2499, %v2541
    %v2543 = vpop.f32.mrb[0].mxu0
    %v2544 = vadd.f32 %v2501, %v2543
    %v2545 = vpop.f32.mrb[0].mxu0
    %v2546 = vadd.f32 %v2503, %v2545
    %v2547 = vpop.f32.mrb[0].mxu0
    %v2548 = vadd.f32 %v2505, %v2547
    %2549 = vdwg.mxu0
    %2550 = vmatprep.subr.bf16.mxu0 %v1698
    %2551 = vmatpush1.bf16.msra.mxu0 %v1697
    %2552 = vmatprep.subr.bf16.mxu0 %v1702
    %2553 = vmatpush1.bf16.msra.mxu0 %v1701
    %2554 = vmatprep.subr.bf16.mxu0 %v1706
    %2555 = vmatpush1.bf16.msra.mxu0 %v1705
    %2556 = vmatprep.subr.bf16.mxu0 %v1710
    %2557 = vmatpush1.bf16.msra.mxu0 %v1709
    %2558 = vmatprep.subr.bf16.mxu0 %v1714
    %2559 = vmatpush1.bf16.msra.mxu0 %v1713
    %2560 = vmatprep.subr.bf16.mxu0 %v1718
    %2561 = vmatpush1.bf16.msra.mxu0 %v1717
    %2562 = vmatprep.subr.bf16.mxu0 %v1722
    %2563 = vmatpush1.bf16.msra.mxu0 %v1721
    %2564 = vmatprep.subr.bf16.mxu0 %v1726
    %2565 = vmatpush1.bf16.msra.mxu0 %v1725
    %2566 = vmatprep.subr.bf16.mxu0 %v1730
    %2567 = vmatpush1.bf16.msra.mxu0 %v1729
    %2568 = vmatprep.subr.bf16.mxu0 %v1734
    %2569 = vmatpush1.bf16.msra.mxu0 %v1733
    %2570 = vmatprep.subr.bf16.mxu0 %v1738
    %2571 = vmatpush1.bf16.msra.mxu0 %v1737
    %2572 = vmatprep.subr.bf16.mxu0 %v1742
    %2573 = vmatpush1.bf16.msra.mxu0 %v1741
    %2574 = vmatprep.subr.bf16.mxu0 %v1746
    %2575 = vmatpush1.bf16.msra.mxu0 %v1745
    %2576 = vmatprep.subr.bf16.mxu0 %v1750
    %2577 = vmatpush1.bf16.msra.mxu0 %v1749
    %2578 = vmatprep.subr.bf16.mxu0 %v1754
    %2579 = vmatpush1.bf16.msra.mxu0 %v1753
    %2580 = vmatprep.subr.bf16.mxu0 %v1758
    %2581 = vmatpush1.bf16.msra.mxu0 %v1757
    %2582 = vmatprep.mubr.bf16.mxu0 %v384
    %2583 = vmatmul.mubr.bf16.gmra.mrb[0].mxu0 %v383
    %v2584 = vpop.f32.mrb[0].mxu0
    %v2585 = vadd.f32 %v726, %v2584
    %v2586 = vpop.f32.mrb[0].mxu0
    %v2587 = vadd.f32 %v730, %v2586
    %v2588 = vpop.f32.mrb[0].mxu0
    %v2589 = vadd.f32 %v726, %v2588
    %v2590 = vpop.f32.mrb[0].mxu0
    %v2591 = vadd.f32 %v730, %v2590
    %2592 = vdwg.mxu0
    %2593 = vmatprep.subr.bf16.mxu0 %v1762
    %2594 = vmatpush1.bf16.msra.mxu0 %v1761
    %2595 = vmatprep.subr.bf16.mxu0 %v1766
    %2596 = vmatpush1.bf16.msra.mxu0 %v1765
    %2597 = vmatprep.subr.bf16.mxu0 %v1770
    %2598 = vmatpush1.bf16.msra.mxu0 %v1769
    %2599 = vmatprep.subr.bf16.mxu0 %v1774
    %2600 = vmatpush1.bf16.msra.mxu0 %v1773
    %2601 = vmatprep.subr.bf16.mxu0 %v1778
    %2602 = vmatpush1.bf16.msra.mxu0 %v1777
    %2603 = vmatprep.subr.bf16.mxu0 %v1782
    %2604 = vmatpush1.bf16.msra.mxu0 %v1781
    %2605 = vmatprep.subr.bf16.mxu0 %v1786
    %2606 = vmatpush1.bf16.msra.mxu0 %v1785
    %2607 = vmatprep.subr.bf16.mxu0 %v1790
    %2608 = vmatpush1.bf16.msra.mxu0 %v1789
    %2609 = vmatprep.subr.bf16.mxu0 %v1794
    %2610 = vmatpush1.bf16.msra.mxu0 %v1793
    %2611 = vmatprep.subr.bf16.mxu0 %v1798
    %2612 = vmatpush1.bf16.msra.mxu0 %v1797
    %2613 = vmatprep.subr.bf16.mxu0 %v1802
    %2614 = vmatpush1.bf16.msra.mxu0 %v1801
    %2615 = vmatprep.subr.bf16.mxu0 %v1806
    %2616 = vmatpush1.bf16.msra.mxu0 %v1805
    %2617 = vmatprep.subr.bf16.mxu0 %v1810
    %2618 = vmatpush1.bf16.msra.mxu0 %v1809
    %2619 = vmatprep.subr.bf16.mxu0 %v1814
    %2620 = vmatpush1.bf16.msra.mxu0 %v1813
    %2621 = vmatprep.subr.bf16.mxu0 %v1818
    %2622 = vmatpush1.bf16.msra.mxu0 %v1817
    %2623 = vmatprep.subr.bf16.mxu0 %v1822
    %2624 = vmatpush1.bf16.msra.mxu0 %v1821
    %2625 = vmatprep.mubr.bf16.mxu0 %v386
    %2626 = vmatmul.mubr.bf16.gmra.mrb[0].mxu0 %v385
    %v2627 = vpop.f32.mrb[0].mxu0
    %v2628 = vadd.f32 %v2585, %v2627
    %v2629 = vpop.f32.mrb[0].mxu0
    %v2630 = vadd.f32 %v2587, %v2629
    %v2631 = vpop.f32.mrb[0].mxu0
    %v2632 = vadd.f32 %v2589, %v2631
    %v2633 = vpop.f32.mrb[0].mxu0
    %v2634 = vadd.f32 %v2591, %v2633
    %2635 = vdwg.mxu0
    %2636 = vmatprep.subr.bf16.mxu0 %v1826
    %2637 = vmatpush1.bf16.msra.mxu0 %v1825
    %2638 = vmatprep.subr.bf16.mxu0 %v1830
    %2639 = vmatpush1.bf16.msra.mxu0 %v1829
    %2640 = vmatprep.subr.bf16.mxu0 %v1834
    %2641 = vmatpush1.bf16.msra.mxu0 %v1833
    %2642 = vmatprep.subr.bf16.mxu0 %v1838
    %2643 = vmatpush1.bf16.msra.mxu0 %v1837
    %2644 = vmatprep.subr.bf16.mxu0 %v1842
    %2645 = vmatpush1.bf16.msra.mxu0 %v1841
    %2646 = vmatprep.subr.bf16.mxu0 %v1846
    %2647 = vmatpush1.bf16.msra.mxu0 %v1845
    %2648 = vmatprep.subr.bf16.mxu0 %v1850
    %2649 = vmatpush1.bf16.msra.mxu0 %v1849
    %2650 = vmatprep.subr.bf16.mxu0 %v1854
    %2651 = vmatpush1.bf16.msra.mxu0 %v1853
    %2652 = vmatprep.subr.bf16.mxu0 %v1858
    %2653 = vmatpush1.bf16.msra.mxu0 %v1857
    %2654 = vmatprep.subr.bf16.mxu0 %v1862
    %2655 = vmatpush1.bf16.msra.mxu0 %v1861
    %2656 = vmatprep.subr.bf16.mxu0 %v1866
    %2657 = vmatpush1.bf16.msra.mxu0 %v1865
    %2658 = vmatprep.subr.bf16.mxu0 %v1870
    %2659 = vmatpush1.bf16.msra.mxu0 %v1869
    %2660 = vmatprep.subr.bf16.mxu0 %v1874
    %2661 = vmatpush1.bf16.msra.mxu0 %v1873
    %2662 = vmatprep.subr.bf16.mxu0 %v1878
    %2663 = vmatpush1.bf16.msra.mxu0 %v1877
    %2664 = vmatprep.subr.bf16.mxu0 %v1882
    %2665 = vmatpush1.bf16.msra.mxu0 %v1881
    %2666 = vmatprep.subr.bf16.mxu0 %v1886
    %2667 = vmatpush1.bf16.msra.mxu0 %v1885
    %2668 = vmatprep.mubr.bf16.mxu0 %v388
    %2669 = vmatmul.mubr.bf16.gmra.mrb[0].mxu0 %v387
    %v2670 = vpop.f32.mrb[0].mxu0
    %v2671 = vadd.f32 %v2628, %v2670
    %v2672 = vpop.f32.mrb[0].mxu0
    %v2673 = vadd.f32 %v2630, %v2672
    %v2674 = vpop.f32.mrb[0].mxu0
    %v2675 = vadd.f32 %v2632, %v2674
    %v2676 = vpop.f32.mrb[0].mxu0
    %v2677 = vadd.f32 %v2634, %v2676
    %2678 = vdwg.mxu0
    %2679 = vmatprep.subr.bf16.mxu0 %v1890
    %2680 = vmatpush1.bf16.msra.mxu0 %v1889
    %2681 = vmatprep.subr.bf16.mxu0 %v1894
    %2682 = vmatpush1.bf16.msra.mxu0 %v1893
    %2683 = vmatprep.subr.bf16.mxu0 %v1898
    %2684 = vmatpush1.bf16.msra.mxu0 %v1897
    %2685 = vmatprep.subr.bf16.mxu0 %v1902
    %2686 = vmatpush1.bf16.msra.mxu0 %v1901
    %2687 = vmatprep.subr.bf16.mxu0 %v1906
    %2688 = vmatpush1.bf16.msra.mxu0 %v1905
    %2689 = vmatprep.subr.bf16.mxu0 %v1910
    %2690 = vmatpush1.bf16.msra.mxu0 %v1909
    %2691 = vmatprep.subr.bf16.mxu0 %v1914
    %2692 = vmatpush1.bf16.msra.mxu0 %v1913
    %2693 = vmatprep.subr.bf16.mxu0 %v1918
    %2694 = vmatpush1.bf16.msra.mxu0 %v1917
    %2695 = vmatprep.subr.bf16.mxu0 %v1922
    %2696 = vmatpush1.bf16.msra.mxu0 %v1921
    %2697 = vmatprep.subr.bf16.mxu0 %v1926
    %2698 = vmatpush1.bf16.msra.mxu0 %v1925
    %2699 = vmatprep.subr.bf16.mxu0 %v1930
    %2700 = vmatpush1.bf16.msra.mxu0 %v1929
    %2701 = vmatprep.subr.bf16.mxu0 %v1934
    %2702 = vmatpush1.bf16.msra.mxu0 %v1933
    %2703 = vmatprep.subr.bf16.mxu0 %v1938
    %2704 = vmatpush1.bf16.msra.mxu0 %v1937
    %2705 = vmatprep.subr.bf16.mxu0 %v1942
    %2706 = vmatpush1.bf16.msra.mxu0 %v1941
    %2707 = vmatprep.subr.bf16.mxu0 %v1946
    %2708 = vmatpush1.bf16.msra.mxu0 %v1945
    %2709 = vmatprep.subr.bf16.mxu0 %v1950
    %2710 = vmatpush1.bf16.msra.mxu0 %v1949
    %2711 = vmatprep.mubr.bf16.mxu0 %v390
    %2712 = vmatmul.mubr.bf16.gmra.mrb[0].mxu0 %v389
    %v2713 = vpop.f32.mrb[0].mxu0
    %v2714 = vadd.f32 %v2671, %v2713
    %v2715 = vpop.f32.mrb[0].mxu0
    %v2716 = vadd.f32 %v2673, %v2715
    %v2717 = vpop.f32.mrb[0].mxu0
    %v2718 = vadd.f32 %v2675, %v2717
    %v2719 = vpop.f32.mrb[0].mxu0
    %v2720 = vadd.f32 %v2677, %v2719
    %2721 = vdwg.mxu0
    %2722 = vmatprep.subr.bf16.mxu0 %v1954
    %2723 = vmatpush1.bf16.msra.mxu0 %v1953
    %2724 = vmatprep.subr.bf16.mxu0 %v1958
    %2725 = vmatpush1.bf16.msra.mxu0 %v1957
    %2726 = vmatprep.subr.bf16.mxu0 %v1962
    %2727 = vmatpush1.bf16.msra.mxu0 %v1961
    %2728 = vmatprep.subr.bf16.mxu0 %v1966
    %2729 = vmatpush1.bf16.msra.mxu0 %v1965
    %2730 = vmatprep.subr.bf16.mxu0 %v1970
    %2731 = vmatpush1.bf16.msra.mxu0 %v1969
    %2732 = vmatprep.subr.bf16.mxu0 %v1974
    %2733 = vmatpush1.bf16.msra.mxu0 %v1973
    %2734 = vmatprep.subr.bf16.mxu0 %v1978
    %2735 = vmatpush1.bf16.msra.mxu0 %v1977
    %2736 = vmatprep.subr.bf16.mxu0 %v1982
    %2737 = vmatpush1.bf16.msra.mxu0 %v1981
    %2738 = vmatprep.subr.bf16.mxu0 %v1986
    %2739 = vmatpush1.bf16.msra.mxu0 %v1985
    %2740 = vmatprep.subr.bf16.mxu0 %v1990
    %2741 = vmatpush1.bf16.msra.mxu0 %v1989
    %2742 = vmatprep.subr.bf16.mxu0 %v1994
    %2743 = vmatpush1.bf16.msra.mxu0 %v1993
    %2744 = vmatprep.subr.bf16.mxu0 %v1998
    %2745 = vmatpush1.bf16.msra.mxu0 %v1997
    %2746 = vmatprep.subr.bf16.mxu0 %v2002
    %2747 = vmatpush1.bf16.msra.mxu0 %v2001
    %2748 = vmatprep.subr.bf16.mxu0 %v2006
    %2749 = vmatpush1.bf16.msra.mxu0 %v2005
    %2750 = vmatprep.subr.bf16.mxu0 %v2010
    %2751 = vmatpush1.bf16.msra.mxu0 %v2009
    %2752 = vmatprep.subr.bf16.mxu0 %v2014
    %2753 = vmatpush1.bf16.msra.mxu0 %v2013
    %2754 = vmatprep.mubr.bf16.mxu0 %v392
    %2755 = vmatmul.mubr.bf16.gmra.mrb[0].mxu0 %v391
    %v2756 = vpop.f32.mrb[0].mxu0
    %v2757 = vadd.f32 %v2714, %v2756
    %v2758 = vpop.f32.mrb[0].mxu0
    %v2759 = vadd.f32 %v2716, %v2758
    %v2760 = vpop.f32.mrb[0].mxu0
    %v2761 = vadd.f32 %v2718, %v2760
    %v2762 = vpop.f32.mrb[0].mxu0
    %v2763 = vadd.f32 %v2720, %v2762
    %2764 = vdwg.mxu0
    %vm2765 = vcmp.gt.f32.partialorder %v2542, 0.0
    %vm2766 = vcmp.gt.f32.partialorder %v2544, 0.0
    %vm2767 = vcmp.gt.f32.partialorder %v2757, 0.0
    %vm2768 = vcmp.gt.f32.partialorder %v2759, 0.0
    %vm2769 = vcmp.gt.f32.partialorder %v2546, 0.0
    %vm2770 = vcmp.gt.f32.partialorder %v2548, 0.0
    %vm2771 = vcmp.gt.f32.partialorder %v2761, 0.0
    %vm2772 = vcmp.gt.f32.partialorder %v2763, 0.0
    %v2773 = vmul.f32 %v2542, 0.01
    %v2774 = vmul.f32 %v2544, 0.01
    %v2775 = vmul.f32 %v2757, 0.01
    %v2776 = vmul.f32 %v2759, 0.01
    %v2777 = vmul.f32 %v2546, 0.01
    %v2778 = vmul.f32 %v2548, 0.01
    %v2779 = vmul.f32 %v2761, 0.01
    %v2780 = vmul.f32 %v2763, 0.01
    %v2781 = vsel %vm2765, %v2542, %v2773
    %v2782 = vsel %vm2766, %v2544, %v2774
    %v2783 = vsel %vm2767, %v2757, %v2775
    %v2784 = vsel %vm2768, %v2759, %v2776
    %v2785 = vsel %vm2769, %v2546, %v2777
    %v2786 = vsel %vm2770, %v2548, %v2778
    %v2787 = vsel %vm2771, %v2761, %v2779
    %v2788 = vsel %vm2772, %v2763, %v2780
    %v2789 = vpack.c.bf16 %v2785, %v2781
    %v2790 = vpack.c.bf16 %v2786, %v2782
    %v2791 = vpack.c.bf16 %v2787, %v2783
    %v2792 = vpack.c.bf16 %v2788, %v2784
    %v2793 = vld [vmem:[#allocation8] sm:$0xff]
    %v2794 = vld [vmem:[#allocation8 + $0x8] sm:$0xff]
    %v2795 = vld [vmem:[#allocation8 + $0x10] sm:$0xff]
    %v2796 = vld [vmem:[#allocation8 + $0x18] sm:$0xff]
    %v2797 = vld [vmem:[#allocation8 + $0x20] sm:$0xff]
    %v2798 = vld [vmem:[#allocation8 + $0x28] sm:$0xff]
    %v2799 = vld [vmem:[#allocation8 + $0x30] sm:$0xff]
    %v2800 = vld [vmem:[#allocation8 + $0x38] sm:$0xff]
    %v2801 = vld [vmem:[#allocation8 + $0x40] sm:$0xff]
    %v2802 = vld [vmem:[#allocation8 + $0x48] sm:$0xff]
    %v2803 = vld [vmem:[#allocation8 + $0x50] sm:$0xff]
    %v2804 = vld [vmem:[#allocation8 + $0x58] sm:$0xff]
    %v2805 = vld [vmem:[#allocation8 + $0x60] sm:$0xff]
    %v2806 = vld [vmem:[#allocation8 + $0x68] sm:$0xff]
    %v2807 = vld [vmem:[#allocation8 + $0x70] sm:$0xff]
    %v2808 = vld [vmem:[#allocation8 + $0x78] sm:$0xff]
    %v2809 = vld [vmem:[#allocation8 + $0x80] sm:$0xff]
    %v2810 = vld [vmem:[#allocation8 + $0x88] sm:$0xff]
    %v2811 = vld [vmem:[#allocation8 + $0x90] sm:$0xff]
    %v2812 = vld [vmem:[#allocation8 + $0x98] sm:$0xff]
    %v2813 = vld [vmem:[#allocation8 + $0xa0] sm:$0xff]
    %v2814 = vld [vmem:[#allocation8 + $0xa8] sm:$0xff]
    %v2815 = vld [vmem:[#allocation8 + $0xb0] sm:$0xff]
    %v2816 = vld [vmem:[#allocation8 + $0xb8] sm:$0xff]
    %v2817 = vld [vmem:[#allocation8 + $0xc0] sm:$0xff]
    %v2818 = vld [vmem:[#allocation8 + $0xc8] sm:$0xff]
    %v2819 = vld [vmem:[#allocation8 + $0xd0] sm:$0xff]
    %v2820 = vld [vmem:[#allocation8 + $0xd8] sm:$0xff]
    %v2821 = vld [vmem:[#allocation8 + $0xe0] sm:$0xff]
    %v2822 = vld [vmem:[#allocation8 + $0xe8] sm:$0xff]
    %v2823 = vld [vmem:[#allocation8 + $0xf0] sm:$0xff]
    %v2824 = vld [vmem:[#allocation8 + $0xf8] sm:$0xff]
    %v2825 = vld [vmem:[#allocation8 + $0x100] sm:$0xff]
    %v2826 = vld [vmem:[#allocation8 + $0x108] sm:$0xff]
    %v2827 = vld [vmem:[#allocation8 + $0x110] sm:$0xff]
    %v2828 = vld [vmem:[#allocation8 + $0x118] sm:$0xff]
    %v2829 = vld [vmem:[#allocation8 + $0x120] sm:$0xff]
    %v2830 = vld [vmem:[#allocation8 + $0x128] sm:$0xff]
    %v2831 = vld [vmem:[#allocation8 + $0x130] sm:$0xff]
    %v2832 = vld [vmem:[#allocation8 + $0x138] sm:$0xff]
    %v2833 = vld [vmem:[#allocation8 + $0x140] sm:$0xff]
    %v2834 = vld [vmem:[#allocation8 + $0x148] sm:$0xff]
    %v2835 = vld [vmem:[#allocation8 + $0x150] sm:$0xff]
    %v2836 = vld [vmem:[#allocation8 + $0x158] sm:$0xff]
    %v2837 = vld [vmem:[#allocation8 + $0x160] sm:$0xff]
    %v2838 = vld [vmem:[#allocation8 + $0x168] sm:$0xff]
    %v2839 = vld [vmem:[#allocation8 + $0x170] sm:$0xff]
    %v2840 = vld [vmem:[#allocation8 + $0x178] sm:$0xff]
    %v2841 = vld [vmem:[#allocation8 + $0x180] sm:$0xff]
    %v2842 = vld [vmem:[#allocation8 + $0x188] sm:$0xff]
    %v2843 = vld [vmem:[#allocation8 + $0x190] sm:$0xff]
    %v2844 = vld [vmem:[#allocation8 + $0x198] sm:$0xff]
    %v2845 = vld [vmem:[#allocation8 + $0x1a0] sm:$0xff]
    %v2846 = vld [vmem:[#allocation8 + $0x1a8] sm:$0xff]
    %v2847 = vld [vmem:[#allocation8 + $0x1b0] sm:$0xff]
    %v2848 = vld [vmem:[#allocation8 + $0x1b8] sm:$0xff]
    %v2849 = vld [vmem:[#allocation8 + $0x1c0] sm:$0xff]
    %v2850 = vld [vmem:[#allocation8 + $0x1c8] sm:$0xff]
    %v2851 = vld [vmem:[#allocation8 + $0x1d0] sm:$0xff]
    %v2852 = vld [vmem:[#allocation8 + $0x1d8] sm:$0xff]
    %v2853 = vld [vmem:[#allocation8 + $0x1e0] sm:$0xff]
    %v2854 = vld [vmem:[#allocation8 + $0x1e8] sm:$0xff]
    %v2855 = vld [vmem:[#allocation8 + $0x1f0] sm:$0xff]
    %v2856 = vld [vmem:[#allocation8 + $0x1f8] sm:$0xff]
    %v2857 = vld [vmem:[#allocation8 + $0x200] sm:$0xff]
    %v2858 = vld [vmem:[#allocation8 + $0x208] sm:$0xff]
    %v2859 = vld [vmem:[#allocation8 + $0x210] sm:$0xff]
    %v2860 = vld [vmem:[#allocation8 + $0x218] sm:$0xff]
    %v2861 = vld [vmem:[#allocation8 + $0x220] sm:$0xff]
    %v2862 = vld [vmem:[#allocation8 + $0x228] sm:$0xff]
    %v2863 = vld [vmem:[#allocation8 + $0x230] sm:$0xff]
    %v2864 = vld [vmem:[#allocation8 + $0x238] sm:$0xff]
    %v2865 = vld [vmem:[#allocation8 + $0x240] sm:$0xff]
    %v2866 = vld [vmem:[#allocation8 + $0x248] sm:$0xff]
    %v2867 = vld [vmem:[#allocation8 + $0x250] sm:$0xff]
    %v2868 = vld [vmem:[#allocation8 + $0x258] sm:$0xff]
    %v2869 = vld [vmem:[#allocation8 + $0x260] sm:$0xff]
    %v2870 = vld [vmem:[#allocation8 + $0x268] sm:$0xff]
    %v2871 = vld [vmem:[#allocation8 + $0x270] sm:$0xff]
    %v2872 = vld [vmem:[#allocation8 + $0x278] sm:$0xff]
    %v2873 = vld [vmem:[#allocation8 + $0x280] sm:$0xff]
    %v2874 = vld [vmem:[#allocation8 + $0x288] sm:$0xff]
    %v2875 = vld [vmem:[#allocation8 + $0x290] sm:$0xff]
    %v2876 = vld [vmem:[#allocation8 + $0x298] sm:$0xff]
    %v2877 = vld [vmem:[#allocation8 + $0x2a0] sm:$0xff]
    %v2878 = vld [vmem:[#allocation8 + $0x2a8] sm:$0xff]
    %v2879 = vld [vmem:[#allocation8 + $0x2b0] sm:$0xff]
    %v2880 = vld [vmem:[#allocation8 + $0x2b8] sm:$0xff]
    %v2881 = vld [vmem:[#allocation8 + $0x2c0] sm:$0xff]
    %v2882 = vld [vmem:[#allocation8 + $0x2c8] sm:$0xff]
    %v2883 = vld [vmem:[#allocation8 + $0x2d0] sm:$0xff]
    %v2884 = vld [vmem:[#allocation8 + $0x2d8] sm:$0xff]
    %v2885 = vld [vmem:[#allocation8 + $0x2e0] sm:$0xff]
    %v2886 = vld [vmem:[#allocation8 + $0x2e8] sm:$0xff]
    %v2887 = vld [vmem:[#allocation8 + $0x2f0] sm:$0xff]
    %v2888 = vld [vmem:[#allocation8 + $0x2f8] sm:$0xff]
    %v2889 = vld [vmem:[#allocation8 + $0x300] sm:$0xff]
    %v2890 = vld [vmem:[#allocation8 + $0x308] sm:$0xff]
    %v2891 = vld [vmem:[#allocation8 + $0x310] sm:$0xff]
    %v2892 = vld [vmem:[#allocation8 + $0x318] sm:$0xff]
    %v2893 = vld [vmem:[#allocation8 + $0x320] sm:$0xff]
    %v2894 = vld [vmem:[#allocation8 + $0x328] sm:$0xff]
    %v2895 = vld [vmem:[#allocation8 + $0x330] sm:$0xff]
    %v2896 = vld [vmem:[#allocation8 + $0x338] sm:$0xff]
    %v2897 = vld [vmem:[#allocation8 + $0x340] sm:$0xff]
    %v2898 = vld [vmem:[#allocation8 + $0x348] sm:$0xff]
    %v2899 = vld [vmem:[#allocation8 + $0x350] sm:$0xff]
    %v2900 = vld [vmem:[#allocation8 + $0x358] sm:$0xff]
    %v2901 = vld [vmem:[#allocation8 + $0x360] sm:$0xff]
    %v2902 = vld [vmem:[#allocation8 + $0x368] sm:$0xff]
    %v2903 = vld [vmem:[#allocation8 + $0x370] sm:$0xff]
    %v2904 = vld [vmem:[#allocation8 + $0x378] sm:$0xff]
    %v2905 = vld [vmem:[#allocation8 + $0x380] sm:$0xff]
    %v2906 = vld [vmem:[#allocation8 + $0x388] sm:$0xff]
    %v2907 = vld [vmem:[#allocation8 + $0x390] sm:$0xff]
    %v2908 = vld [vmem:[#allocation8 + $0x398] sm:$0xff]
    %v2909 = vld [vmem:[#allocation8 + $0x3a0] sm:$0xff]
    %v2910 = vld [vmem:[#allocation8 + $0x3a8] sm:$0xff]
    %v2911 = vld [vmem:[#allocation8 + $0x3b0] sm:$0xff]
    %v2912 = vld [vmem:[#allocation8 + $0x3b8] sm:$0xff]
    %v2913 = vld [vmem:[#allocation8 + $0x3c0] sm:$0xff]
    %v2914 = vld [vmem:[#allocation8 + $0x3c8] sm:$0xff]
    %v2915 = vld [vmem:[#allocation8 + $0x3d0] sm:$0xff]
    %v2916 = vld [vmem:[#allocation8 + $0x3d8] sm:$0xff]
    %v2917 = vld [vmem:[#allocation8 + $0x3e0] sm:$0xff]
    %v2918 = vld [vmem:[#allocation8 + $0x3e8] sm:$0xff]
    %v2919 = vld [vmem:[#allocation8 + $0x3f0] sm:$0xff]
    %v2920 = vld [vmem:[#allocation8 + $0x3f8] sm:$0xff]
    %v2921 = vld [vmem:[#allocation10] sm:$0xf]
    %v2923 = vlaneseq
    %v2924 = vshrl.u32 %v2923, 7
    %v2925 = vsub.s32 0, %v2924
    %v2926 = vrot.slane %v2921, %v2925
    %v2927 = vlaneseq
    %v2928 = vshrl.u32 %v2927, 7
    %v2929 = vsub.s32 1, %v2928
    %v2930 = vrot.slane %v2921, %v2929
    %v2931 = vlaneseq
    %v2932 = vshrl.u32 %v2931, 7
    %v2933 = vsub.s32 2, %v2932
    %v2934 = vrot.slane %v2921, %v2933
    %v2935 = vlaneseq
    %v2936 = vshrl.u32 %v2935, 7
    %v2937 = vsub.s32 3, %v2936
    %v2938 = vrot.slane %v2921, %v2937
    %v3071 = vunpack.c.l.b16 %v2793
    %v3072 = vunpack.c.h.b16 %v2793
    %v3073 = vunpack.c.l.b16 %v2794
    %v3074 = vunpack.c.h.b16 %v2794
    %v3075 = vunpack.c.l.b16 %v2795
    %v3076 = vunpack.c.h.b16 %v2795
    %v3077 = vunpack.c.l.b16 %v2796
    %v3078 = vunpack.c.h.b16 %v2796
    %v3079 = vunpack.c.l.b16 %v2797
    %v3080 = vunpack.c.h.b16 %v2797
    %v3081 = vunpack.c.l.b16 %v2798
    %v3082 = vunpack.c.h.b16 %v2798
    %v3083 = vunpack.c.l.b16 %v2799
    %v3084 = vunpack.c.h.b16 %v2799
    %v3085 = vunpack.c.l.b16 %v2800
    %v3086 = vunpack.c.h.b16 %v2800
    %v3087 = vunpack.c.l.b16 %v2801
    %v3088 = vunpack.c.h.b16 %v2801
    %v3089 = vunpack.c.l.b16 %v2802
    %v3090 = vunpack.c.h.b16 %v2802
    %v3091 = vunpack.c.l.b16 %v2803
    %v3092 = vunpack.c.h.b16 %v2803
    %v3093 = vunpack.c.l.b16 %v2804
    %v3094 = vunpack.c.h.b16 %v2804
    %v3095 = vunpack.c.l.b16 %v2805
    %v3096 = vunpack.c.h.b16 %v2805
    %v3097 = vunpack.c.l.b16 %v2806
    %v3098 = vunpack.c.h.b16 %v2806
    %v3099 = vunpack.c.l.b16 %v2807
    %v3100 = vunpack.c.h.b16 %v2807
    %v3101 = vunpack.c.l.b16 %v2808
    %v3102 = vunpack.c.h.b16 %v2808
    %v3103 = vunpack.c.l.b16 %v2809
    %v3104 = vunpack.c.h.b16 %v2809
    %v3105 = vunpack.c.l.b16 %v2810
    %v3106 = vunpack.c.h.b16 %v2810
    %v3107 = vunpack.c.l.b16 %v2811
    %v3108 = vunpack.c.h.b16 %v2811
    %v3109 = vunpack.c.l.b16 %v2812
    %v3110 = vunpack.c.h.b16 %v2812
    %v3111 = vunpack.c.l.b16 %v2813
    %v3112 = vunpack.c.h.b16 %v2813
    %v3113 = vunpack.c.l.b16 %v2814
    %v3114 = vunpack.c.h.b16 %v2814
    %v3115 = vunpack.c.l.b16 %v2815
    %v3116 = vunpack.c.h.b16 %v2815
    %v3117 = vunpack.c.l.b16 %v2816
    %v3118 = vunpack.c.h.b16 %v2816
    %v3119 = vunpack.c.l.b16 %v2817
    %v3120 = vunpack.c.h.b16 %v2817
    %v3121 = vunpack.c.l.b16 %v2818
    %v3122 = vunpack.c.h.b16 %v2818
    %v3123 = vunpack.c.l.b16 %v2819
    %v3124 = vunpack.c.h.b16 %v2819
    %v3125 = vunpack.c.l.b16 %v2820
    %v3126 = vunpack.c.h.b16 %v2820
    %v3127 = vunpack.c.l.b16 %v2821
    %v3128 = vunpack.c.h.b16 %v2821
    %v3129 = vunpack.c.l.b16 %v2822
    %v3130 = vunpack.c.h.b16 %v2822
    %v3131 = vunpack.c.l.b16 %v2823
    %v3132 = vunpack.c.h.b16 %v2823
    %v3133 = vunpack.c.l.b16 %v2824
    %v3134 = vunpack.c.h.b16 %v2824
    %v3135 = vunpack.c.l.b16 %v2825
    %v3136 = vunpack.c.h.b16 %v2825
    %v3137 = vunpack.c.l.b16 %v2826
    %v3138 = vunpack.c.h.b16 %v2826
    %v3139 = vunpack.c.l.b16 %v2827
    %v3140 = vunpack.c.h.b16 %v2827
    %v3141 = vunpack.c.l.b16 %v2828
    %v3142 = vunpack.c.h.b16 %v2828
    %v3143 = vunpack.c.l.b16 %v2829
    %v3144 = vunpack.c.h.b16 %v2829
    %v3145 = vunpack.c.l.b16 %v2830
    %v3146 = vunpack.c.h.b16 %v2830
    %v3147 = vunpack.c.l.b16 %v2831
    %v3148 = vunpack.c.h.b16 %v2831
    %v3149 = vunpack.c.l.b16 %v2832
    %v3150 = vunpack.c.h.b16 %v2832
    %v3151 = vunpack.c.l.b16 %v2833
    %v3152 = vunpack.c.h.b16 %v2833
    %v3153 = vunpack.c.l.b16 %v2834
    %v3154 = vunpack.c.h.b16 %v2834
    %v3155 = vunpack.c.l.b16 %v2835
    %v3156 = vunpack.c.h.b16 %v2835
    %v3157 = vunpack.c.l.b16 %v2836
    %v3158 = vunpack.c.h.b16 %v2836
    %v3159 = vunpack.c.l.b16 %v2837
    %v3160 = vunpack.c.h.b16 %v2837
    %v3161 = vunpack.c.l.b16 %v2838
    %v3162 = vunpack.c.h.b16 %v2838
    %v3163 = vunpack.c.l.b16 %v2839
    %v3164 = vunpack.c.h.b16 %v2839
    %v3165 = vunpack.c.l.b16 %v2840
    %v3166 = vunpack.c.h.b16 %v2840
    %v3167 = vunpack.c.l.b16 %v2841
    %v3168 = vunpack.c.h.b16 %v2841
    %v3169 = vunpack.c.l.b16 %v2842
    %v3170 = vunpack.c.h.b16 %v2842
    %v3171 = vunpack.c.l.b16 %v2843
    %v3172 = vunpack.c.h.b16 %v2843
    %v3173 = vunpack.c.l.b16 %v2844
    %v3174 = vunpack.c.h.b16 %v2844
    %v3175 = vunpack.c.l.b16 %v2845
    %v3176 = vunpack.c.h.b16 %v2845
    %v3177 = vunpack.c.l.b16 %v2846
    %v3178 = vunpack.c.h.b16 %v2846
    %v3179 = vunpack.c.l.b16 %v2847
    %v3180 = vunpack.c.h.b16 %v2847
    %v3181 = vunpack.c.l.b16 %v2848
    %v3182 = vunpack.c.h.b16 %v2848
    %v3183 = vunpack.c.l.b16 %v2849
    %v3184 = vunpack.c.h.b16 %v2849
    %v3185 = vunpack.c.l.b16 %v2850
    %v3186 = vunpack.c.h.b16 %v2850
    %v3187 = vunpack.c.l.b16 %v2851
    %v3188 = vunpack.c.h.b16 %v2851
    %v3189 = vunpack.c.l.b16 %v2852
    %v3190 = vunpack.c.h.b16 %v2852
    %v3191 = vunpack.c.l.b16 %v2853
    %v3192 = vunpack.c.h.b16 %v2853
    %v3193 = vunpack.c.l.b16 %v2854
    %v3194 = vunpack.c.h.b16 %v2854
    %v3195 = vunpack.c.l.b16 %v2855
    %v3196 = vunpack.c.h.b16 %v2855
    %v3197 = vunpack.c.l.b16 %v2856
    %v3198 = vunpack.c.h.b16 %v2856
    %v3199 = vunpack.c.l.b16 %v2857
    %v3200 = vunpack.c.h.b16 %v2857
    %v3201 = vunpack.c.l.b16 %v2858
    %v3202 = vunpack.c.h.b16 %v2858
    %v3203 = vunpack.c.l.b16 %v2859
    %v3204 = vunpack.c.h.b16 %v2859
    %v3205 = vunpack.c.l.b16 %v2860
    %v3206 = vunpack.c.h.b16 %v2860
    %v3207 = vunpack.c.l.b16 %v2861
    %v3208 = vunpack.c.h.b16 %v2861
    %v3209 = vunpack.c.l.b16 %v2862
    %v3210 = vunpack.c.h.b16 %v2862
    %v3211 = vunpack.c.l.b16 %v2863
    %v3212 = vunpack.c.h.b16 %v2863
    %v3213 = vunpack.c.l.b16 %v2864
    %v3214 = vunpack.c.h.b16 %v2864
    %v3215 = vunpack.c.l.b16 %v2865
    %v3216 = vunpack.c.h.b16 %v2865
    %v3217 = vunpack.c.l.b16 %v2866
    %v3218 = vunpack.c.h.b16 %v2866
    %v3219 = vunpack.c.l.b16 %v2867
    %v3220 = vunpack.c.h.b16 %v2867
    %v3221 = vunpack.c.l.b16 %v2868
    %v3222 = vunpack.c.h.b16 %v2868
    %v3223 = vunpack.c.l.b16 %v2869
    %v3224 = vunpack.c.h.b16 %v2869
    %v3225 = vunpack.c.l.b16 %v2870
    %v3226 = vunpack.c.h.b16 %v2870
    %v3227 = vunpack.c.l.b16 %v2871
    %v3228 = vunpack.c.h.b16 %v2871
    %v3229 = vunpack.c.l.b16 %v2872
    %v3230 = vunpack.c.h.b16 %v2872
    %v3231 = vunpack.c.l.b16 %v2873
    %v3232 = vunpack.c.h.b16 %v2873
    %v3233 = vunpack.c.l.b16 %v2874
    %v3234 = vunpack.c.h.b16 %v2874
    %v3235 = vunpack.c.l.b16 %v2875
    %v3236 = vunpack.c.h.b16 %v2875
    %v3237 = vunpack.c.l.b16 %v2876
    %v3238 = vunpack.c.h.b16 %v2876
    %v3239 = vunpack.c.l.b16 %v2877
    %v3240 = vunpack.c.h.b16 %v2877
    %v3241 = vunpack.c.l.b16 %v2878
    %v3242 = vunpack.c.h.b16 %v2878
    %v3243 = vunpack.c.l.b16 %v2879
    %v3244 = vunpack.c.h.b16 %v2879
    %v3245 = vunpack.c.l.b16 %v2880
    %v3246 = vunpack.c.h.b16 %v2880
    %v3247 = vunpack.c.l.b16 %v2881
    %v3248 = vunpack.c.h.b16 %v2881
    %v3249 = vunpack.c.l.b16 %v2882
    %v3250 = vunpack.c.h.b16 %v2882
    %v3251 = vunpack.c.l.b16 %v2883
    %v3252 = vunpack.c.h.b16 %v2883
    %v3253 = vunpack.c.l.b16 %v2884
    %v3254 = vunpack.c.h.b16 %v2884
    %v3255 = vunpack.c.l.b16 %v2885
    %v3256 = vunpack.c.h.b16 %v2885
    %v3257 = vunpack.c.l.b16 %v2886
    %v3258 = vunpack.c.h.b16 %v2886
    %v3259 = vunpack.c.l.b16 %v2887
    %v3260 = vunpack.c.h.b16 %v2887
    %v3261 = vunpack.c.l.b16 %v2888
    %v3262 = vunpack.c.h.b16 %v2888
    %v3263 = vunpack.c.l.b16 %v2889
    %v3264 = vunpack.c.h.b16 %v2889
    %v3265 = vunpack.c.l.b16 %v2890
    %v3266 = vunpack.c.h.b16 %v2890
    %v3267 = vunpack.c.l.b16 %v2891
    %v3268 = vunpack.c.h.b16 %v2891
    %v3269 = vunpack.c.l.b16 %v2892
    %v3270 = vunpack.c.h.b16 %v2892
    %v3271 = vunpack.c.l.b16 %v2893
    %v3272 = vunpack.c.h.b16 %v2893
    %v3273 = vunpack.c.l.b16 %v2894
    %v3274 = vunpack.c.h.b16 %v2894
    %v3275 = vunpack.c.l.b16 %v2895
    %v3276 = vunpack.c.h.b16 %v2895
    %v3277 = vunpack.c.l.b16 %v2896
    %v3278 = vunpack.c.h.b16 %v2896
    %v3279 = vunpack.c.l.b16 %v2897
    %v3280 = vunpack.c.h.b16 %v2897
    %v3281 = vunpack.c.l.b16 %v2898
    %v3282 = vunpack.c.h.b16 %v2898
    %v3283 = vunpack.c.l.b16 %v2899
    %v3284 = vunpack.c.h.b16 %v2899
    %v3285 = vunpack.c.l.b16 %v2900
    %v3286 = vunpack.c.h.b16 %v2900
    %v3287 = vunpack.c.l.b16 %v2901
    %v3288 = vunpack.c.h.b16 %v2901
    %v3289 = vunpack.c.l.b16 %v2902
    %v3290 = vunpack.c.h.b16 %v2902
    %v3291 = vunpack.c.l.b16 %v2903
    %v3292 = vunpack.c.h.b16 %v2903
    %v3293 = vunpack.c.l.b16 %v2904
    %v3294 = vunpack.c.h.b16 %v2904
    %v3295 = vunpack.c.l.b16 %v2905
    %v3296 = vunpack.c.h.b16 %v2905
    %v3297 = vunpack.c.l.b16 %v2906
    %v3298 = vunpack.c.h.b16 %v2906
    %v3299 = vunpack.c.l.b16 %v2907
    %v3300 = vunpack.c.h.b16 %v2907
    %v3301 = vunpack.c.l.b16 %v2908
    %v3302 = vunpack.c.h.b16 %v2908
    %v3303 = vunpack.c.l.b16 %v2909
    %v3304 = vunpack.c.h.b16 %v2909
    %v3305 = vunpack.c.l.b16 %v2910
    %v3306 = vunpack.c.h.b16 %v2910
    %v3307 = vunpack.c.l.b16 %v2911
    %v3308 = vunpack.c.h.b16 %v2911
    %v3309 = vunpack.c.l.b16 %v2912
    %v3310 = vunpack.c.h.b16 %v2912
    %v3311 = vunpack.c.l.b16 %v2913
    %v3312 = vunpack.c.h.b16 %v2913
    %v3313 = vunpack.c.l.b16 %v2914
    %v3314 = vunpack.c.h.b16 %v2914
    %v3315 = vunpack.c.l.b16 %v2915
    %v3316 = vunpack.c.h.b16 %v2915
    %v3317 = vunpack.c.l.b16 %v2916
    %v3318 = vunpack.c.h.b16 %v2916
    %v3319 = vunpack.c.l.b16 %v2917
    %v3320 = vunpack.c.h.b16 %v2917
    %v3321 = vunpack.c.l.b16 %v2918
    %v3322 = vunpack.c.h.b16 %v2918
    %v3323 = vunpack.c.l.b16 %v2919
    %v3324 = vunpack.c.h.b16 %v2919
    %v3325 = vunpack.c.l.b16 %v2920
    %v3326 = vunpack.c.h.b16 %v2920
    %v3327 = vpack.c.b16 %v3075, %v3071
    %v3328 = vpack.c.b16 %v3076, %v3072
    %v3329 = vpack.c.b16 %v3077, %v3073
    %v3330 = vpack.c.b16 %v3078, %v3074
    %v3331 = vpack.c.b16 %v3083, %v3079
    %v3332 = vpack.c.b16 %v3084, %v3080
    %v3333 = vpack.c.b16 %v3085, %v3081
    %v3334 = vpack.c.b16 %v3086, %v3082
    %v3335 = vpack.c.b16 %v3091, %v3087
    %v3336 = vpack.c.b16 %v3092, %v3088
    %v3337 = vpack.c.b16 %v3093, %v3089
    %v3338 = vpack.c.b16 %v3094, %v3090
    %v3339 = vpack.c.b16 %v3099, %v3095
    %v3340 = vpack.c.b16 %v3100, %v3096
    %v3341 = vpack.c.b16 %v3101, %v3097
    %v3342 = vpack.c.b16 %v3102, %v3098
    %v3343 = vpack.c.b16 %v3107, %v3103
    %v3344 = vpack.c.b16 %v3108, %v3104
    %v3345 = vpack.c.b16 %v3109, %v3105
    %v3346 = vpack.c.b16 %v3110, %v3106
    %v3347 = vpack.c.b16 %v3115, %v3111
    %v3348 = vpack.c.b16 %v3116, %v3112
    %v3349 = vpack.c.b16 %v3117, %v3113
    %v3350 = vpack.c.b16 %v3118, %v3114
    %v3351 = vpack.c.b16 %v3123, %v3119
    %v3352 = vpack.c.b16 %v3124, %v3120
    %v3353 = vpack.c.b16 %v3125, %v3121
    %v3354 = vpack.c.b16 %v3126, %v3122
    %v3355 = vpack.c.b16 %v3131, %v3127
    %v3356 = vpack.c.b16 %v3132, %v3128
    %v3357 = vpack.c.b16 %v3133, %v3129
    %v3358 = vpack.c.b16 %v3134, %v3130
    %v3359 = vpack.c.b16 %v3139, %v3135
    %v3360 = vpack.c.b16 %v3140, %v3136
    %v3361 = vpack.c.b16 %v3141, %v3137
    %v3362 = vpack.c.b16 %v3142, %v3138
    %v3363 = vpack.c.b16 %v3147, %v3143
    %v3364 = vpack.c.b16 %v3148, %v3144
    %v3365 = vpack.c.b16 %v3149, %v3145
    %v3366 = vpack.c.b16 %v3150, %v3146
    %v3367 = vpack.c.b16 %v3155, %v3151
    %v3368 = vpack.c.b16 %v3156, %v3152
    %v3369 = vpack.c.b16 %v3157, %v3153
    %v3370 = vpack.c.b16 %v3158, %v3154
    %v3371 = vpack.c.b16 %v3163, %v3159
    %v3372 = vpack.c.b16 %v3164, %v3160
    %v3373 = vpack.c.b16 %v3165, %v3161
    %v3374 = vpack.c.b16 %v3166, %v3162
    %v3375 = vpack.c.b16 %v3171, %v3167
    %v3376 = vpack.c.b16 %v3172, %v3168
    %v3377 = vpack.c.b16 %v3173, %v3169
    %v3378 = vpack.c.b16 %v3174, %v3170
    %v3379 = vpack.c.b16 %v3179, %v3175
    %v3380 = vpack.c.b16 %v3180, %v3176
    %v3381 = vpack.c.b16 %v3181, %v3177
    %v3382 = vpack.c.b16 %v3182, %v3178
    %v3383 = vpack.c.b16 %v3187, %v3183
    %v3384 = vpack.c.b16 %v3188, %v3184
    %v3385 = vpack.c.b16 %v3189, %v3185
    %v3386 = vpack.c.b16 %v3190, %v3186
    %v3387 = vpack.c.b16 %v3195, %v3191
    %v3388 = vpack.c.b16 %v3196, %v3192
    %v3389 = vpack.c.b16 %v3197, %v3193
    %v3390 = vpack.c.b16 %v3198, %v3194
    %v3391 = vpack.c.b16 %v3203, %v3199
    %v3392 = vpack.c.b16 %v3204, %v3200
    %v3393 = vpack.c.b16 %v3205, %v3201
    %v3394 = vpack.c.b16 %v3206, %v3202
    %v3395 = vpack.c.b16 %v3211, %v3207
    %v3396 = vpack.c.b16 %v3212, %v3208
    %v3397 = vpack.c.b16 %v3213, %v3209
    %v3398 = vpack.c.b16 %v3214, %v3210
    %v3399 = vpack.c.b16 %v3219, %v3215
    %v3400 = vpack.c.b16 %v3220, %v3216
    %v3401 = vpack.c.b16 %v3221, %v3217
    %v3402 = vpack.c.b16 %v3222, %v3218
    %v3403 = vpack.c.b16 %v3227, %v3223
    %v3404 = vpack.c.b16 %v3228, %v3224
    %v3405 = vpack.c.b16 %v3229, %v3225
    %v3406 = vpack.c.b16 %v3230, %v3226
    %v3407 = vpack.c.b16 %v3235, %v3231
    %v3408 = vpack.c.b16 %v3236, %v3232
    %v3409 = vpack.c.b16 %v3237, %v3233
    %v3410 = vpack.c.b16 %v3238, %v3234
    %v3411 = vpack.c.b16 %v3243, %v3239
    %v3412 = vpack.c.b16 %v3244, %v3240
    %v3413 = vpack.c.b16 %v3245, %v3241
    %v3414 = vpack.c.b16 %v3246, %v3242
    %v3415 = vpack.c.b16 %v3251, %v3247
    %v3416 = vpack.c.b16 %v3252, %v3248
    %v3417 = vpack.c.b16 %v3253, %v3249
    %v3418 = vpack.c.b16 %v3254, %v3250
    %v3419 = vpack.c.b16 %v3259, %v3255
    %v3420 = vpack.c.b16 %v3260, %v3256
    %v3421 = vpack.c.b16 %v3261, %v3257
    %v3422 = vpack.c.b16 %v3262, %v3258
    %v3423 = vpack.c.b16 %v3267, %v3263
    %v3424 = vpack.c.b16 %v3268, %v3264
    %v3425 = vpack.c.b16 %v3269, %v3265
    %v3426 = vpack.c.b16 %v3270, %v3266
    %v3427 = vpack.c.b16 %v3275, %v3271
    %v3428 = vpack.c.b16 %v3276, %v3272
    %v3429 = vpack.c.b16 %v3277, %v3273
    %v3430 = vpack.c.b16 %v3278, %v3274
    %v3431 = vpack.c.b16 %v3283, %v3279
    %v3432 = vpack.c.b16 %v3284, %v3280
    %v3433 = vpack.c.b16 %v3285, %v3281
    %v3434 = vpack.c.b16 %v3286, %v3282
    %v3435 = vpack.c.b16 %v3291, %v3287
    %v3436 = vpack.c.b16 %v3292, %v3288
    %v3437 = vpack.c.b16 %v3293, %v3289
    %v3438 = vpack.c.b16 %v3294, %v3290
    %v3439 = vpack.c.b16 %v3299, %v3295
    %v3440 = vpack.c.b16 %v3300, %v3296
    %v3441 = vpack.c.b16 %v3301, %v3297
    %v3442 = vpack.c.b16 %v3302, %v3298
    %v3443 = vpack.c.b16 %v3307, %v3303
    %v3444 = vpack.c.b16 %v3308, %v3304
    %v3445 = vpack.c.b16 %v3309, %v3305
    %v3446 = vpack.c.b16 %v3310, %v3306
    %v3447 = vpack.c.b16 %v3315, %v3311
    %v3448 = vpack.c.b16 %v3316, %v3312
    %v3449 = vpack.c.b16 %v3317, %v3313
    %v3450 = vpack.c.b16 %v3318, %v3314
    %v3451 = vpack.c.b16 %v3323, %v3319
    %v3452 = vpack.c.b16 %v3324, %v3320
    %v3453 = vpack.c.b16 %v3325, %v3321
    %v3454 = vpack.c.b16 %v3326, %v3322
    %3583 = vmatprep.subr.bf16.mxu0 %v3328
    %3584 = vmatpush1.bf16.msra.mxu0 %v3327
    %3585 = vmatprep.subr.bf16.mxu0 %v3332
    %3586 = vmatpush1.bf16.msra.mxu0 %v3331
    %3587 = vmatprep.subr.bf16.mxu0 %v3336
    %3588 = vmatpush1.bf16.msra.mxu0 %v3335
    %3589 = vmatprep.subr.bf16.mxu0 %v3340
    %3590 = vmatpush1.bf16.msra.mxu0 %v3339
    %3591 = vmatprep.subr.bf16.mxu0 %v3344
    %3592 = vmatpush1.bf16.msra.mxu0 %v3343
    %3593 = vmatprep.subr.bf16.mxu0 %v3348
    %3594 = vmatpush1.bf16.msra.mxu0 %v3347
    %3595 = vmatprep.subr.bf16.mxu0 %v3352
    %3596 = vmatpush1.bf16.msra.mxu0 %v3351
    %3597 = vmatprep.subr.bf16.mxu0 %v3356
    %3598 = vmatpush1.bf16.msra.mxu0 %v3355
    %3599 = vmatprep.subr.bf16.mxu0 %v3360
    %3600 = vmatpush1.bf16.msra.mxu0 %v3359
    %3601 = vmatprep.subr.bf16.mxu0 %v3364
    %3602 = vmatpush1.bf16.msra.mxu0 %v3363
    %3603 = vmatprep.subr.bf16.mxu0 %v3368
    %3604 = vmatpush1.bf16.msra.mxu0 %v3367
    %3605 = vmatprep.subr.bf16.mxu0 %v3372
    %3606 = vmatpush1.bf16.msra.mxu0 %v3371
    %3607 = vmatprep.subr.bf16.mxu0 %v3376
    %3608 = vmatpush1.bf16.msra.mxu0 %v3375
    %3609 = vmatprep.subr.bf16.mxu0 %v3380
    %3610 = vmatpush1.bf16.msra.mxu0 %v3379
    %3611 = vmatprep.subr.bf16.mxu0 %v3384
    %3612 = vmatpush1.bf16.msra.mxu0 %v3383
    %3613 = vmatprep.subr.bf16.mxu0 %v3388
    %3614 = vmatpush1.bf16.msra.mxu0 %v3387
    %3615 = vmatprep.mubr.bf16.mxu0 %v2790
    %3616 = vmatmul.mubr.bf16.gmra.mrb[0].mxu0 %v2789
    %v3617 = vpop.f32.mrb[0].mxu0
    %v3618 = vadd.f32 %v2926, %v3617
    %v3619 = vpop.f32.mrb[0].mxu0
    %v3620 = vadd.f32 %v2930, %v3619
    %v3621 = vpop.f32.mrb[0].mxu0
    %v3622 = vadd.f32 %v2926, %v3621
    %v3623 = vpop.f32.mrb[0].mxu0
    %v3624 = vadd.f32 %v2930, %v3623
    %3625 = vdwg.mxu0
    %3626 = vmatprep.subr.bf16.mxu0 %v3392
    %3627 = vmatpush1.bf16.msra.mxu0 %v3391
    %3628 = vmatprep.subr.bf16.mxu0 %v3396
    %3629 = vmatpush1.bf16.msra.mxu0 %v3395
    %3630 = vmatprep.subr.bf16.mxu0 %v3400
    %3631 = vmatpush1.bf16.msra.mxu0 %v3399
    %3632 = vmatprep.subr.bf16.mxu0 %v3404
    %3633 = vmatpush1.bf16.msra.mxu0 %v3403
    %3634 = vmatprep.subr.bf16.mxu0 %v3408
    %3635 = vmatpush1.bf16.msra.mxu0 %v3407
    %3636 = vmatprep.subr.bf16.mxu0 %v3412
    %3637 = vmatpush1.bf16.msra.mxu0 %v3411
    %3638 = vmatprep.subr.bf16.mxu0 %v3416
    %3639 = vmatpush1.bf16.msra.mxu0 %v3415
    %3640 = vmatprep.subr.bf16.mxu0 %v3420
    %3641 = vmatpush1.bf16.msra.mxu0 %v3419
    %3642 = vmatprep.subr.bf16.mxu0 %v3424
    %3643 = vmatpush1.bf16.msra.mxu0 %v3423
    %3644 = vmatprep.subr.bf16.mxu0 %v3428
    %3645 = vmatpush1.bf16.msra.mxu0 %v3427
    %3646 = vmatprep.subr.bf16.mxu0 %v3432
    %3647 = vmatpush1.bf16.msra.mxu0 %v3431
    %3648 = vmatprep.subr.bf16.mxu0 %v3436
    %3649 = vmatpush1.bf16.msra.mxu0 %v3435
    %3650 = vmatprep.subr.bf16.mxu0 %v3440
    %3651 = vmatpush1.bf16.msra.mxu0 %v3439
    %3652 = vmatprep.subr.bf16.mxu0 %v3444
    %3653 = vmatpush1.bf16.msra.mxu0 %v3443
    %3654 = vmatprep.subr.bf16.mxu0 %v3448
    %3655 = vmatpush1.bf16.msra.mxu0 %v3447
    %3656 = vmatprep.subr.bf16.mxu0 %v3452
    %3657 = vmatpush1.bf16.msra.mxu0 %v3451
    %3658 = vmatprep.mubr.bf16.mxu0 %v2792
    %3659 = vmatmul.mubr.bf16.gmra.mrb[0].mxu0 %v2791
    %v3660 = vpop.f32.mrb[0].mxu0
    %v3661 = vadd.f32 %v3618, %v3660
    %v3662 = vpop.f32.mrb[0].mxu0
    %v3663 = vadd.f32 %v3620, %v3662
    %v3664 = vpop.f32.mrb[0].mxu0
    %v3665 = vadd.f32 %v3622, %v3664
    %v3666 = vpop.f32.mrb[0].mxu0
    %v3667 = vadd.f32 %v3624, %v3666
    %3668 = vdwg.mxu0
    %3669 = vmatprep.subr.bf16.mxu0 %v3330
    %3670 = vmatpush1.bf16.msra.mxu0 %v3329
    %3671 = vmatprep.subr.bf16.mxu0 %v3334
    %3672 = vmatpush1.bf16.msra.mxu0 %v3333
    %3673 = vmatprep.subr.bf16.mxu0 %v3338
    %3674 = vmatpush1.bf16.msra.mxu0 %v3337
    %3675 = vmatprep.subr.bf16.mxu0 %v3342
    %3676 = vmatpush1.bf16.msra.mxu0 %v3341
    %3677 = vmatprep.subr.bf16.mxu0 %v3346
    %3678 = vmatpush1.bf16.msra.mxu0 %v3345
    %3679 = vmatprep.subr.bf16.mxu0 %v3350
    %3680 = vmatpush1.bf16.msra.mxu0 %v3349
    %3681 = vmatprep.subr.bf16.mxu0 %v3354
    %3682 = vmatpush1.bf16.msra.mxu0 %v3353
    %3683 = vmatprep.subr.bf16.mxu0 %v3358
    %3684 = vmatpush1.bf16.msra.mxu0 %v3357
    %3685 = vmatprep.subr.bf16.mxu0 %v3362
    %3686 = vmatpush1.bf16.msra.mxu0 %v3361
    %3687 = vmatprep.subr.bf16.mxu0 %v3366
    %3688 = vmatpush1.bf16.msra.mxu0 %v3365
    %3689 = vmatprep.subr.bf16.mxu0 %v3370
    %3690 = vmatpush1.bf16.msra.mxu0 %v3369
    %3691 = vmatprep.subr.bf16.mxu0 %v3374
    %3692 = vmatpush1.bf16.msra.mxu0 %v3373
    %3693 = vmatprep.subr.bf16.mxu0 %v3378
    %3694 = vmatpush1.bf16.msra.mxu0 %v3377
    %3695 = vmatprep.subr.bf16.mxu0 %v3382
    %3696 = vmatpush1.bf16.msra.mxu0 %v3381
    %3697 = vmatprep.subr.bf16.mxu0 %v3386
    %3698 = vmatpush1.bf16.msra.mxu0 %v3385
    %3699 = vmatprep.subr.bf16.mxu0 %v3390
    %3700 = vmatpush1.bf16.msra.mxu0 %v3389
    %3701 = vmatprep.mubr.bf16.mxu0 %v2790
    %3702 = vmatmul.mubr.bf16.gmra.mrb[0].mxu0 %v2789
    %v3703 = vpop.f32.mrb[0].mxu0
    %v3704 = vadd.f32 %v2934, %v3703
    %v3705 = vpop.f32.mrb[0].mxu0
    %v3706 = vadd.f32 %v2938, %v3705
    %v3707 = vpop.f32.mrb[0].mxu0
    %v3708 = vadd.f32 %v2934, %v3707
    %v3709 = vpop.f32.mrb[0].mxu0
    %v3710 = vadd.f32 %v2938, %v3709
    %3711 = vdwg.mxu0
    %3712 = vmatprep.subr.bf16.mxu0 %v3394
    %3713 = vmatpush1.bf16.msra.mxu0 %v3393
    %3714 = vmatprep.subr.bf16.mxu0 %v3398
    %3715 = vmatpush1.bf16.msra.mxu0 %v3397
    %3716 = vmatprep.subr.bf16.mxu0 %v3402
    %3717 = vmatpush1.bf16.msra.mxu0 %v3401
    %3718 = vmatprep.subr.bf16.mxu0 %v3406
    %3719 = vmatpush1.bf16.msra.mxu0 %v3405
    %3720 = vmatprep.subr.bf16.mxu0 %v3410
    %3721 = vmatpush1.bf16.msra.mxu0 %v3409
    %3722 = vmatprep.subr.bf16.mxu0 %v3414
    %3723 = vmatpush1.bf16.msra.mxu0 %v3413
    %3724 = vmatprep.subr.bf16.mxu0 %v3418
    %3725 = vmatpush1.bf16.msra.mxu0 %v3417
    %3726 = vmatprep.subr.bf16.mxu0 %v3422
    %3727 = vmatpush1.bf16.msra.mxu0 %v3421
    %3728 = vmatprep.subr.bf16.mxu0 %v3426
    %3729 = vmatpush1.bf16.msra.mxu0 %v3425
    %3730 = vmatprep.subr.bf16.mxu0 %v3430
    %3731 = vmatpush1.bf16.msra.mxu0 %v3429
    %3732 = vmatprep.subr.bf16.mxu0 %v3434
    %3733 = vmatpush1.bf16.msra.mxu0 %v3433
    %3734 = vmatprep.subr.bf16.mxu0 %v3438
    %3735 = vmatpush1.bf16.msra.mxu0 %v3437
    %3736 = vmatprep.subr.bf16.mxu0 %v3442
    %3737 = vmatpush1.bf16.msra.mxu0 %v3441
    %3738 = vmatprep.subr.bf16.mxu0 %v3446
    %3739 = vmatpush1.bf16.msra.mxu0 %v3445
    %3740 = vmatprep.subr.bf16.mxu0 %v3450
    %3741 = vmatpush1.bf16.msra.mxu0 %v3449
    %3742 = vmatprep.subr.bf16.mxu0 %v3454
    %3743 = vmatpush1.bf16.msra.mxu0 %v3453
    %3744 = vmatprep.mubr.bf16.mxu0 %v2792
    %3745 = vmatmul.mubr.bf16.gmra.mrb[0].mxu0 %v2791
    %v3746 = vpop.f32.mrb[0].mxu0
    %v3747 = vadd.f32 %v3704, %v3746
    %v3748 = vpop.f32.mrb[0].mxu0
    %v3749 = vadd.f32 %v3706, %v3748
    %v3750 = vpop.f32.mrb[0].mxu0
    %v3751 = vadd.f32 %v3708, %v3750
    %v3752 = vpop.f32.mrb[0].mxu0
    %v3753 = vadd.f32 %v3710, %v3752
    %3754 = vdwg.mxu0
    %vm3755 = vcmp.gt.f32.partialorder %v3661, 0.0
    %vm3756 = vcmp.gt.f32.partialorder %v3663, 0.0
    %vm3757 = vcmp.gt.f32.partialorder %v3747, 0.0
    %vm3758 = vcmp.gt.f32.partialorder %v3749, 0.0
    %vm3759 = vcmp.gt.f32.partialorder %v3665, 0.0
    %vm3760 = vcmp.gt.f32.partialorder %v3667, 0.0
    %vm3761 = vcmp.gt.f32.partialorder %v3751, 0.0
    %vm3762 = vcmp.gt.f32.partialorder %v3753, 0.0
    %v3763 = vmul.f32 %v3661, 0.01
    %v3764 = vmul.f32 %v3663, 0.01
    %v3765 = vmul.f32 %v3747, 0.01
    %v3766 = vmul.f32 %v3749, 0.01
    %v3767 = vmul.f32 %v3665, 0.01
    %v3768 = vmul.f32 %v3667, 0.01
    %v3769 = vmul.f32 %v3751, 0.01
    %v3770 = vmul.f32 %v3753, 0.01
    %v3771 = vsel %vm3755, %v3661, %v3763
    %v3772 = vsel %vm3756, %v3663, %v3764
    %v3773 = vsel %vm3757, %v3747, %v3765
    %v3774 = vsel %vm3758, %v3749, %v3766
    %v3775 = vsel %vm3759, %v3665, %v3767
    %v3776 = vsel %vm3760, %v3667, %v3768
    %v3777 = vsel %vm3761, %v3751, %v3769
    %v3778 = vsel %vm3762, %v3753, %v3770
    %v3779 = vpack.c.bf16 %v3775, %v3771
    %v3780 = vpack.c.bf16 %v3776, %v3772
    %v3781 = vpack.c.bf16 %v3777, %v3773
    %v3782 = vpack.c.bf16 %v3778, %v3774
    %v3783 = vld [vmem:[#allocation11] sm:$0xf]
    %v3784 = vld [vmem:[#allocation11 + $0x4] sm:$0xf]
    %v3785 = vld [vmem:[#allocation11 + $0x8] sm:$0xf]
    %v3786 = vld [vmem:[#allocation11 + $0xc] sm:$0xf]
    %v3787 = vld [vmem:[#allocation11 + $0x10] sm:$0xf]
    %v3788 = vld [vmem:[#allocation11 + $0x14] sm:$0xf]
    %v3789 = vld [vmem:[#allocation11 + $0x18] sm:$0xf]
    %v3790 = vld [vmem:[#allocation11 + $0x1c] sm:$0xf]
    %v3791 = vld [vmem:[#allocation11 + $0x20] sm:$0xf]
    %v3792 = vld [vmem:[#allocation11 + $0x24] sm:$0xf]
    %v3793 = vld [vmem:[#allocation11 + $0x28] sm:$0xf]
    %v3794 = vld [vmem:[#allocation11 + $0x2c] sm:$0xf]
    %v3795 = vld [vmem:[#allocation11 + $0x30] sm:$0xf]
    %v3796 = vld [vmem:[#allocation11 + $0x34] sm:$0xf]
    %v3797 = vld [vmem:[#allocation11 + $0x38] sm:$0xf]
    %v3798 = vld [vmem:[#allocation11 + $0x3c] sm:$0xf]
    %v3799 = vld [vmem:[#allocation11 + $0x40] sm:$0xf]
    %v3800 = vld [vmem:[#allocation11 + $0x44] sm:$0xf]
    %v3801 = vld [vmem:[#allocation11 + $0x48] sm:$0xf]
    %v3802 = vld [vmem:[#allocation11 + $0x4c] sm:$0xf]
    %v3803 = vld [vmem:[#allocation11 + $0x50] sm:$0xf]
    %v3804 = vld [vmem:[#allocation11 + $0x54] sm:$0xf]
    %v3805 = vld [vmem:[#allocation11 + $0x58] sm:$0xf]
    %v3806 = vld [vmem:[#allocation11 + $0x5c] sm:$0xf]
    %v3807 = vld [vmem:[#allocation11 + $0x60] sm:$0xf]
    %v3808 = vld [vmem:[#allocation11 + $0x64] sm:$0xf]
    %v3809 = vld [vmem:[#allocation11 + $0x68] sm:$0xf]
    %v3810 = vld [vmem:[#allocation11 + $0x6c] sm:$0xf]
    %v3811 = vld [vmem:[#allocation11 + $0x70] sm:$0xf]
    %v3812 = vld [vmem:[#allocation11 + $0x74] sm:$0xf]
    %v3813 = vld [vmem:[#allocation11 + $0x78] sm:$0xf]
    %v3814 = vld [vmem:[#allocation11 + $0x7c] sm:$0xf]
    %v3815 = vld [vmem:[#allocation11 + $0x80] sm:$0xf]
    %v3816 = vld [vmem:[#allocation11 + $0x84] sm:$0xf]
    %v3817 = vld [vmem:[#allocation11 + $0x88] sm:$0xf]
    %v3818 = vld [vmem:[#allocation11 + $0x8c] sm:$0xf]
    %v3819 = vld [vmem:[#allocation11 + $0x90] sm:$0xf]
    %v3820 = vld [vmem:[#allocation11 + $0x94] sm:$0xf]
    %v3821 = vld [vmem:[#allocation11 + $0x98] sm:$0xf]
    %v3822 = vld [vmem:[#allocation11 + $0x9c] sm:$0xf]
    %v3823 = vld [vmem:[#allocation11 + $0xa0] sm:$0xf]
    %v3824 = vld [vmem:[#allocation11 + $0xa4] sm:$0xf]
    %v3825 = vld [vmem:[#allocation11 + $0xa8] sm:$0xf]
    %v3826 = vld [vmem:[#allocation11 + $0xac] sm:$0xf]
    %v3827 = vld [vmem:[#allocation11 + $0xb0] sm:$0xf]
    %v3828 = vld [vmem:[#allocation11 + $0xb4] sm:$0xf]
    %v3829 = vld [vmem:[#allocation11 + $0xb8] sm:$0xf]
    %v3830 = vld [vmem:[#allocation11 + $0xbc] sm:$0xf]
    %v3831 = vld [vmem:[#allocation11 + $0xc0] sm:$0xf]
    %v3832 = vld [vmem:[#allocation11 + $0xc4] sm:$0xf]
    %v3833 = vld [vmem:[#allocation11 + $0xc8] sm:$0xf]
    %v3834 = vld [vmem:[#allocation11 + $0xcc] sm:$0xf]
    %v3835 = vld [vmem:[#allocation11 + $0xd0] sm:$0xf]
    %v3836 = vld [vmem:[#allocation11 + $0xd4] sm:$0xf]
    %v3837 = vld [vmem:[#allocation11 + $0xd8] sm:$0xf]
    %v3838 = vld [vmem:[#allocation11 + $0xdc] sm:$0xf]
    %v3839 = vld [vmem:[#allocation11 + $0xe0] sm:$0xf]
    %v3840 = vld [vmem:[#allocation11 + $0xe4] sm:$0xf]
    %v3841 = vld [vmem:[#allocation11 + $0xe8] sm:$0xf]
    %v3842 = vld [vmem:[#allocation11 + $0xec] sm:$0xf]
    %v3843 = vld [vmem:[#allocation11 + $0xf0] sm:$0xf]
    %v3844 = vld [vmem:[#allocation11 + $0xf4] sm:$0xf]
    %v3845 = vld [vmem:[#allocation11 + $0xf8] sm:$0xf]
    %v3846 = vld [vmem:[#allocation11 + $0xfc] sm:$0xf]
    %v3847 = vld [vmem:[#allocation13] sm:$0x1]
    %v3849 = vlaneseq
    %v3850 = vshrl.u32 %v3849, 7
    %v3851 = vsub.s32 0, %v3850
    %v3852 = vrot.slane %v3847, %v3851
    %v3918 = vunpack.c.l.b16 %v3783
    %v3919 = vunpack.c.l.b16 %v3784
    %v3920 = vunpack.c.l.b16 %v3785
    %v3921 = vunpack.c.l.b16 %v3786
    %v3922 = vunpack.c.l.b16 %v3787
    %v3923 = vunpack.c.l.b16 %v3788
    %v3924 = vunpack.c.l.b16 %v3789
    %v3925 = vunpack.c.l.b16 %v3790
    %v3926 = vunpack.c.l.b16 %v3791
    %v3927 = vunpack.c.l.b16 %v3792
    %v3928 = vunpack.c.l.b16 %v3793
    %v3929 = vunpack.c.l.b16 %v3794
    %v3930 = vunpack.c.l.b16 %v3795
    %v3931 = vunpack.c.l.b16 %v3796
    %v3932 = vunpack.c.l.b16 %v3797
    %v3933 = vunpack.c.l.b16 %v3798
    %v3934 = vunpack.c.l.b16 %v3799
    %v3935 = vunpack.c.l.b16 %v3800
    %v3936 = vunpack.c.l.b16 %v3801
    %v3937 = vunpack.c.l.b16 %v3802
    %v3938 = vunpack.c.l.b16 %v3803
    %v3939 = vunpack.c.l.b16 %v3804
    %v3940 = vunpack.c.l.b16 %v3805
    %v3941 = vunpack.c.l.b16 %v3806
    %v3942 = vunpack.c.l.b16 %v3807
    %v3943 = vunpack.c.l.b16 %v3808
    %v3944 = vunpack.c.l.b16 %v3809
    %v3945 = vunpack.c.l.b16 %v3810
    %v3946 = vunpack.c.l.b16 %v3811
    %v3947 = vunpack.c.l.b16 %v3812
    %v3948 = vunpack.c.l.b16 %v3813
    %v3949 = vunpack.c.l.b16 %v3814
    %v3950 = vunpack.c.l.b16 %v3815
    %v3951 = vunpack.c.l.b16 %v3816
    %v3952 = vunpack.c.l.b16 %v3817
    %v3953 = vunpack.c.l.b16 %v3818
    %v3954 = vunpack.c.l.b16 %v3819
    %v3955 = vunpack.c.l.b16 %v3820
    %v3956 = vunpack.c.l.b16 %v3821
    %v3957 = vunpack.c.l.b16 %v3822
    %v3958 = vunpack.c.l.b16 %v3823
    %v3959 = vunpack.c.l.b16 %v3824
    %v3960 = vunpack.c.l.b16 %v3825
    %v3961 = vunpack.c.l.b16 %v3826
    %v3962 = vunpack.c.l.b16 %v3827
    %v3963 = vunpack.c.l.b16 %v3828
    %v3964 = vunpack.c.l.b16 %v3829
    %v3965 = vunpack.c.l.b16 %v3830
    %v3966 = vunpack.c.l.b16 %v3831
    %v3967 = vunpack.c.l.b16 %v3832
    %v3968 = vunpack.c.l.b16 %v3833
    %v3969 = vunpack.c.l.b16 %v3834
    %v3970 = vunpack.c.l.b16 %v3835
    %v3971 = vunpack.c.l.b16 %v3836
    %v3972 = vunpack.c.l.b16 %v3837
    %v3973 = vunpack.c.l.b16 %v3838
    %v3974 = vunpack.c.l.b16 %v3839
    %v3975 = vunpack.c.l.b16 %v3840
    %v3976 = vunpack.c.l.b16 %v3841
    %v3977 = vunpack.c.l.b16 %v3842
    %v3978 = vunpack.c.l.b16 %v3843
    %v3979 = vunpack.c.l.b16 %v3844
    %v3980 = vunpack.c.l.b16 %v3845
    %v3981 = vunpack.c.l.b16 %v3846
    %v3982 = vpack.c.b16 %v3919, %v3918
    %v3983 = vpack.c.b16 %v3921, %v3920
    %v3984 = vpack.c.b16 %v3923, %v3922
    %v3985 = vpack.c.b16 %v3925, %v3924
    %v3986 = vpack.c.b16 %v3927, %v3926
    %v3987 = vpack.c.b16 %v3929, %v3928
    %v3988 = vpack.c.b16 %v3931, %v3930
    %v3989 = vpack.c.b16 %v3933, %v3932
    %v3990 = vpack.c.b16 %v3935, %v3934
    %v3991 = vpack.c.b16 %v3937, %v3936
    %v3992 = vpack.c.b16 %v3939, %v3938
    %v3993 = vpack.c.b16 %v3941, %v3940
    %v3994 = vpack.c.b16 %v3943, %v3942
    %v3995 = vpack.c.b16 %v3945, %v3944
    %v3996 = vpack.c.b16 %v3947, %v3946
    %v3997 = vpack.c.b16 %v3949, %v3948
    %v3998 = vpack.c.b16 %v3951, %v3950
    %v3999 = vpack.c.b16 %v3953, %v3952
    %v4000 = vpack.c.b16 %v3955, %v3954
    %v4001 = vpack.c.b16 %v3957, %v3956
    %v4002 = vpack.c.b16 %v3959, %v3958
    %v4003 = vpack.c.b16 %v3961, %v3960
    %v4004 = vpack.c.b16 %v3963, %v3962
    %v4005 = vpack.c.b16 %v3965, %v3964
    %v4006 = vpack.c.b16 %v3967, %v3966
    %v4007 = vpack.c.b16 %v3969, %v3968
    %v4008 = vpack.c.b16 %v3971, %v3970
    %v4009 = vpack.c.b16 %v3973, %v3972
    %v4010 = vpack.c.b16 %v3975, %v3974
    %v4011 = vpack.c.b16 %v3977, %v3976
    %v4012 = vpack.c.b16 %v3979, %v3978
    %v4013 = vpack.c.b16 %v3981, %v3980
    %4046 = vmatprep.subr.bf16.mxu0 0
    %4047 = vmatpush1.bf16.msra.mxu0 %v3982
    %4048 = vmatprep.subr.bf16.mxu0 0
    %4049 = vmatpush1.bf16.msra.mxu0 %v3983
    %4050 = vmatprep.subr.bf16.mxu0 0
    %4051 = vmatpush1.bf16.msra.mxu0 %v3984
    %4052 = vmatprep.subr.bf16.mxu0 0
    %4053 = vmatpush1.bf16.msra.mxu0 %v3985
    %4054 = vmatprep.subr.bf16.mxu0 0
    %4055 = vmatpush1.bf16.msra.mxu0 %v3986
    %4056 = vmatprep.subr.bf16.mxu0 0
    %4057 = vmatpush1.bf16.msra.mxu0 %v3987
    %4058 = vmatprep.subr.bf16.mxu0 0
    %4059 = vmatpush1.bf16.msra.mxu0 %v3988
    %4060 = vmatprep.subr.bf16.mxu0 0
    %4061 = vmatpush1.bf16.msra.mxu0 %v3989
    %4062 = vmatprep.subr.bf16.mxu0 0
    %4063 = vmatpush1.bf16.msra.mxu0 %v3990
    %4064 = vmatprep.subr.bf16.mxu0 0
    %4065 = vmatpush1.bf16.msra.mxu0 %v3991
    %4066 = vmatprep.subr.bf16.mxu0 0
    %4067 = vmatpush1.bf16.msra.mxu0 %v3992
    %4068 = vmatprep.subr.bf16.mxu0 0
    %4069 = vmatpush1.bf16.msra.mxu0 %v3993
    %4070 = vmatprep.subr.bf16.mxu0 0
    %4071 = vmatpush1.bf16.msra.mxu0 %v3994
    %4072 = vmatprep.subr.bf16.mxu0 0
    %4073 = vmatpush1.bf16.msra.mxu0 %v3995
    %4074 = vmatprep.subr.bf16.mxu0 0
    %4075 = vmatpush1.bf16.msra.mxu0 %v3996
    %4076 = vmatprep.subr.bf16.mxu0 0
    %4077 = vmatpush1.bf16.msra.mxu0 %v3997
    %4078 = vmatprep.mubr.bf16.mxu0 %v3780
    %4079 = vmatmul.mubr.bf16.gmra.mrb[0].mxu0 %v3779
    %v4080 = vpop.f32.mrb[0].mxu0
    %v4081 = vadd.f32 %v3852, %v4080
    %v4082 = vpop.f32.mrb[0].mxu0
    %v4083 = vpop.f32.mrb[0].mxu0
    %v4084 = vadd.f32 %v3852, %v4083
    %v4085 = vpop.f32.mrb[0].mxu0
    %4086 = vdwg.mxu0
    %4087 = vmatprep.subr.bf16.mxu0 0
    %4088 = vmatpush1.bf16.msra.mxu0 %v3998
    %4089 = vmatprep.subr.bf16.mxu0 0
    %4090 = vmatpush1.bf16.msra.mxu0 %v3999
    %4091 = vmatprep.subr.bf16.mxu0 0
    %4092 = vmatpush1.bf16.msra.mxu0 %v4000
    %4093 = vmatprep.subr.bf16.mxu0 0
    %4094 = vmatpush1.bf16.msra.mxu0 %v4001
    %4095 = vmatprep.subr.bf16.mxu0 0
    %4096 = vmatpush1.bf16.msra.mxu0 %v4002
    %4097 = vmatprep.subr.bf16.mxu0 0
    %4098 = vmatpush1.bf16.msra.mxu0 %v4003
    %4099 = vmatprep.subr.bf16.mxu0 0
    %4100 = vmatpush1.bf16.msra.mxu0 %v4004
    %4101 = vmatprep.subr.bf16.mxu0 0
    %4102 = vmatpush1.bf16.msra.mxu0 %v4005
    %4103 = vmatprep.subr.bf16.mxu0 0
    %4104 = vmatpush1.bf16.msra.mxu0 %v4006
    %4105 = vmatprep.subr.bf16.mxu0 0
    %4106 = vmatpush1.bf16.msra.mxu0 %v4007
    %4107 = vmatprep.subr.bf16.mxu0 0
    %4108 = vmatpush1.bf16.msra.mxu0 %v4008
    %4109 = vmatprep.subr.bf16.mxu0 0
    %4110 = vmatpush1.bf16.msra.mxu0 %v4009
    %4111 = vmatprep.subr.bf16.mxu0 0
    %4112 = vmatpush1.bf16.msra.mxu0 %v4010
    %4113 = vmatprep.subr.bf16.mxu0 0
    %4114 = vmatpush1.bf16.msra.mxu0 %v4011
    %4115 = vmatprep.subr.bf16.mxu0 0
    %4116 = vmatpush1.bf16.msra.mxu0 %v4012
    %4117 = vmatprep.subr.bf16.mxu0 0
    %4118 = vmatpush1.bf16.msra.mxu0 %v4013
    %4119 = vmatprep.mubr.bf16.mxu0 %v3782
    %4120 = vmatmul.mubr.bf16.gmra.mrb[0].mxu0 %v3781
    %v4121 = vpop.f32.mrb[0].mxu0
    %v4122 = vadd.f32 %v4081, %v4121
    %v4123 = vpop.f32.mrb[0].mxu0
    %v4124 = vpop.f32.mrb[0].mxu0
    %v4125 = vadd.f32 %v4084, %v4124
    %v4126 = vpop.f32.mrb[0].mxu0
    %4127 = vdwg.mxu0
    %vm4128 = vcmp.gt.f32.partialorder %v4122, 0.0
    %vm4129 = vcmp.gt.f32.partialorder %v4125, 0.0
    %v4130 = vmul.f32 %v4122, 0.01
    %v4131 = vmul.f32 %v4125, 0.01
    %v4132 = vsel %vm4128, %v4122, %v4130
    %v4133 = vsel %vm4129, %v4125, %v4131
    %v4134 = vpack.c.bf16 %v4133, %v4132
    %v4135 = vld [vmem:[%s7] sm:$0xf]
    %v4136 = vld [vmem:[%s7 + $0x4] sm:$0xf]
    %v4137 = vld [vmem:[%s7 + $0x8] sm:$0xf]
    %v4138 = vld [vmem:[%s7 + $0xc] sm:$0xf]
    %v4139 = vld [vmem:[%s7 + $0x10] sm:$0xf]
    %v4140 = vld [vmem:[%s7 + $0x14] sm:$0xf]
    %v4141 = vld [vmem:[%s7 + $0x18] sm:$0xf]
    %v4142 = vld [vmem:[%s7 + $0x1c] sm:$0xf]
    %v4143 = vld [vmem:[%s7 + $0x20] sm:$0xf]
    %v4144 = vld [vmem:[%s7 + $0x24] sm:$0xf]
    %v4145 = vld [vmem:[%s7 + $0x28] sm:$0xf]
    %v4146 = vld [vmem:[%s7 + $0x2c] sm:$0xf]
    %v4147 = vld [vmem:[%s7 + $0x30] sm:$0xf]
    %v4148 = vld [vmem:[%s7 + $0x34] sm:$0xf]
    %v4149 = vld [vmem:[%s7 + $0x38] sm:$0xf]
    %v4150 = vld [vmem:[%s7 + $0x3c] sm:$0xf]
    %v4151 = vld [vmem:[#allocation14] sm:$0x1]
    %v4153 = vlaneseq
    %v4154 = vshrl.u32 %v4153, 7
    %v4155 = vsub.s32 0, %v4154
    %v4156 = vrot.slane %v4151, %v4155
    %v4174 = vunpack.c.l.b16 %v4135
    %v4175 = vunpack.c.l.b16 %v4136
    %v4176 = vunpack.c.l.b16 %v4137
    %v4177 = vunpack.c.l.b16 %v4138
    %v4178 = vunpack.c.l.b16 %v4139
    %v4179 = vunpack.c.l.b16 %v4140
    %v4180 = vunpack.c.l.b16 %v4141
    %v4181 = vunpack.c.l.b16 %v4142
    %v4182 = vunpack.c.l.b16 %v4143
    %v4183 = vunpack.c.l.b16 %v4144
    %v4184 = vunpack.c.l.b16 %v4145
    %v4185 = vunpack.c.l.b16 %v4146
    %v4186 = vunpack.c.l.b16 %v4147
    %v4187 = vunpack.c.l.b16 %v4148
    %v4188 = vunpack.c.l.b16 %v4149
    %v4189 = vunpack.c.l.b16 %v4150
    %v4190 = vpack.c.b16 %v4175, %v4174
    %v4191 = vpack.c.b16 %v4177, %v4176
    %v4192 = vpack.c.b16 %v4179, %v4178
    %v4193 = vpack.c.b16 %v4181, %v4180
    %v4194 = vpack.c.b16 %v4183, %v4182
    %v4195 = vpack.c.b16 %v4185, %v4184
    %v4196 = vpack.c.b16 %v4187, %v4186
    %v4197 = vpack.c.b16 %v4189, %v4188
    %4206 = vmatprep.subr.bf16.mxu0 0
    %4207 = vmatpush1.bf16.msra.mxu0 %v4190
    %4208 = vmatprep.subr.bf16.mxu0 0
    %4209 = vmatpush1.bf16.msra.mxu0 %v4191
    %4210 = vmatprep.subr.bf16.mxu0 0
    %4211 = vmatpush1.bf16.msra.mxu0 %v4192
    %4212 = vmatprep.subr.bf16.mxu0 0
    %4213 = vmatpush1.bf16.msra.mxu0 %v4193
    %4214 = vmatprep.subr.bf16.mxu0 0
    %4215 = vmatpush1.bf16.msra.mxu0 %v4194
    %4216 = vmatprep.subr.bf16.mxu0 0
    %4217 = vmatpush1.bf16.msra.mxu0 %v4195
    %4218 = vmatprep.subr.bf16.mxu0 0
    %4219 = vmatpush1.bf16.msra.mxu0 %v4196
    %4220 = vmatprep.subr.bf16.mxu0 0
    %4221 = vmatpush1.bf16.msra.mxu0 %v4197
    %4222 = vmatprep.subr.bf16.mxu0 0
    %4223 = vmatpush1.bf16.msra.mxu0 0
    %4224 = vmatprep.subr.bf16.mxu0 0
    %4225 = vmatpush1.bf16.msra.mxu0 0
    %4226 = vmatprep.subr.bf16.mxu0 0
    %4227 = vmatpush1.bf16.msra.mxu0 0
    %4228 = vmatprep.subr.bf16.mxu0 0
    %4229 = vmatpush1.bf16.msra.mxu0 0
    %4230 = vmatprep.subr.bf16.mxu0 0
    %4231 = vmatpush1.bf16.msra.mxu0 0
    %4232 = vmatprep.subr.bf16.mxu0 0
    %4233 = vmatpush1.bf16.msra.mxu0 0
    %4234 = vmatprep.subr.bf16.mxu0 0
    %4235 = vmatpush1.bf16.msra.mxu0 0
    %4236 = vmatprep.subr.bf16.mxu0 0
    %4237 = vmatpush1.bf16.msra.mxu0 0
    %4238 = vmatprep.mubr.bf16.mxu0 0
    %4239 = vmatmul.mubr.bf16.gmra.mrb[0].mxu0 %v4134
    %v4240 = vpop.f32.mrb[0].mxu0
    %v4241 = vadd.f32 %v4156, %v4240
    %v4242 = vpop.f32.mrb[0].mxu0
    %v4243 = vpop.f32.mrb[0].mxu0
    %v4244 = vadd.f32 %v4156, %v4243
    %v4245 = vpop.f32.mrb[0].mxu0
    %4246 = vdwg.mxu0
    %v4247 = vxor.u32 %v4241, 2147483648
    %v4248 = vxor.u32 %v4244, 2147483648
    %v4249 = vmul.f32 %v4247, 1.442695
    %v4250 = vpow.pop %v4249
    %v4251 = vmul.f32 %v4248, 1.442695
    %v4252 = vpow.pop %v4251
    %v4253 = vadd.f32 %v4250, 1.0
    %v4254 = vadd.f32 %v4252, 1.0
    %v4255 = vrcp.pop %v4253
    %v4256 = vmul.f32 1.0, %v4255
    %v4257 = vrcp.pop %v4254
    %v4258 = vmul.f32 1.0, %v4257
    %vm4259 = vcmask 162816
    %4260 = vst.msk [vmem:[#allocation16] sm:$0xff] %vm4259, %v4256
    %4261 = vst.msk [vmem:[#allocation16 + $0x8] sm:$0xff] %vm4259, %v4258
    // Predicated region
    $region70: #{tpu_custom_call.1} parent=1 // pred_check
      _
    $region71: #{tpu_custom_call.1} parent=1 // pred_check_branch
      %4263 = sbr.rel (0) target = $region73
    $region72: #{tpu_custom_call.1} parent=1 // pred_region
      %s4265 = ssub.s32 256, 32
      %4266 = vsyncadd [#allocation4], %s4265
      %s4267 = sshll.u32 [#allocation16], 4
      %s4268 = int_to_ptr.vmem [resolvable:$true] %s4267
      %4273 = dma.vmem_to_hbm [thread:$0]  %s4268, 32, %s9, [#allocation4], 32, 32, 2
    $region73: #{tpu_custom_call.1} parent=1 // pred_fallthru
      _
    // Predicated region
    $region74: #{tpu_custom_call.1} parent=1 // pred_check
      _
    $region75: #{tpu_custom_call.1} parent=1 // pred_check_branch
      %4275 = sbr.rel (0) target = $region77
    $region76: #{tpu_custom_call.1} parent=1 // pred_region
      %4276 = dma.done [#allocation4], 256
    $region77: #{tpu_custom_call.1} parent=1 // pred_fallthru
      _
    %4277 = vsyncpa [#allocation3], 1
    %4278 = vsyncpa [#allocation6], 1
    %4279 = vsyncpa [#allocation9], 1
    %4280 = vsyncpa [#allocation12], 1
    %4281 = vsyncpa [#allocation15], 1
    %4282 = vsyncpa [#allocation4], 1

</llo_original>
